<compile_context>
chip_gen: v7x
topology: tpu7x:2x2x1
jax: 0.10.0
libtpu: 0.0.40
codegen_flags: <defaults>
</compile_context>

<pallas_src>
import functools

import numpy as np

import jax
import jax.numpy as jnp
from jax.experimental import pallas as pl
from jax.experimental.pallas import tpu as pltpu


# ----------------------------------------------------------------------------
# Fused kernel: (folded) patch-embed + heads matmul -> backproject epilogue
# ----------------------------------------------------------------------------
def _fused_encoder_kernel(invk_ref, x_ref, w_ref, bh_ref, heads_ref, cam_ref,
                          *, img_w, od, tm, shift):
    r = pl.program_id(0)          # row tile over the token axis
    b = pl.program_id(1)          # batch index

    # (1) single fused matmul: (TM, K_PAD)bf16 @ (K_PAD, OH_PAD)bf16 -> f32 acc,
    #     plus the per-batch folded bias (patch-embed bias + cls token + head biases).
    out = jnp.dot(x_ref[0], w_ref[...], preferred_element_type=jnp.float32) + bh_ref[0]
    heads_ref[0] = out                                            # lane-dense store

    # (2) BackprojectDepth epilogue on the depth slice (first `od` columns; the slice
    #     starts at lane 0 so no relayout is needed).
    depth = out[:, :od]                                           # (TM, OD) f32

    i_row = jax.lax.broadcasted_iota(jnp.int32, (tm, od), 0)      # token row in tile
    i_col = jax.lax.broadcasted_iota(jnp.int32, (tm, od), 1)      # pixel within patch
    n = (r * tm + i_row) * od + i_col                             # flat pixel index
    n_f = n.astype(jnp.float32)
    w_f = float(img_w)
    ys = jnp.floor((n_f + 0.5) * (1.0 / w_f))                     # n // W (f32-safe, N < 2^24)
    xs = n_f - ys * w_f                                           # n %  W
    if shift != 0.0:
        xs = xs + shift
        ys = ys + shift

    # rays = inv_K[:3, :3] @ [x; y; 1], unrolled with SMEM scalars (no (3,3,N) temp).
    cam_ref[0, 0] = depth * (invk_ref[b, 0] * xs + invk_ref[b, 1] * ys + invk_ref[b, 2])
    cam_ref[0, 1] = depth * (invk_ref[b, 3] * xs + invk_ref[b, 4] * ys + invk_ref[b, 5])
    cam_ref[0, 2] = depth * (invk_ref[b, 6] * xs + invk_ref[b, 7] * ys + invk_ref[b, 8])


# ----------------------------------------------------------------------------
# Wrapper (thin JAX glue around the fused kernel)
# ----------------------------------------------------------------------------
def _round_up(v, m):
    return -(-v // m) * m


def _pick_row_tile(np_tokens, cap=512):
    """Largest row tile <= cap: full token axis if it fits, else the largest multiple
    of 32 that divides NP (clean last tile); otherwise fall back to `cap` and rely on
    Pallas edge-block write clipping for the partial last tile."""
    if np_tokens <= cap:
        return np_tokens
    for tm in range(cap, 31, -32):
        if np_tokens % tm == 0:
            return tm
    return cap


def rgb_unidepth_encoder_forward(rgbs, gt_K, params, *, patch_size, pts_feat_dim,
                                 shift_rays_half_pixel=0.0):
    B, C, H, W = rgbs.shape
    PS = patch_size
    P2 = PS * PS
    hp, wp = H // PS, W // PS
    NP = hp * wp
    N = H * W
    f32 = jnp.float32
    assert H % PS == 0 and W % PS == 0
    assert N < (1 << 24), "f32 floor-division pixel-index trick requires N < 2^24"

    inv_K = jnp.linalg.inv(gt_K.astype(f32))
    inv_k9 = inv_K[:, :3, :3].reshape(B, 9).astype(f32)            # SMEM scalar table

    # ---- fold the (linear) stand-in encoder into the heads -------------------------
    #   (x @ We + be + cls) @ [Wd|Wf] + [bd|bf]
    #     == x @ (We @ [Wd|Wf]) + ((be + cls) @ [Wd|Wf] + [bd|bf])
    # NOTE: the folded constant is computed in f32 while the matmul term uses bf16
    #       operands (f32 accumulation) — a documented, benign precision asymmetry.
    # TODO(synk): this collapse is only valid for the linear stand-in pixel_encoder;
    #             a real ViT encoder would require the two-stage form again.
    w_heads = jnp.concatenate([params["W_depth"], params["W_feat"]], axis=1).astype(f32)
    b_heads = jnp.concatenate([params["b_depth"], params["b_feat"]], axis=1).astype(f32)
    OD = P2                                     # depth columns
    OH = w_heads.shape[1]                       # P2 * (1 + pts_feat_dim)
    OH_PAD = _round_up(OH, 128)                 # lane-dense heads stores / MXU N dim
    K_in = C * P2
    K_PAD = _round_up(K_in, 128)                # lane-aligned contraction dim

    w_eff = params["W_enc"].astype(f32) @ w_heads                               # (K, OH)
    cls_plus = params["cls_tok"].astype(f32) + params["b_enc"].astype(f32)      # (B,1,D)
    bh_eff = jnp.einsum("bod,dk->bok", cls_plus, w_heads) + b_heads[None]       # (B,1,OH)

    w_eff_p = jnp.zeros((K_PAD, OH_PAD), f32).at[:K_in, :OH].set(w_eff).astype(jnp.bfloat16)
    bh_eff_p = jnp.zeros((B, 1, OH_PAD), f32).at[:, :, :OH].set(bh_eff)

    # ---- patchify: b c (hp p1) (wp p2) -> b (hp wp) (c p1 p2), bf16, K zero-padded --
    # TODO(synk): this still materializes a (B, NP, K_PAD) bf16 copy in HBM (~25% of
    #             total HBM traffic at real resolutions); fusing it into the Pallas
    #             operand (CompilerParams(allow_input_fusion=[1])) or an in-kernel
    #             patchify DMA is the remaining wrapper-side optimization.
    x = rgbs.astype(jnp.bfloat16).reshape(B, C, hp, PS, wp, PS)
    x = x.transpose(0, 2, 4, 1, 3, 5).reshape(B, NP, K_in)
    if K_PAD != K_in:
        x = jnp.pad(x, ((0, 0), (0, 0), (0, K_PAD - K_in)))

    TM = _pick_row_tile(NP, cap=512)
    RT = pl.cdiv(NP, TM)

    # Scoped-VMEM limit: raised above the conservative 16 MiB default only when the
    # actual double-buffered per-step footprint needs it (safe on every generation).
    cam_lane = _round_up(OD, 128)
    step_bytes = 2 * (TM * K_PAD * 2 + K_PAD * OH_PAD * 2 + OH_PAD * 4
                      + TM * OH_PAD * 4 + 3 * TM * cam_lane * 4)
    vmem_limit = int(min(100 * 1024 * 1024, max(2 * step_bytes, 16 * 1024 * 1024)))

    cost = pl.CostEstimate(
        flops=2 * B * NP * K_PAD * OH_PAD + 20 * B * NP * OD,
        transcendentals=0,
        bytes_accessed=(B * NP * K_PAD * 2 + K_PAD * OH_PAD * 2 + B * OH_PAD * 4
                        + B * 9 * 4 + B * NP * OH_PAD * 4 + B * 3 * NP * OD * 4),
    )

    kernel = functools.partial(_fused_encoder_kernel, img_w=W, od=OD, tm=TM,
                               shift=float(shift_rays_half_pixel))

    heads_out, cam = pl.pallas_call(
        kernel,
        out_shape=(
            jax.ShapeDtypeStruct((B, NP, OH_PAD), f32),        # [depth | feat | 0-pad]
            jax.ShapeDtypeStruct((B, 3, NP, OD), f32),         # backprojected cam pts
        ),
        grid=(RT, B),                                          # row tiles outermost:
                                                               # balanced v7x sharding
        in_specs=[
            pl.BlockSpec(memory_space=pltpu.MemorySpace.SMEM),        # inv_K (B, 9)
            pl.BlockSpec((1, TM, K_PAD), lambda r, b: (b, r, 0)),     # patchified rgbs
            pl.BlockSpec((K_PAD, OH_PAD), lambda r, b: (0, 0)),       # fused weights
            pl.BlockSpec((1, 1, OH_PAD), lambda r, b: (b, 0, 0)),     # per-batch bias
        ],
        out_specs=[
            pl.BlockSpec((1, TM, OH_PAD), lambda r, b: (b, r, 0)),
            pl.BlockSpec((1, 3, TM, OD), lambda r, b: (b, 0, r, 0)),
        ],
        compiler_params=pltpu.CompilerParams(
            dimension_semantics=("parallel", "parallel"),
            vmem_limit_bytes=vmem_limit),
        cost_estimate=cost,
    )(inv_k9, x, w_eff_p, bh_eff_p)

    # ---- split + rearrange exactly as the reference ---------------------------------
    # NOTE: the reference treats the patch-major '(hp wp p)' token order as raster
    #       '(h w)' order in BackprojectDepth and the depth reshape; this kernel is
    #       faithful to that convention.
    depth_tok = heads_out[:, :, :OD]                        # (B, NP, P2)
    feat_tok = heads_out[:, :, OD:OH]                       # (B, NP, P2 * pts_feat_dim)

    pts_feat = feat_tok.reshape(B, NP * P2, pts_feat_dim)   # 'b hp wp (p d) -> b (hp wp p) d'
    pts3d = cam.reshape(B, 3, N).transpose(0, 2, 1)         # 'b c n -> b n c'[:, :, :3]
    pts_rgb = jnp.transpose(rgbs.astype(f32), (0, 2, 3, 1)).reshape(B, N, C)
    pts_depth = depth_tok.reshape(B, 1, H, W)               # 'b (h w) c -> b c h w'

    return pts3d, pts_feat, pts_rgb, pts_depth


# ----------------------------------------------------------------------------
# Pure-JAX f32 reference of the same math (module semantics), for validation
# ----------------------------------------------------------------------------
def _reference_forward(rgbs, gt_K, params, *, patch_size, pts_feat_dim,
                       shift_rays_half_pixel=0.0):
    B, C, H, W = rgbs.shape
    PS = patch_size
    P2 = PS * PS
    hp, wp = H // PS, W // PS
    NP = hp * wp
    N = H * W
    f32 = jnp.float32

    x = rgbs.astype(f32).reshape(B, C, hp, PS, wp, PS)
    x = x.transpose(0, 2, 4, 1, 3, 5).reshape(B, NP, C * P2)
    enc = x @ params["W_enc"].astype(f32) + params["b_enc"].astype(f32)
    enc = enc + params["cls_tok"].astype(f32)                     # dino: add cls token
    depth = enc @ params["W_depth"].astype(f32) + params["b_depth"].astype(f32)
    feat = enc @ params["W_feat"].astype(f32) + params["b_feat"].astype(f32)

    depth_flat = depth.reshape(B, N)                              # 'b hp wp (p 1) -> b (hp wp p)'
    pts_feat = feat.reshape(B, NP, P2, pts_feat_dim).reshape(B, N, pts_feat_dim)

    inv_K = jnp.linalg.inv(gt_K.astype(f32))[:, :3, :3]
    xs = jnp.tile(jnp.arange(W, dtype=f32), H) + shift_rays_half_pixel
    ys = jnp.repeat(jnp.arange(H, dtype=f32), W) + shift_rays_half_pixel
    pix = jnp.stack([xs, ys, jnp.ones((N,), f32)], axis=0)        # (3, N)
    rays = jnp.einsum("bij,jn->bin", inv_K, pix)                  # (B, 3, N)
    cam = depth_flat[:, None, :] * rays
    pts3d = cam.transpose(0, 2, 1)
    pts_rgb = rgbs.astype(f32).transpose(0, 2, 3, 1).reshape(B, N, C)
    pts_depth = depth_flat.reshape(B, 1, H, W)
    return pts3d, pts_feat, pts_rgb, pts_depth


# ----------------------------------------------------------------------------
# Deterministic parameter init + run
# ----------------------------------------------------------------------------
if __name__ == "__main__":
    # Small shapes consistent with the module (patch_size = 14); H, W equal the
    # synthetic unidepth.image_shape, so the no-resize preprocessing path applies.
    B, C, H, W = 2, 3, 28, 42
    PATCH_SIZE = 14
    P2 = PATCH_SIZE * PATCH_SIZE
    HP, WP = H // PATCH_SIZE, W // PATCH_SIZE
    ENC_DIM = 128                      # synthetic pixel_encoder.embed_dim
    PTS_FEAT_DIM = 4                   # cfg.model.backbone.pts_feat_dim
    SHIFT = 0.5                        # cfg.model.shift_rays_half_pixel == 'forward'

    key = jax.random.PRNGKey(0)
    k_rgb, k_we, k_cls, k_wd, k_wf = jax.random.split(key, 5)

    rgbs = jax.random.uniform(k_rgb, (B, C, H, W), dtype=jnp.float32)
    K44 = jnp.array(
        [[20.0, 0.0, W / 2.0, 0.0],
         [0.0, 20.0, H / 2.0, 0.0],
         [0.0, 0.0, 1.0, 0.0],
         [0.0, 0.0, 0.0, 1.0]],
        dtype=jnp.float32,
    )
    gt_K = jnp.broadcast_to(K44, (B, 4, 4))

    params = {
        # synthetic patch-embed "pixel_encoder" (Conv(3->enc, k=14, s=14) == matmul)
        "W_enc": 0.02 * jax.random.normal(k_we, (C * P2, ENC_DIM), jnp.float32),
        "b_enc": 0.01 * jnp.ones((1, ENC_DIM), jnp.float32),
        "cls_tok": 0.02 * jax.random.normal(k_cls, (B, 1, ENC_DIM), jnp.float32),
        # pts_head: Linear(enc_dim, 1 * 14**2)
        "W_depth": 0.02 * jax.random.normal(k_wd, (ENC_DIM, P2), jnp.float32),
        "b_depth": 0.05 * jnp.ones((1, P2), jnp.float32),
        # pts_feat_head: Linear(enc_dim, pts_feat_dim * 14**2)
        "W_feat": 0.02 * jax.random.normal(k_wf, (ENC_DIM, P2 * PTS_FEAT_DIM), jnp.float32),
        "b_feat": 0.02 * jnp.ones((1, P2 * PTS_FEAT_DIM), jnp.float32),
    }

    fwd = jax.jit(lambda r, k: rgb_unidepth_encoder_forward(
        r, k, params, patch_size=PATCH_SIZE, pts_feat_dim=PTS_FEAT_DIM,
        shift_rays_half_pixel=SHIFT))

    pts3d, pts_feat, pts_rgb, pts_depth = fwd(rgbs, gt_K)
    jax.block_until_ready((pts3d, pts_feat, pts_rgb, pts_depth))

    N = H * W
    assert pts3d.shape == (B, N, 3)
    assert pts_feat.shape == (B, HP * WP * P2, PTS_FEAT_DIM)
    assert pts_rgb.shape == (B, N, C)
    assert pts_depth.shape == (B, 1, H, W)

    # Validate against the pure-JAX f32 reference (kernel uses bf16 matmul inputs,
    # f32 accumulation -> loose-ish tolerances).
    r3d, rfeat, rrgb, rdepth = _reference_forward(
        rgbs, gt_K, params, patch_size=PATCH_SIZE, pts_feat_dim=PTS_FEAT_DIM,
        shift_rays_half_pixel=SHIFT)
    np.testing.assert_allclose(np.asarray(pts_depth), np.asarray(rdepth), rtol=2e-2, atol=3e-3)
    np.testing.assert_allclose(np.asarray(pts_feat), np.asarray(rfeat), rtol=2e-2, atol=3e-3)
    np.testing.assert_allclose(np.asarray(pts3d), np.asarray(r3d), rtol=2e-2, atol=3e-3)
    np.testing.assert_allclose(np.asarray(pts_rgb), np.asarray(rrgb), rtol=1e-6, atol=1e-6)
    assert bool(jnp.isfinite(pts3d).all())
    assert bool(jnp.isfinite(pts_feat).all())
    assert bool(jnp.isfinite(pts_depth).all())

    print("KERNEL_OK")
</pallas_src>

<mosaic_0001>
module attributes {stable_mosaic.version = 11 : i64} {
  func.func @_fused_encoder_kernel(%arg0: i32, %arg1: i32, %arg2: memref<2x9xf32, #tpu.memory_space<smem>>, %arg3: memref<1x6x640xbf16, #tpu.memory_space<vmem>>, %arg4: memref<640x1024xbf16, #tpu.memory_space<vmem>>, %arg5: memref<1x1x1024xf32, #tpu.memory_space<vmem>>, %arg6: memref<1x6x1024xf32, #tpu.memory_space<vmem>>, %arg7: memref<1x3x6x196xf32, #tpu.memory_space<vmem>>) attributes {dimension_semantics = [#tpu.dimension_semantics<parallel>, #tpu.dimension_semantics<parallel>], iteration_bounds = array<i64: 1, 2>, scalar_prefetch = 0 : i64, scratch_operands = 0 : i64, tpu.core_type = #tpu.core_type<tc>, window_params = [{transform_indices = @transform_0, window_bounds = array<i64: 2, 9>}, {transform_indices = @transform_1, window_bounds = array<i64: 1, 6, 640>}, {pipeline_mode = #tpu.pipeline_mode<synchronous>, transform_indices = @transform_2, window_bounds = array<i64: 640, 1024>}, {transform_indices = @transform_3, window_bounds = array<i64: 1, 1, 1024>}, {transform_indices = @transform_4, window_bounds = array<i64: 1, 6, 1024>}, {transform_indices = @transform_5, window_bounds = array<i64: 1, 3, 6, 196>}]} {
    %c0 = arith.constant 0 : index
    %c0_0 = arith.constant 0 : index
    %c0_1 = arith.constant 0 : index
    %0 = vector.load %arg3[%c0, %c0_0, %c0_1] : memref<1x6x640xbf16, #tpu.memory_space<vmem>>, vector<1x6x640xbf16>
    %1 = vector.shape_cast %0 : vector<1x6x640xbf16> to vector<6x640xbf16>
    %c0_2 = arith.constant 0 : index
    %c0_3 = arith.constant 0 : index
    %2 = vector.load %arg4[%c0_2, %c0_3] : memref<640x1024xbf16, #tpu.memory_space<vmem>>, vector<640x1024xbf16>
    %cst = arith.constant dense<0.000000e+00> : vector<6x1024xf32>
    %3 = tpu.matmul %1, %2, %cst {dimension_numbers = #tpu.dot_dimension_numbers<[1], [0], [0], [1], [0, 0, 1, 1], [], []>} : vector<6x640xbf16>, vector<640x1024xbf16>, vector<6x1024xf32> -> vector<6x1024xf32>
    %c0_4 = arith.constant 0 : index
    %c0_5 = arith.constant 0 : index
    %c0_6 = arith.constant 0 : index
    %4 = vector.load %arg5[%c0_4, %c0_5, %c0_6] : memref<1x1x1024xf32, #tpu.memory_space<vmem>>, vector<1x1x1024xf32>
    %5 = vector.shape_cast %4 : vector<1x1x1024xf32> to vector<1x1024xf32>
    %6 = vector.broadcast %5 : vector<1x1024xf32> to vector<6x1024xf32>
    %7 = arith.addf %3, %6 : vector<6x1024xf32>
    %c0_7 = arith.constant 0 : index
    %c0_8 = arith.constant 0 : index
    %c0_9 = arith.constant 0 : index
    %8 = vector.load %arg6[%c0_7, %c0_8, %c0_9] : memref<1x6x1024xf32, #tpu.memory_space<vmem>>, vector<1x6x1024xf32>
    %9 = vector.shape_cast %8 : vector<1x6x1024xf32> to vector<6x1024xf32>
    %10 = vector.shape_cast %7 : vector<6x1024xf32> to vector<1x6x1024xf32>
    tpu.vector_store %arg6[%c0_7, %c0_8, %c0_9], %10 {strides = array<i32>} : memref<1x6x1024xf32, #tpu.memory_space<vmem>>, vector<1x6x1024xf32>,
    %11 = vector.extract_strided_slice %7 {offsets = [0, 0], sizes = [6, 196], strides = [1, 1]} : vector<6x1024xf32> to vector<6x196xf32>
    %12 = tpu.iota {dimensions = array<i32: 0>} : vector<6x196xi32>
    %13 = tpu.iota {dimensions = array<i32: 1>} : vector<6x196xi32>
    %c6_i32 = arith.constant 6 : i32
    %14 = arith.muli %arg0, %c6_i32 : i32
    %15 = vector.broadcast %14 : i32 to vector<6x196xi32>
    %16 = arith.addi %15, %12 : vector<6x196xi32>
    %c196_i32 = arith.constant 196 : i32
    %17 = vector.broadcast %c196_i32 : i32 to vector<6x196xi32>
    %18 = arith.muli %16, %17 : vector<6x196xi32>
    %19 = arith.addi %18, %13 : vector<6x196xi32>
    %20 = arith.sitofp %19 : vector<6x196xi32> to vector<6x196xf32>
    %cst_10 = arith.constant 5.000000e-01 : f32
    %21 = vector.broadcast %cst_10 : f32 to vector<6x196xf32>
    %22 = arith.addf %20, %21 : vector<6x196xf32>
    %cst_11 = arith.constant 0.0238095243 : f32
    %23 = vector.broadcast %cst_11 : f32 to vector<6x196xf32>
    %24 = arith.mulf %22, %23 : vector<6x196xf32>
    %25 = math.floor %24 : vector<6x196xf32>
    %cst_12 = arith.constant 4.200000e+01 : f32
    %26 = vector.broadcast %cst_12 : f32 to vector<6x196xf32>
    %27 = arith.mulf %25, %26 : vector<6x196xf32>
    %28 = arith.subf %20, %27 : vector<6x196xf32>
    %cst_13 = arith.constant 5.000000e-01 : f32
    %29 = vector.broadcast %cst_13 : f32 to vector<6x196xf32>
    %30 = arith.addf %28, %29 : vector<6x196xf32>
    %cst_14 = arith.constant 5.000000e-01 : f32
    %31 = vector.broadcast %cst_14 : f32 to vector<6x196xf32>
    %32 = arith.addf %25, %31 : vector<6x196xf32>
    %33 = arith.index_cast %arg1 : i32 to index
    %c0_15 = arith.constant 0 : index
    %34 = memref.load %arg2[%33, %c0_15] : memref<2x9xf32, #tpu.memory_space<smem>>
    %35 = vector.broadcast %34 : f32 to vector<6x196xf32>
    %36 = arith.mulf %35, %30 : vector<6x196xf32>
    %37 = arith.index_cast %arg1 : i32 to index
    %c1 = arith.constant 1 : index
    %38 = memref.load %arg2[%37, %c1] : memref<2x9xf32, #tpu.memory_space<smem>>
    %39 = vector.broadcast %38 : f32 to vector<6x196xf32>
    %40 = arith.mulf %39, %32 : vector<6x196xf32>
    %41 = arith.addf %36, %40 : vector<6x196xf32>
    %42 = arith.index_cast %arg1 : i32 to index
    %c2 = arith.constant 2 : index
    %43 = memref.load %arg2[%42, %c2] : memref<2x9xf32, #tpu.memory_space<smem>>
    %44 = vector.broadcast %43 : f32 to vector<6x196xf32>
    %45 = arith.addf %41, %44 : vector<6x196xf32>
    %46 = arith.mulf %11, %45 : vector<6x196xf32>
    %c0_16 = arith.constant 0 : index
    %c0_17 = arith.constant 0 : index
    %c0_18 = arith.constant 0 : index
    %c0_19 = arith.constant 0 : index
    %47 = vector.load %arg7[%c0_16, %c0_17, %c0_18, %c0_19] : memref<1x3x6x196xf32, #tpu.memory_space<vmem>>, vector<1x1x6x196xf32>
    %48 = vector.shape_cast %47 : vector<1x1x6x196xf32> to vector<6x196xf32>
    %49 = vector.shape_cast %46 : vector<6x196xf32> to vector<1x1x6x196xf32>
    tpu.vector_store %arg7[%c0_16, %c0_17, %c0_18, %c0_19], %49 {strides = array<i32>} : memref<1x3x6x196xf32, #tpu.memory_space<vmem>>, vector<1x1x6x196xf32>,
    %50 = arith.index_cast %arg1 : i32 to index
    %c3 = arith.constant 3 : index
    %51 = memref.load %arg2[%50, %c3] : memref<2x9xf32, #tpu.memory_space<smem>>
    %52 = vector.broadcast %51 : f32 to vector<6x196xf32>
    %53 = arith.mulf %52, %30 : vector<6x196xf32>
    %54 = arith.index_cast %arg1 : i32 to index
    %c4 = arith.constant 4 : index
    %55 = memref.load %arg2[%54, %c4] : memref<2x9xf32, #tpu.memory_space<smem>>
    %56 = vector.broadcast %55 : f32 to vector<6x196xf32>
    %57 = arith.mulf %56, %32 : vector<6x196xf32>
    %58 = arith.addf %53, %57 : vector<6x196xf32>
    %59 = arith.index_cast %arg1 : i32 to index
    %c5 = arith.constant 5 : index
    %60 = memref.load %arg2[%59, %c5] : memref<2x9xf32, #tpu.memory_space<smem>>
    %61 = vector.broadcast %60 : f32 to vector<6x196xf32>
    %62 = arith.addf %58, %61 : vector<6x196xf32>
    %63 = arith.mulf %11, %62 : vector<6x196xf32>
    %c0_20 = arith.constant 0 : index
    %c1_21 = arith.constant 1 : index
    %c0_22 = arith.constant 0 : index
    %c0_23 = arith.constant 0 : index
    %64 = vector.load %arg7[%c0_20, %c1_21, %c0_22, %c0_23] : memref<1x3x6x196xf32, #tpu.memory_space<vmem>>, vector<1x1x6x196xf32>
    %65 = vector.shape_cast %64 : vector<1x1x6x196xf32> to vector<6x196xf32>
    %66 = vector.shape_cast %63 : vector<6x196xf32> to vector<1x1x6x196xf32>
    tpu.vector_store %arg7[%c0_20, %c1_21, %c0_22, %c0_23], %66 {strides = array<i32>} : memref<1x3x6x196xf32, #tpu.memory_space<vmem>>, vector<1x1x6x196xf32>,
    %67 = arith.index_cast %arg1 : i32 to index
    %c6 = arith.constant 6 : index
    %68 = memref.load %arg2[%67, %c6] : memref<2x9xf32, #tpu.memory_space<smem>>
    %69 = vector.broadcast %68 : f32 to vector<6x196xf32>
    %70 = arith.mulf %69, %30 : vector<6x196xf32>
    %71 = arith.index_cast %arg1 : i32 to index
    %c7 = arith.constant 7 : index
    %72 = memref.load %arg2[%71, %c7] : memref<2x9xf32, #tpu.memory_space<smem>>
    %73 = vector.broadcast %72 : f32 to vector<6x196xf32>
    %74 = arith.mulf %73, %32 : vector<6x196xf32>
    %75 = arith.addf %70, %74 : vector<6x196xf32>
    %76 = arith.index_cast %arg1 : i32 to index
    %c8 = arith.constant 8 : index
    %77 = memref.load %arg2[%76, %c8] : memref<2x9xf32, #tpu.memory_space<smem>>
    %78 = vector.broadcast %77 : f32 to vector<6x196xf32>
    %79 = arith.addf %75, %78 : vector<6x196xf32>
    %80 = arith.mulf %11, %79 : vector<6x196xf32>
    %c0_24 = arith.constant 0 : index
    %c2_25 = arith.constant 2 : index
    %c0_26 = arith.constant 0 : index
    %c0_27 = arith.constant 0 : index
    %81 = vector.load %arg7[%c0_24, %c2_25, %c0_26, %c0_27] : memref<1x3x6x196xf32, #tpu.memory_space<vmem>>, vector<1x1x6x196xf32>
    %82 = vector.shape_cast %81 : vector<1x1x6x196xf32> to vector<6x196xf32>
    %83 = vector.shape_cast %80 : vector<6x196xf32> to vector<1x1x6x196xf32>
    tpu.vector_store %arg7[%c0_24, %c2_25, %c0_26, %c0_27], %83 {strides = array<i32>} : memref<1x3x6x196xf32, #tpu.memory_space<vmem>>, vector<1x1x6x196xf32>,
    return
  }
  func.func @transform_0(%arg0: i32, %arg1: i32) -> (i32, i32) {
    %c0_i32 = arith.constant 0 : i32
    %c0_i32_0 = arith.constant 0 : i32
    %c0_i32_1 = arith.constant 0 : i32
    return %c0_i32, %c0_i32_0 : i32, i32
  }
  func.func @transform_1(%arg0: i32, %arg1: i32) -> (i32, i32, i32) {
    %c0_i32 = arith.constant 0 : i32
    %c0_i32_0 = arith.constant 0 : i32
    return %arg1, %arg0, %c0_i32 : i32, i32, i32
  }
  func.func @transform_2(%arg0: i32, %arg1: i32) -> (i32, i32) {
    %c0_i32 = arith.constant 0 : i32
    %c0_i32_0 = arith.constant 0 : i32
    %c0_i32_1 = arith.constant 0 : i32
    return %c0_i32, %c0_i32_0 : i32, i32
  }
  func.func @transform_3(%arg0: i32, %arg1: i32) -> (i32, i32, i32) {
    %c0_i32 = arith.constant 0 : i32
    %c0_i32_0 = arith.constant 0 : i32
    %c0_i32_1 = arith.constant 0 : i32
    return %arg1, %c0_i32, %c0_i32_0 : i32, i32, i32
  }
  func.func @transform_4(%arg0: i32, %arg1: i32) -> (i32, i32, i32) {
    %c0_i32 = arith.constant 0 : i32
    %c0_i32_0 = arith.constant 0 : i32
    return %arg1, %arg0, %c0_i32 : i32, i32, i32
  }
  func.func @transform_5(%arg0: i32, %arg1: i32) -> (i32, i32, i32, i32) {
    %c0_i32 = arith.constant 0 : i32
    %c0_i32_0 = arith.constant 0 : i32
    %c0_i32_1 = arith.constant 0 : i32
    return %arg1, %c0_i32, %arg0, %c0_i32_0 : i32, i32, i32, i32
  }
}

</mosaic_0001>

<llo_original>
// kernel: custom-call.11
$region0: #{custom-call.11}
  %s0 = inlined_call_operand.hbm [shape: f32[2,4,4], index: 0, kind: input, shape index: {}]
  %s1 = inlined_call_operand.vmem [shape: f32[2,4,4], index: 1, kind: output, shape index: {0}]
  %s2 = inlined_call_operand.hbm [shape: s32[2,4], index: 2, kind: output, shape index: {1}]
  %s3 = inlined_call_operand.vmem [shape: s32[2,4], index: 3, kind: output, shape index: {2}]
  %4 = xla_tuple %s1, %s2, %s3
  $region1: #{custom-call.11} parent=0
    #allocation0 [shape = 'u8[4096]{0}', space=vmem, size = 0x1000, scoped, tag = 'operand span for operand 0']
    #allocation1 [shape = 'u8[4096]{0}', space=vmem, size = 0x1000, scoped, tag = 'packed  for operand 0']
    #allocation2 [shape = 's32[2]{0}', space=sflag, size = 0x8, scoped, tag = 'scoped memory for custom-call.11']
    #allocation3 [shape = 's32[2]{0}', space=sflag, size = 0x8, scoped, tag = 'scoped memory for custom-call.11']
    #allocation4 [shape = 'u8[4096]{0}', space=vmem, size = 0x1000, scoped, tag = 'operand span for operand 1']
    #allocation5 [shape = 'u8[4096]{0}', space=vmem, size = 0x1000, scoped, tag = 'packed  for operand 1']
    #allocation6 [shape = 'u8[4096]{0}', space=vmem, size = 0x1000, scoped, tag = 'operand span for operand 2']
    #allocation7 [shape = 'u8[2048]{0}', space=vmem, size = 0x800, scoped, tag = 'packed  for operand 2']
    #allocation8 [shape = 'u8[4096]{0}', space=vmem, size = 0x1000, scoped, tag = 'operand span for operand 3']
    #allocation9 [shape = 'u8[2048]{0}', space=vmem, size = 0x800, scoped, tag = 'packed  for operand 3']
    %5 = vsyncpa [#allocation2], 0
    %s6 = scalar_lea.sflag [#allocation2], 1
    %7 = vsyncpa %s6, 0
    %8 = vsyncpa [#allocation3], 0
    %s9 = scalar_lea.sflag [#allocation3], 1
    %10 = vsyncpa %s9, 0
    loop: start=0, step=1, limit=4
    $region2: #{custom-call.11} parent=1 // loop_pre_header
      _
    $region3: #{custom-call.11} parent=1 // loop_header
      %s12 = sphi 0, %s16
      %p13 = scmp.ge.s32.totalorder %s12, 4
      %s24 = sphi 0, %s26
      %s27 = sphi 0, %s24
      %s28 = sphi 0, %s27
      %s44 = sphi 0, %s28
      %s52 = sphi 0, %s54
      %s55 = sphi 0, %s52
      %s56 = sphi 0, %s55
      %s72 = sphi 0, %s56
    $region4: #{custom-call.11} parent=1 // loop_header_branch
      %15 = sbr.rel (%p13) target = $region8
    $region5: #{custom-call.11} parent=1 // loop_body
      %s17 = ssub.s32 %s12, 1
      %s18 = ssub.s32 %s12, 2
      %s19 = sadd.s32 %s12, 1
      %s20 = sshrl.u32 %s12, 3
      %s21 = sshrl.u32 %s19, 3
      %s22 = ssub.s32 %s20, %s21
      %p23 = scmp.eq.s32.totalorder %s22, 0
      %s25 = sadd.s32 %s24, 1
      %s26 = scalar_select %p23, %s24, %s25
      %p29 = pneg %p23
      %p30 = scmp.eq.s32.totalorder %s12, 1
      %p31 = por %p29, %p30
      %p32 = scmp.ne.s32.totalorder %s24, %s27
      %p33 = scmp.eq.s32.totalorder %s12, 0
      %p34 = por %p32, %p33
      %p35 = scmp.ne.s32.totalorder %s24, %s27
      %p36 = scmp.eq.s32.totalorder %s17, 1
      %p37 = por %p35, %p36
      %p38 = scmp.ne.s32.totalorder %s27, %s28
      %p39 = scmp.eq.s32.totalorder %s17, 0
      %p40 = por %p38, %p39
      %p41 = scmp.ne.s32.totalorder %s27, %s28
      %p42 = scmp.eq.s32.totalorder %s18, 1
      %p43 = por %p41, %p42
      %p45 = scmp.ne.s32.totalorder %s28, %s44
      %p46 = scmp.eq.s32.totalorder %s18, 0
      %p47 = por %p45, %p46
      %s48 = sshrl.u32 %s12, 3
      %s49 = sshrl.u32 %s19, 3
      %s50 = ssub.s32 %s48, %s49
      %p51 = scmp.eq.s32.totalorder %s50, 0
      %s53 = sadd.s32 %s52, 1
      %s54 = scalar_select %p51, %s52, %s53
      %p57 = pneg %p51
      %p58 = scmp.eq.s32.totalorder %s12, 1
      %p59 = por %p57, %p58
      %p60 = scmp.ne.s32.totalorder %s52, %s55
      %p61 = scmp.eq.s32.totalorder %s12, 0
      %p62 = por %p60, %p61
      %p63 = scmp.ne.s32.totalorder %s52, %s55
      %p64 = scmp.eq.s32.totalorder %s17, 1
      %p65 = por %p63, %p64
      %p66 = scmp.ne.s32.totalorder %s55, %s56
      %p67 = scmp.eq.s32.totalorder %s17, 0
      %p68 = por %p66, %p67
      %p69 = scmp.ne.s32.totalorder %s55, %s56
      %p70 = scmp.eq.s32.totalorder %s18, 1
      %p71 = por %p69, %p70
      %p73 = scmp.ne.s32.totalorder %s56, %s72
      %p74 = scmp.eq.s32.totalorder %s18, 0
      %p75 = por %p73, %p74
      %p76 = scmp.le.s32.totalorder 1, %s12
      %p77 = scmp.lt.s32.totalorder %s12, 3
      %p78 = pnand %p76, %p77
      %p79 = pneg %p78
      // Predicated region
      $region9: #{custom-call.11} parent=5 // pred_check
        _
      $region10: #{custom-call.11} parent=5 // pred_check_branch
        %81 = sbr.rel (%p78) target = $region12
      $region11: #{custom-call.11} parent=5 // pred_region
        %s82 = ssub.s32 %s12, 1
      $region12: #{custom-call.11} parent=5 // pred_fallthru
        _
      %p83 = scmp.lt.s32.totalorder %s12, 2
      // Predicated region
      $region13: #{custom-call.11} parent=5 // pred_check
        %p84 = pneg %p83
      $region14: #{custom-call.11} parent=5 // pred_check_branch
        %86 = sbr.rel (%p84) target = $region16
      $region15: #{custom-call.11} parent=5 // pred_region
        %s87 = sand.u32 %s12, 1
        %s88 = scalar_lea.sflag [#allocation2], %s87
        %s89 = sand.u32 %s12, 1
        %s90 = smul.addr %s89, 4
        %s91 = scalar_lea.vmem [#allocation1], %s90
        %s93 = ssub.s32 64, 64
        %94 = vsyncadd %s88, %s93
        %s95 = smul.addr %s12, 64
        %s96 = scalar_lea.hbm %s0, %s95
        %s98 = sshll.u32 %s91, 4
        %s99 = int_to_ptr.vmem [resolvable:$true] %s98
        %101 = dma.hbm_to_vmem [thread:$0]  %s96, 64, %s99, %s88
      $region16: #{custom-call.11} parent=5 // pred_fallthru
        _
      %p102 = scmp.le.s32.totalorder 1, %s12
      %p103 = scmp.lt.s32.totalorder %s12, 3
      %p104 = pnand %p102, %p103
      %p105 = pneg %p104
      // Predicated region
      $region17: #{custom-call.11} parent=5 // pred_check
        _
      $region18: #{custom-call.11} parent=5 // pred_check_branch
        %107 = sbr.rel (%p104) target = $region20
      $region19: #{custom-call.11} parent=5 // pred_region
        #allocation10 [shape = 's32[4,128]{1,0}', space=vmem, size = 0x1000, scoped, tag = 'scratch for permutations']
        %s108 = ssub.s32 %s12, 1
        %s109 = sand.u32 %s17, 1
        %s110 = scalar_lea.sflag [#allocation2], %s109
        %s111 = sand.u32 %s17, 1
        %s112 = smul.addr %s111, 4
        %s113 = scalar_lea.vmem [#allocation1], %s112
        %114 = dma.done %s110, 64
        %s115 = sand.u32 %s17, 1
        %s116 = scalar_lea.sflag [#allocation2], %s115
        %s117 = sand.u32 %s17, 1
        %s118 = smul.addr %s117, 4
        %s119 = scalar_lea.vmem [#allocation1], %s118
        %s120 = sand.u32 %s17, 1
        %s121 = sand.u32 %s17, 1
        %s122 = smul.addr %s121, 4
        %s123 = scalar_lea.vmem [#allocation5], %s122
        %p124 = pneg %p40
        %p125 = pneg %p37
        %s126 = sand.u32 %s27, 1
        %s127 = scalar_lea.sflag [#allocation3], %s126
        %s128 = sand.u32 %s27, 1
        %s129 = smul.addr %s128, 2
        %s130 = scalar_lea.vmem [#allocation7], %s129
        %p131 = pneg %p68
        %p132 = pneg %p65
        %s133 = sand.u32 %s55, 1
        %s134 = sand.u32 %s55, 1
        %s135 = smul.addr %s134, 2
        %s136 = scalar_lea.vmem [#allocation9], %s135
        %s138 = sshllo.u32 0, 4
        %v139 = vld [vmem:[%s119] sm:%s138]
        %140 = vst [vmem:[#allocation0] sm:%s138] %v139
        %s141 = sshrl.u32 %s17, 3
        %s142 = sshrl.u32 %s17, 3
        %v143 = vld [vmem:[#allocation0] sm:$0xff]
        %144 = vst [vmem:[#allocation4] sm:$0xff] %v143
        %s145 = sand.u32 %s17, 7
        %s146 = scalar_lea.vmem [#allocation6], %s145
        %s147 = sand.u32 %s17, 7
        %s148 = scalar_lea.vmem [#allocation8], %s147
        %149 = vst [vmem:[%s146] sm:$0x1] 0
        %v150 = vlaneseq
        %v151 = vshrl.u32 %v150, 7
        %v152 = vmov %v151
        %154 = vst [vmem:[#allocation10] sm:$0xff] %v152
        loop: start=0, step=1, limit=4
        $region22: #{custom-call.11} parent=19 // loop_pre_header
          _
        $region23: #{custom-call.11} parent=19 // loop_header
          %s156 = sphi 0, %s160
          %p157 = scmp.ge.s32.totalorder %s156, 4
        $region24: #{custom-call.11} parent=19 // loop_header_branch
          %159 = sbr.rel (%p157) target = $region28
        $region25: #{custom-call.11} parent=19 // loop_body
          %v161 = vstv %s156
          %v162 = vlaneseq
          %v163 = vshrl.u32 %v162, 7
          %v164 = vmov %v163
          %v165 = vld [vmem:[#allocation4] sm:$0xff]
          %v166 = vand.u32 2147483647, %v165
          %v168 = vstv %s156
          %vm169 = vcmp.ge.s32.totalorder %v164, %v168
          %vm170 = vcmp.lt.s32.totalorder %v164, 4
          %vm171 = vmand %vm169, %vm170
          %vm172 = vcmp.lt.f32.partialorder -inf, %v166
          %vm173 = vmand %vm171, %vm172
          %v174 = vsel %vm173, %v164, %v161
          %v175 = vsel %vm173, %v166, -inf
          %v176 = vrot.slane %v175, 1
          %v177 = vrot.slane %v174, 1
          %vm178 = vcmp.ge.f32.partialorder %v176, %v175
          %v179 = vsel %vm178, %v176, %v175
          %v180 = vsel %vm178, %v177, %v174
          %v181 = vrot.slane %v176, 1
          %v182 = vrot.slane %v177, 1
          %vm183 = vcmp.ge.f32.partialorder %v181, %v179
          %v184 = vsel %vm183, %v181, %v179
          %v185 = vsel %vm183, %v182, %v180
          %v186 = vrot.slane %v181, 1
          %v187 = vrot.slane %v182, 1
          %vm188 = vcmp.ge.f32.partialorder %v186, %v184
          %v189 = vsel %vm188, %v186, %v184
          %v190 = vsel %vm188, %v187, %v185
          %v191 = vrot.slane %v186, 1
          %v192 = vrot.slane %v187, 1
          %vm193 = vcmp.ge.f32.partialorder %v191, %v189
          %v194 = vsel %vm193, %v191, %v189
          %v195 = vsel %vm193, %v192, %v190
          %v196 = vrot.slane %v191, 1
          %v197 = vrot.slane %v192, 1
          %vm198 = vcmp.ge.f32.partialorder %v196, %v194
          %v199 = vsel %vm198, %v196, %v194
          %v200 = vsel %vm198, %v197, %v195
          %v201 = vrot.slane %v196, 1
          %v202 = vrot.slane %v197, 1
          %vm203 = vcmp.ge.f32.partialorder %v201, %v199
          %v204 = vsel %vm203, %v201, %v199
          %v205 = vsel %vm203, %v202, %v200
          %v206 = vrot.slane %v201, 1
          %v207 = vrot.slane %v202, 1
          %vm208 = vcmp.ge.f32.partialorder %v206, %v204
          %v209 = vsel %vm208, %v206, %v204
          %v210 = vsel %vm208, %v207, %v205
          %s211 = ssub.s32 128, %s156
          %212 = vrot.lane.b32.xlu0 %v210, %s211
          %v213 = vpop.permute.xlu0 %212
          %s214 = vtos %v213
          %v215 = vstv %s156
          %v216 = vlaneseq
          %v217 = vand.u32 %v216, 127
          %vm218 = vcmp.eq.s32.totalorder %v217, %v215
          %v219 = vstv %s214
          %v220 = vld [vmem:[%s146] ss:$0 sm:$0xff]
          %v221 = vsel %vm218, %v219, %v220
          %222 = vst [vmem:[%s146] sm:$0x1] %v221
          %s223 = scalar_lea.vmem [#allocation4], %s156
          %s224 = scalar_lea.vmem [#allocation4], %s214
          %v225 = vld [vmem:[%s223] ss:$0 sm:$0xff]
          %v226 = vld [vmem:[%s224] ss:$0 sm:$0xff]
          %227 = vst [vmem:[%s224] sm:$0x1] %v225
          %228 = vst [vmem:[%s223] sm:$0x1] %v226
          %s229 = scalar_lea.vmem [#allocation10], %s156
          %s230 = scalar_lea.vmem [#allocation10], %s214
          %v231 = vld [vmem:[%s229] ss:$0 sm:$0xff]
          %v232 = vld [vmem:[%s230] ss:$0 sm:$0xff]
          %233 = vst [vmem:[%s230] sm:$0x1] %v231
          %234 = vst [vmem:[%s229] sm:$0x1] %v232
          %vm235 = vcmp.ne.f32.partialorder %v226, 0.0
          %vm236 = vmand %vm218, %vm235
          %v237 = vsel %vm236, %v226, 1.0
          %v238 = vlaneseq
          %v239 = vand.u32 %v238, 127
          %v240 = vstv %s156
          %vm241 = vcmp.gt.s32.totalorder %v239, %v240
          %v242 = vsel %vm241, %v226, 0.0
          %v243 = vlaneseq
          %v244 = vshrl.u32 %v243, 7
          %v245 = vmov %v244
          %v246 = vld [vmem:[#allocation4] sm:$0xff]
          %v248 = vstv %s156
          %vm249 = vcmp.gt.s32.totalorder %v245, %v248
          %v250 = vsel %vm249, %v237, 1.0
          %v251 = vrcp.pop %v250
          %v252 = vmul.f32 %v246, %v251
          %vm253 = vmand %vm249, %vm218
          %v254 = vsel %vm253, %v252, 0.0
          %255 = vadd.xlane.f32.xlu0 %v254
          %v256 = vpop.xlane.xlu0 %255
          %v257 = vmul.f32 %v256, %v242
          %v258 = vsub.f32 %v252, %v257
          %259 = vst [vmem:[#allocation4] sm:$0xff] %v258
        $region26: #{custom-call.11} parent=19 // loop_footer
          %s160 = sadd.s32 1, %s156
        $region27: #{custom-call.11} parent=19 // loop_footer_branch
          %155 = sbr.rel target = $region23
        $region28: #{custom-call.11} parent=19 // loop_exit
          _
        %v260 = vld [vmem:[#allocation10] sm:$0xff]
        %s261 = scalar_lea.vmem [#allocation10], 8
        %s262 = scalar_lea.vmem [#allocation10], 16
        %s263 = scalar_lea.vmem [#allocation10], 24
        %s264 = scalar_lea.vmem [#allocation10], 32
        %s265 = scalar_lea.vmem [#allocation10], 40
        %s266 = scalar_lea.vmem [#allocation10], 48
        %s267 = scalar_lea.vmem [#allocation10], 56
        %s268 = scalar_lea.vmem [#allocation10], 64
        %s269 = scalar_lea.vmem [#allocation10], 72
        %s270 = scalar_lea.vmem [#allocation10], 80
        %s271 = scalar_lea.vmem [#allocation10], 88
        %s272 = scalar_lea.vmem [#allocation10], 96
        %s273 = scalar_lea.vmem [#allocation10], 104
        %s274 = scalar_lea.vmem [#allocation10], 112
        %s275 = scalar_lea.vmem [#allocation10], 120
        %276 = vxpose.xlu0.b32.start [1/16] %v260, 128
        %277 = vxpose.xlu0.b32.cont [2/16] 0, 128
        %278 = vxpose.xlu0.b32.cont [3/16] 0, 128
        %279 = vxpose.xlu0.b32.cont [4/16] 0, 128
        %280 = vxpose.xlu0.b32.cont [5/16] 0, 128
        %281 = vxpose.xlu0.b32.cont [6/16] 0, 128
        %282 = vxpose.xlu0.b32.cont [7/16] 0, 128
        %283 = vxpose.xlu0.b32.cont [8/16] 0, 128
        %284 = vxpose.xlu0.b32.cont [9/16] 0, 128
        %285 = vxpose.xlu0.b32.cont [10/16] 0, 128
        %286 = vxpose.xlu0.b32.cont [11/16] 0, 128
        %287 = vxpose.xlu0.b32.cont [12/16] 0, 128
        %288 = vxpose.xlu0.b32.cont [13/16] 0, 128
        %289 = vxpose.xlu0.b32.cont [14/16] 0, 128
        %290 = vxpose.xlu0.b32.cont [15/16] 0, 128
        %291 = vxpose.xlu0.b32.end [16/16] 0, 128
        %v292 = vpop.trf.xlu0
        %v293 = vpop.trf.xlu0
        %v294 = vpop.trf.xlu0
        %v295 = vpop.trf.xlu0
        %v296 = vpop.trf.xlu0
        %v297 = vpop.trf.xlu0
        %v298 = vpop.trf.xlu0
        %v299 = vpop.trf.xlu0
        %v300 = vpop.trf.xlu0
        %v301 = vpop.trf.xlu0
        %v302 = vpop.trf.xlu0
        %v303 = vpop.trf.xlu0
        %v304 = vpop.trf.xlu0
        %v305 = vpop.trf.xlu0
        %v306 = vpop.trf.xlu0
        %v307 = vpop.trf.xlu0
        %308 = vst [vmem:[%s148] sm:$0x1] %v292
        %s310 = sshllo.u32 0, 4
        %v312 = vld [vmem:[#allocation4] sm:%s310]
        %s313 = sshllo.u32 0, 4
        %314 = vst [vmem:[%s123] sm:%s313] %v312
        %s316 = sshllo.u32 0, 2
        %v318 = vld [vmem:[#allocation6] sm:%s316]
        %s319 = sshllo.u32 0, 2
        %320 = vst [vmem:[%s130] sm:%s319] %v318
        %s322 = sshllo.u32 0, 2
        %v324 = vld [vmem:[#allocation8] sm:%s322]
        %s325 = sshllo.u32 0, 2
        %326 = vst [vmem:[%s136] sm:%s325] %v324
        %s327 = sand.u32 %s17, 1
        %s328 = sand.u32 %s17, 1
        %s329 = smul.addr %s328, 4
        %s330 = scalar_lea.vmem [#allocation5], %s329
        %s331 = sand.u32 %s27, 1
        %s332 = scalar_lea.sflag [#allocation3], %s331
        %s333 = sand.u32 %s27, 1
        %s334 = smul.addr %s333, 2
        %s335 = scalar_lea.vmem [#allocation7], %s334
        %s336 = sand.u32 %s55, 1
        %s337 = sand.u32 %s55, 1
        %s338 = smul.addr %s337, 2
        %s339 = scalar_lea.vmem [#allocation9], %s338
        %s340 = smul.addr %s17, 4
        %s341 = scalar_lea.vmem %s1, %s340
        // Predicated region
        $region29: #{custom-call.11} parent=19 // pred_check
          _
        $region30: #{custom-call.11} parent=19 // pred_check_branch
          %343 = sbr.rel (0) target = $region32
        $region31: #{custom-call.11} parent=19 // pred_region
          // Predicated region
          $region33: #{custom-call.11} parent=31 // pred_check
            _
          $region34: #{custom-call.11} parent=31 // pred_check_branch
            %345 = sbr.rel target = $region36
          $region35: #{custom-call.11} parent=31 // pred_region
            // Predicated region
            $region48: #{custom-call.11} parent=35 // pred_check
              _
            $region49: #{custom-call.11} parent=35 // pred_check_branch
              %360 = sbr.rel (0) target = $region51
            $region50: #{custom-call.11} parent=35 // pred_region
              loop: start=0, step=1, limit=1
              $region52: #{custom-call.11} parent=50 // loop_pre_header
                _
              $region53: #{custom-call.11} parent=50 // loop_header
                %s363 = sphi 0, %s367
                %p364 = scmp.ge.s32.totalorder %s363, 1
                %s368 = sphi %s330, %s330
                %s369 = sphi %s341, %s341
              $region54: #{custom-call.11} parent=50 // loop_header_branch
                %366 = sbr.rel (%p364) target = $region58
              $region55: #{custom-call.11} parent=50 // loop_body
                %v370 = vld [vmem:[%s368] sm:$0xf]
                %371 = vst [vmem:[%s369] sm:$0xf] %v370
              $region56: #{custom-call.11} parent=50 // loop_footer
                %s367 = sadd.s32 1, %s363
              $region57: #{custom-call.11} parent=50 // loop_footer_branch
                %362 = sbr.rel target = $region53
              $region58: #{custom-call.11} parent=50 // loop_exit
                _
            $region51: #{custom-call.11} parent=35 // pred_fallthru
              _
          $region36: #{custom-call.11} parent=31 // pred_fallthru
            _
          // Predicated region
          $region37: #{custom-call.11} parent=31 // pred_check
            _
          $region38: #{custom-call.11} parent=31 // pred_check_branch
            %347 = sbr.rel (0) target = $region40
          $region39: #{custom-call.11} parent=31 // pred_region
            loop: start=0, step=1, limit=1
            $region41: #{custom-call.11} parent=39 // loop_pre_header
              _
            $region42: #{custom-call.11} parent=39 // loop_header
              %s350 = sphi 0, %s354
              %p351 = scmp.ge.s32.totalorder %s350, 1
              %s355 = sphi %s330, %s330
              %s356 = sphi %s341, %s341
            $region43: #{custom-call.11} parent=39 // loop_header_branch
              %353 = sbr.rel (%p351) target = $region47
            $region44: #{custom-call.11} parent=39 // loop_body
              %v357 = vld [vmem:[%s355] sm:$0xf]
              %358 = vst [vmem:[%s356] sm:$0xf] %v357
            $region45: #{custom-call.11} parent=39 // loop_footer
              %s354 = sadd.s32 1, %s350
            $region46: #{custom-call.11} parent=39 // loop_footer_branch
              %349 = sbr.rel target = $region42
            $region47: #{custom-call.11} parent=39 // loop_exit
              _
          $region40: #{custom-call.11} parent=31 // pred_fallthru
            _
        $region32: #{custom-call.11} parent=19 // pred_fallthru
          _
        %372 = vnop
        // Predicated region
        $region59: #{custom-call.11} parent=19 // pred_check
          %p373 = pneg %p37
        $region60: #{custom-call.11} parent=19 // pred_check_branch
          %375 = sbr.rel (%p373) target = $region62
        $region61: #{custom-call.11} parent=19 // pred_region
          %s376 = sshrl.u32 %s17, 3
          %s378 = ssub.s32 32, 32
          %379 = vsyncadd %s332, %s378
          %s380 = smul.addr %s376, 32
          %s381 = scalar_lea.hbm %s2, %s380
          %s383 = sshll.u32 %s335, 4
          %s384 = int_to_ptr.vmem [resolvable:$true] %s383
          %386 = dma.vmem_to_hbm [thread:$0]  %s384, 32, %s381, %s332
        $region62: #{custom-call.11} parent=19 // pred_fallthru
          _
        // Predicated region
        $region63: #{custom-call.11} parent=19 // pred_check
          %p387 = pneg %p65
        $region64: #{custom-call.11} parent=19 // pred_check_branch
          %389 = sbr.rel (%p387) target = $region66
        $region65: #{custom-call.11} parent=19 // pred_region
          %s390 = sshrl.u32 %s17, 3
          %s391 = smul.addr %s390, 2
          %s392 = scalar_lea.vmem %s3, %s391
          // Predicated region
          $region67: #{custom-call.11} parent=65 // pred_check
            _
          $region68: #{custom-call.11} parent=65 // pred_check_branch
            %394 = sbr.rel (0) target = $region70
          $region69: #{custom-call.11} parent=65 // pred_region
            // Predicated region
            $region71: #{custom-call.11} parent=69 // pred_check
              _
            $region72: #{custom-call.11} parent=69 // pred_check_branch
              %396 = sbr.rel target = $region74
            $region73: #{custom-call.11} parent=69 // pred_region
              // Predicated region
              $region86: #{custom-call.11} parent=73 // pred_check
                _
              $region87: #{custom-call.11} parent=73 // pred_check_branch
                %411 = sbr.rel (0) target = $region89
              $region88: #{custom-call.11} parent=73 // pred_region
                loop: start=0, step=1, limit=1
                $region90: #{custom-call.11} parent=88 // loop_pre_header
                  _
                $region91: #{custom-call.11} parent=88 // loop_header
                  %s414 = sphi 0, %s418
                  %p415 = scmp.ge.s32.totalorder %s414, 1
                  %s419 = sphi %s339, %s339
                  %s420 = sphi %s392, %s392
                $region92: #{custom-call.11} parent=88 // loop_header_branch
                  %417 = sbr.rel (%p415) target = $region96
                $region93: #{custom-call.11} parent=88 // loop_body
                  %v421 = vld [vmem:[%s419] sm:$0x3]
                  %422 = vst [vmem:[%s420] sm:$0x3] %v421
                $region94: #{custom-call.11} parent=88 // loop_footer
                  %s418 = sadd.s32 1, %s414
                $region95: #{custom-call.11} parent=88 // loop_footer_branch
                  %413 = sbr.rel target = $region91
                $region96: #{custom-call.11} parent=88 // loop_exit
                  _
              $region89: #{custom-call.11} parent=73 // pred_fallthru
                _
            $region74: #{custom-call.11} parent=69 // pred_fallthru
              _
            // Predicated region
            $region75: #{custom-call.11} parent=69 // pred_check
              _
            $region76: #{custom-call.11} parent=69 // pred_check_branch
              %398 = sbr.rel (0) target = $region78
            $region77: #{custom-call.11} parent=69 // pred_region
              loop: start=0, step=1, limit=1
              $region79: #{custom-call.11} parent=77 // loop_pre_header
                _
              $region80: #{custom-call.11} parent=77 // loop_header
                %s401 = sphi 0, %s405
                %p402 = scmp.ge.s32.totalorder %s401, 1
                %s406 = sphi %s339, %s339
                %s407 = sphi %s392, %s392
              $region81: #{custom-call.11} parent=77 // loop_header_branch
                %404 = sbr.rel (%p402) target = $region85
              $region82: #{custom-call.11} parent=77 // loop_body
                %v408 = vld [vmem:[%s406] sm:$0x3]
                %409 = vst [vmem:[%s407] sm:$0x3] %v408
              $region83: #{custom-call.11} parent=77 // loop_footer
                %s405 = sadd.s32 1, %s401
              $region84: #{custom-call.11} parent=77 // loop_footer_branch
                %400 = sbr.rel target = $region80
              $region85: #{custom-call.11} parent=77 // loop_exit
                _
            $region78: #{custom-call.11} parent=69 // pred_fallthru
              _
          $region70: #{custom-call.11} parent=65 // pred_fallthru
            _
          %423 = vnop
        $region66: #{custom-call.11} parent=19 // pred_fallthru
          _
      $region20: #{custom-call.11} parent=5 // pred_fallthru
        _
      %p424 = scmp.le.s32.totalorder 2, %s12
      // Predicated region
      $region97: #{custom-call.11} parent=5 // pred_check
        %p425 = pneg %p424
      $region98: #{custom-call.11} parent=5 // pred_check_branch
        %427 = sbr.rel (%p425) target = $region100
      $region99: #{custom-call.11} parent=5 // pred_region
        %s428 = ssub.s32 %s12, 2
        %s429 = sand.u32 %s18, 1
        %s430 = sand.u32 %s18, 1
        %s431 = smul.addr %s430, 4
        %s432 = scalar_lea.vmem [#allocation5], %s431
        // Predicated region
        $region101: #{custom-call.11} parent=99 // pred_check
          %p433 = pneg %p43
        $region102: #{custom-call.11} parent=99 // pred_check_branch
          %435 = sbr.rel (%p433) target = $region104
        $region103: #{custom-call.11} parent=99 // pred_region
          %s436 = sand.u32 %s28, 1
          %s437 = scalar_lea.sflag [#allocation3], %s436
          %s438 = sand.u32 %s28, 1
          %s439 = smul.addr %s438, 2
          %s440 = scalar_lea.vmem [#allocation7], %s439
          %441 = dma.done %s437, 32
        $region104: #{custom-call.11} parent=99 // pred_fallthru
          _
        // Predicated region
        $region105: #{custom-call.11} parent=99 // pred_check
          %p442 = pneg %p71
        $region106: #{custom-call.11} parent=99 // pred_check_branch
          %444 = sbr.rel (%p442) target = $region108
        $region107: #{custom-call.11} parent=99 // pred_region
          %s445 = sand.u32 %s56, 1
          %s446 = sand.u32 %s56, 1
          %s447 = smul.addr %s446, 2
          %s448 = scalar_lea.vmem [#allocation9], %s447
        $region108: #{custom-call.11} parent=99 // pred_fallthru
          _
      $region100: #{custom-call.11} parent=5 // pred_fallthru
        _
    $region6: #{custom-call.11} parent=1 // loop_footer
      %s16 = sadd.s32 1, %s12
    $region7: #{custom-call.11} parent=1 // loop_footer_branch
      %11 = sbr.rel target = $region3
    $region8: #{custom-call.11} parent=1 // loop_exit
      _
    %449 = vsyncpa [#allocation2], 1
    %s450 = scalar_lea.sflag [#allocation2], 1
    %451 = vsyncpa %s450, 1
    %452 = vsyncpa [#allocation3], 1
    %s453 = scalar_lea.sflag [#allocation3], 1
    %454 = vsyncpa %s453, 1

// kernel: custom-call.13
$region0: #{custom-call.13}
  %s0 = inlined_call_operand.vmem [shape: f32[2,1,4,4], index: 0, kind: input, shape index: {}]
  %s1 = inlined_call_operand.vmem [shape: f32[2,1,4,4], index: 1, kind: output, shape index: {}]
  $region1: #{custom-call.13} parent=0
    #allocation0 [shape = 'u8[4096]{0}', space=vmem, size = 0x1000, scoped, tag = 'operand span for operand 0']
    #allocation1 [shape = 'u8[4096]{0}', space=vmem, size = 0x1000, scoped, tag = 'packed  for operand 0']
    #allocation2 [shape = 'u8[4096]{0}', space=vmem, size = 0x1000, scoped, tag = 'operand span for operand 1']
    #allocation3 [shape = 'u8[4096]{0}', space=vmem, size = 0x1000, scoped, tag = 'packed  for operand 1']
    loop: start=0, step=1, limit=4
    $region2: #{custom-call.13} parent=1 // loop_pre_header
      _
    $region3: #{custom-call.13} parent=1 // loop_header
      %s3 = sphi 0, %s7
      %p4 = scmp.ge.s32.totalorder %s3, 4
      %s10 = sphi 0, %s36
      %s11 = sphi 0, %s32
      %s12 = sphi 0, %s28
      %s13 = sphi 0, %s24
      %s14 = sphi 0, %s10
      %s15 = sphi 0, %s11
      %s16 = sphi 0, %s12
      %s17 = sphi 0, %s13
      %s18 = sphi 0, %s14
      %s19 = sphi 0, %s15
      %s20 = sphi 0, %s16
      %s21 = sphi 0, %s17
    $region4: #{custom-call.13} parent=1 // loop_header_branch
      %6 = sbr.rel (%p4) target = $region8
    $region5: #{custom-call.13} parent=1 // loop_body
      %s8 = ssub.s32 %s3, 1
      %s9 = ssub.s32 %s3, 2
      %s22 = sadd.s32 1, %s13
      %p23 = scmp.ge.s32.totalorder %s22, 1
      %s24 = scalar_select %p23, 0, %s22
      %s25 = sadd.s32 1, %s12
      %s26 = scalar_select %p23, %s25, %s12
      %p27 = scmp.ge.s32.totalorder %s26, 1
      %s28 = scalar_select %p27, 0, %s26
      %s29 = sadd.s32 1, %s11
      %s30 = scalar_select %p27, %s29, %s11
      %p31 = scmp.ge.s32.totalorder %s30, 1
      %s32 = scalar_select %p31, 0, %s30
      %s33 = sadd.s32 1, %s10
      %s34 = scalar_select %p31, %s33, %s10
      %p35 = scmp.ge.s32.totalorder %s34, 2
      %s36 = scalar_select %p35, 0, %s34
      %p37 = scmp.le.s32.totalorder 1, %s3
      %p38 = scmp.lt.s32.totalorder %s3, 3
      %p39 = pnand %p37, %p38
      %p40 = pneg %p39
      // Predicated region
      $region9: #{custom-call.13} parent=5 // pred_check
        _
      $region10: #{custom-call.13} parent=5 // pred_check_branch
        %42 = sbr.rel (%p39) target = $region12
      $region11: #{custom-call.13} parent=5 // pred_region
        %s43 = ssub.s32 %s3, 1
      $region12: #{custom-call.13} parent=5 // pred_fallthru
        _
      %p44 = scmp.lt.s32.totalorder %s3, 2
      // Predicated region
      $region13: #{custom-call.13} parent=5 // pred_check
        %p45 = pneg %p44
      $region14: #{custom-call.13} parent=5 // pred_check_branch
        %47 = sbr.rel (%p45) target = $region16
      $region15: #{custom-call.13} parent=5 // pred_region
        %s48 = sand.u32 %s3, 1
        %s49 = sand.u32 %s3, 1
        %s50 = smul.addr %s49, 4
        %s51 = scalar_lea.vmem [#allocation1], %s50
        %s52 = sadd.s32 %s13, %s12
        %s53 = sadd.s32 %s52, %s11
        %s54 = sadd.s32 %s53, %s10
        %s55 = smul.addr %s54, 4
        %s56 = scalar_lea.vmem %s0, %s55
        // Predicated region
        $region17: #{custom-call.13} parent=15 // pred_check
          _
        $region18: #{custom-call.13} parent=15 // pred_check_branch
          %58 = sbr.rel (0) target = $region20
        $region19: #{custom-call.13} parent=15 // pred_region
          // Predicated region
          $region21: #{custom-call.13} parent=19 // pred_check
            _
          $region22: #{custom-call.13} parent=19 // pred_check_branch
            %60 = sbr.rel target = $region24
          $region23: #{custom-call.13} parent=19 // pred_region
            // Predicated region
            $region36: #{custom-call.13} parent=23 // pred_check
              _
            $region37: #{custom-call.13} parent=23 // pred_check_branch
              %75 = sbr.rel (0) target = $region39
            $region38: #{custom-call.13} parent=23 // pred_region
              loop: start=0, step=1, limit=1
              $region40: #{custom-call.13} parent=38 // loop_pre_header
                _
              $region41: #{custom-call.13} parent=38 // loop_header
                %s78 = sphi 0, %s82
                %p79 = scmp.ge.s32.totalorder %s78, 1
                %s83 = sphi %s56, %s56
                %s84 = sphi %s51, %s51
              $region42: #{custom-call.13} parent=38 // loop_header_branch
                %81 = sbr.rel (%p79) target = $region46
              $region43: #{custom-call.13} parent=38 // loop_body
                %v85 = vld [vmem:[%s83] sm:$0xf]
                %86 = vst [vmem:[%s84] sm:$0xf] %v85
              $region44: #{custom-call.13} parent=38 // loop_footer
                %s82 = sadd.s32 1, %s78
              $region45: #{custom-call.13} parent=38 // loop_footer_branch
                %77 = sbr.rel target = $region41
              $region46: #{custom-call.13} parent=38 // loop_exit
                _
            $region39: #{custom-call.13} parent=23 // pred_fallthru
              _
          $region24: #{custom-call.13} parent=19 // pred_fallthru
            _
          // Predicated region
          $region25: #{custom-call.13} parent=19 // pred_check
            _
          $region26: #{custom-call.13} parent=19 // pred_check_branch
            %62 = sbr.rel (0) target = $region28
          $region27: #{custom-call.13} parent=19 // pred_region
            loop: start=0, step=1, limit=1
            $region29: #{custom-call.13} parent=27 // loop_pre_header
              _
            $region30: #{custom-call.13} parent=27 // loop_header
              %s65 = sphi 0, %s69
              %p66 = scmp.ge.s32.totalorder %s65, 1
              %s70 = sphi %s56, %s56
              %s71 = sphi %s51, %s51
            $region31: #{custom-call.13} parent=27 // loop_header_branch
              %68 = sbr.rel (%p66) target = $region35
            $region32: #{custom-call.13} parent=27 // loop_body
              %v72 = vld [vmem:[%s70] sm:$0xf]
              %73 = vst [vmem:[%s71] sm:$0xf] %v72
            $region33: #{custom-call.13} parent=27 // loop_footer
              %s69 = sadd.s32 1, %s65
            $region34: #{custom-call.13} parent=27 // loop_footer_branch
              %64 = sbr.rel target = $region30
            $region35: #{custom-call.13} parent=27 // loop_exit
              _
          $region28: #{custom-call.13} parent=19 // pred_fallthru
            _
        $region20: #{custom-call.13} parent=15 // pred_fallthru
          _
        %87 = vnop
      $region16: #{custom-call.13} parent=5 // pred_fallthru
        _
      %p88 = scmp.le.s32.totalorder 1, %s3
      %p89 = scmp.lt.s32.totalorder %s3, 3
      %p90 = pnand %p88, %p89
      %p91 = pneg %p90
      // Predicated region
      $region47: #{custom-call.13} parent=5 // pred_check
        _
      $region48: #{custom-call.13} parent=5 // pred_check_branch
        %93 = sbr.rel (%p90) target = $region50
      $region49: #{custom-call.13} parent=5 // pred_region
        #allocation4 [shape = 'f32[4,4]{1,0}', space=vmem, size = 0x1000, scoped, tag = 'rescaled input a']
        %s94 = ssub.s32 %s3, 1
        %s95 = sand.u32 %s8, 1
        %s96 = sand.u32 %s8, 1
        %s97 = smul.addr %s96, 4
        %s98 = scalar_lea.vmem [#allocation1], %s97
        %s99 = sand.u32 %s8, 1
        %s100 = sand.u32 %s8, 1
        %s101 = smul.addr %s100, 4
        %s102 = scalar_lea.vmem [#allocation1], %s101
        %s103 = sand.u32 %s8, 1
        %s104 = sand.u32 %s8, 1
        %s105 = smul.addr %s104, 4
        %s106 = scalar_lea.vmem [#allocation3], %s105
        %s108 = sshllo.u32 0, 4
        %v109 = vld [vmem:[%s102] sm:%s108]
        %110 = vst [vmem:[#allocation0] sm:%s108] %v109
        %v111 = vlaneseq
        %v112 = vand.u32 %v111, 127
        %vm113 = vcmp.lt.s32.totalorder %v112, 4
        %v114 = vlaneseq
        %v115 = vshrl.u32 %v114, 7
        %vm117 = vcmp.eq.s32.totalorder %v115, %v112
        %v118 = vld [vmem:[#allocation0] sm:$0xff]
        %v119 = vsel %vm117, %v118, 0.0
        %120 = vadd.xlane.f32.xlu0 %v119
        %v121 = vpop.xlane.xlu0 %120
        %vm122 = vcmp.ge.s32.totalorder %v115, %v112
        %vm123 = vmand %vm122, %vm113
        %v124 = vsel %vm123, %v118, 0.0
        %v125 = vrcp.pop %v121
        %v126 = vmul.f32 %v124, %v125
        %127 = vst [vmem:[#allocation4] sm:$0xff] %v126
        %v128 = vlaneseq
        %v129 = vand.u32 %v128, 127
        %v130 = vlaneseq
        %v131 = vshrl.u32 %v130, 7
        %vm133 = vcmp.eq.s32.totalorder %v129, %v131
        %v134 = vlaneseq
        %v135 = vand.u32 %v134, 127
        %vm136 = vcmp.eq.s32.totalorder %v135, 0
        %v137 = vsel %vm136, 1.0, -1.0
        %v138 = vsel %vm133, %v137, 0.0
        %s139 = scalar_lea.vmem [#allocation4], 1
        %v140 = vld [vmem:[%s139] ss:$0 sm:$0xff]
        %v141 = vxor.u32 %v140, 2147483648
        %v142 = vlaneseq
        %v143 = vand.u32 %v142, 127
        %vm144 = vcmp.eq.s32.totalorder %v143, 1
        %v145 = vmul.f32 %v141, %v138
        %146 = vadd.xlane.f32.xlu0 %v145
        %v147 = vpop.xlane.xlu0 %146
        %v148 = vsel %vm144, %v147, %v138
        %s149 = scalar_lea.vmem [#allocation4], 2
        %v150 = vld [vmem:[%s149] ss:$0 sm:$0xff]
        %v151 = vxor.u32 %v150, 2147483648
        %v152 = vlaneseq
        %v153 = vand.u32 %v152, 127
        %vm154 = vcmp.eq.s32.totalorder %v153, 2
        %v155 = vmul.f32 %v151, %v148
        %156 = vadd.xlane.f32.xlu0 %v155
        %v157 = vpop.xlane.xlu0 %156
        %v158 = vsel %vm154, %v157, %v148
        %s159 = scalar_lea.vmem [#allocation4], 3
        %v160 = vld [vmem:[%s159] ss:$0 sm:$0xff]
        %v161 = vxor.u32 %v160, 2147483648
        %v162 = vlaneseq
        %v163 = vand.u32 %v162, 127
        %vm164 = vcmp.eq.s32.totalorder %v163, 3
        %v165 = vmul.f32 %v161, %v158
        %166 = vadd.xlane.f32.xlu0 %v165
        %v167 = vpop.xlane.xlu0 %166
        %v168 = vsel %vm164, %v167, %v158
        %v169 = vrcp.pop %v121
        %v170 = vmul.f32 %v168, %v169
        %vm171 = vweird.f32 %v121
        %v172 = vsel %vm171, %v168, %v170
        %173 = vst [vmem:[#allocation2] sm:$0xff] %v172
        %s175 = sshllo.u32 0, 4
        %v177 = vld [vmem:[#allocation2] sm:%s175]
        %s178 = sshllo.u32 0, 4
        %179 = vst [vmem:[%s106] sm:%s178] %v177
        %s180 = sand.u32 %s8, 1
        %s181 = sand.u32 %s8, 1
        %s182 = smul.addr %s181, 4
        %s183 = scalar_lea.vmem [#allocation3], %s182
        %s184 = sadd.s32 %s17, %s16
        %s185 = sadd.s32 %s184, %s15
        %s186 = sadd.s32 %s185, %s14
        %s187 = smul.addr %s186, 4
        %s188 = scalar_lea.vmem %s1, %s187
        // Predicated region
        $region51: #{custom-call.13} parent=49 // pred_check
          _
        $region52: #{custom-call.13} parent=49 // pred_check_branch
          %190 = sbr.rel (0) target = $region54
        $region53: #{custom-call.13} parent=49 // pred_region
          // Predicated region
          $region55: #{custom-call.13} parent=53 // pred_check
            _
          $region56: #{custom-call.13} parent=53 // pred_check_branch
            %192 = sbr.rel target = $region58
          $region57: #{custom-call.13} parent=53 // pred_region
            // Predicated region
            $region70: #{custom-call.13} parent=57 // pred_check
              _
            $region71: #{custom-call.13} parent=57 // pred_check_branch
              %207 = sbr.rel (0) target = $region73
            $region72: #{custom-call.13} parent=57 // pred_region
              loop: start=0, step=1, limit=1
              $region74: #{custom-call.13} parent=72 // loop_pre_header
                _
              $region75: #{custom-call.13} parent=72 // loop_header
                %s210 = sphi 0, %s214
                %p211 = scmp.ge.s32.totalorder %s210, 1
                %s215 = sphi %s183, %s183
                %s216 = sphi %s188, %s188
              $region76: #{custom-call.13} parent=72 // loop_header_branch
                %213 = sbr.rel (%p211) target = $region80
              $region77: #{custom-call.13} parent=72 // loop_body
                %v217 = vld [vmem:[%s215] sm:$0xf]
                %218 = vst [vmem:[%s216] sm:$0xf] %v217
              $region78: #{custom-call.13} parent=72 // loop_footer
                %s214 = sadd.s32 1, %s210
              $region79: #{custom-call.13} parent=72 // loop_footer_branch
                %209 = sbr.rel target = $region75
              $region80: #{custom-call.13} parent=72 // loop_exit
                _
            $region73: #{custom-call.13} parent=57 // pred_fallthru
              _
          $region58: #{custom-call.13} parent=53 // pred_fallthru
            _
          // Predicated region
          $region59: #{custom-call.13} parent=53 // pred_check
            _
          $region60: #{custom-call.13} parent=53 // pred_check_branch
            %194 = sbr.rel (0) target = $region62
          $region61: #{custom-call.13} parent=53 // pred_region
            loop: start=0, step=1, limit=1
            $region63: #{custom-call.13} parent=61 // loop_pre_header
              _
            $region64: #{custom-call.13} parent=61 // loop_header
              %s197 = sphi 0, %s201
              %p198 = scmp.ge.s32.totalorder %s197, 1
              %s202 = sphi %s183, %s183
              %s203 = sphi %s188, %s188
            $region65: #{custom-call.13} parent=61 // loop_header_branch
              %200 = sbr.rel (%p198) target = $region69
            $region66: #{custom-call.13} parent=61 // loop_body
              %v204 = vld [vmem:[%s202] sm:$0xf]
              %205 = vst [vmem:[%s203] sm:$0xf] %v204
            $region67: #{custom-call.13} parent=61 // loop_footer
              %s201 = sadd.s32 1, %s197
            $region68: #{custom-call.13} parent=61 // loop_footer_branch
              %196 = sbr.rel target = $region64
            $region69: #{custom-call.13} parent=61 // loop_exit
              _
          $region62: #{custom-call.13} parent=53 // pred_fallthru
            _
        $region54: #{custom-call.13} parent=49 // pred_fallthru
          _
        %219 = vnop
      $region50: #{custom-call.13} parent=5 // pred_fallthru
        _
      %p220 = scmp.le.s32.totalorder 2, %s3
      // Predicated region
      $region81: #{custom-call.13} parent=5 // pred_check
        %p221 = pneg %p220
      $region82: #{custom-call.13} parent=5 // pred_check_branch
        %223 = sbr.rel (%p221) target = $region84
      $region83: #{custom-call.13} parent=5 // pred_region
        %s224 = ssub.s32 %s3, 2
        %s225 = sand.u32 %s9, 1
        %s226 = sand.u32 %s9, 1
        %s227 = smul.addr %s226, 4
        %s228 = scalar_lea.vmem [#allocation3], %s227
      $region84: #{custom-call.13} parent=5 // pred_fallthru
        _
    $region6: #{custom-call.13} parent=1 // loop_footer
      %s7 = sadd.s32 1, %s3
    $region7: #{custom-call.13} parent=1 // loop_footer_branch
      %2 = sbr.rel target = $region3
    $region8: #{custom-call.13} parent=1 // loop_exit
      _

// kernel: custom-call.12
$region0: #{custom-call.12}
  %s0 = inlined_call_operand.vmem [shape: f32[2,1,4,4], index: 0, kind: input, shape index: {}]
  %s1 = inlined_call_operand.vmem [shape: f32[2,1,4,4], index: 1, kind: output, shape index: {}]
  $region1: #{custom-call.12} parent=0
    #allocation0 [shape = 'u8[4096]{0}', space=vmem, size = 0x1000, scoped, tag = 'operand span for operand 0']
    #allocation1 [shape = 'u8[4096]{0}', space=vmem, size = 0x1000, scoped, tag = 'packed  for operand 0']
    #allocation2 [shape = 'u8[4096]{0}', space=vmem, size = 0x1000, scoped, tag = 'operand span for operand 1']
    #allocation3 [shape = 'u8[4096]{0}', space=vmem, size = 0x1000, scoped, tag = 'packed  for operand 1']
    loop: start=0, step=1, limit=4
    $region2: #{custom-call.12} parent=1 // loop_pre_header
      _
    $region3: #{custom-call.12} parent=1 // loop_header
      %s3 = sphi 0, %s7
      %p4 = scmp.ge.s32.totalorder %s3, 4
      %s10 = sphi 0, %s36
      %s11 = sphi 0, %s32
      %s12 = sphi 0, %s28
      %s13 = sphi 0, %s24
      %s14 = sphi 0, %s10
      %s15 = sphi 0, %s11
      %s16 = sphi 0, %s12
      %s17 = sphi 0, %s13
      %s18 = sphi 0, %s14
      %s19 = sphi 0, %s15
      %s20 = sphi 0, %s16
      %s21 = sphi 0, %s17
    $region4: #{custom-call.12} parent=1 // loop_header_branch
      %6 = sbr.rel (%p4) target = $region8
    $region5: #{custom-call.12} parent=1 // loop_body
      %s8 = ssub.s32 %s3, 1
      %s9 = ssub.s32 %s3, 2
      %s22 = sadd.s32 1, %s13
      %p23 = scmp.ge.s32.totalorder %s22, 1
      %s24 = scalar_select %p23, 0, %s22
      %s25 = sadd.s32 1, %s12
      %s26 = scalar_select %p23, %s25, %s12
      %p27 = scmp.ge.s32.totalorder %s26, 1
      %s28 = scalar_select %p27, 0, %s26
      %s29 = sadd.s32 1, %s11
      %s30 = scalar_select %p27, %s29, %s11
      %p31 = scmp.ge.s32.totalorder %s30, 1
      %s32 = scalar_select %p31, 0, %s30
      %s33 = sadd.s32 1, %s10
      %s34 = scalar_select %p31, %s33, %s10
      %p35 = scmp.ge.s32.totalorder %s34, 2
      %s36 = scalar_select %p35, 0, %s34
      %p37 = scmp.le.s32.totalorder 1, %s3
      %p38 = scmp.lt.s32.totalorder %s3, 3
      %p39 = pnand %p37, %p38
      %p40 = pneg %p39
      // Predicated region
      $region9: #{custom-call.12} parent=5 // pred_check
        _
      $region10: #{custom-call.12} parent=5 // pred_check_branch
        %42 = sbr.rel (%p39) target = $region12
      $region11: #{custom-call.12} parent=5 // pred_region
        %s43 = ssub.s32 %s3, 1
      $region12: #{custom-call.12} parent=5 // pred_fallthru
        _
      %p44 = scmp.lt.s32.totalorder %s3, 2
      // Predicated region
      $region13: #{custom-call.12} parent=5 // pred_check
        %p45 = pneg %p44
      $region14: #{custom-call.12} parent=5 // pred_check_branch
        %47 = sbr.rel (%p45) target = $region16
      $region15: #{custom-call.12} parent=5 // pred_region
        %s48 = sand.u32 %s3, 1
        %s49 = sand.u32 %s3, 1
        %s50 = smul.addr %s49, 4
        %s51 = scalar_lea.vmem [#allocation1], %s50
        %s52 = sadd.s32 %s13, %s12
        %s53 = sadd.s32 %s52, %s11
        %s54 = sadd.s32 %s53, %s10
        %s55 = smul.addr %s54, 4
        %s56 = scalar_lea.vmem %s0, %s55
        // Predicated region
        $region17: #{custom-call.12} parent=15 // pred_check
          _
        $region18: #{custom-call.12} parent=15 // pred_check_branch
          %58 = sbr.rel (0) target = $region20
        $region19: #{custom-call.12} parent=15 // pred_region
          // Predicated region
          $region21: #{custom-call.12} parent=19 // pred_check
            _
          $region22: #{custom-call.12} parent=19 // pred_check_branch
            %60 = sbr.rel target = $region24
          $region23: #{custom-call.12} parent=19 // pred_region
            // Predicated region
            $region36: #{custom-call.12} parent=23 // pred_check
              _
            $region37: #{custom-call.12} parent=23 // pred_check_branch
              %75 = sbr.rel (0) target = $region39
            $region38: #{custom-call.12} parent=23 // pred_region
              loop: start=0, step=1, limit=1
              $region40: #{custom-call.12} parent=38 // loop_pre_header
                _
              $region41: #{custom-call.12} parent=38 // loop_header
                %s78 = sphi 0, %s82
                %p79 = scmp.ge.s32.totalorder %s78, 1
                %s83 = sphi %s56, %s56
                %s84 = sphi %s51, %s51
              $region42: #{custom-call.12} parent=38 // loop_header_branch
                %81 = sbr.rel (%p79) target = $region46
              $region43: #{custom-call.12} parent=38 // loop_body
                %v85 = vld [vmem:[%s83] sm:$0xf]
                %86 = vst [vmem:[%s84] sm:$0xf] %v85
              $region44: #{custom-call.12} parent=38 // loop_footer
                %s82 = sadd.s32 1, %s78
              $region45: #{custom-call.12} parent=38 // loop_footer_branch
                %77 = sbr.rel target = $region41
              $region46: #{custom-call.12} parent=38 // loop_exit
                _
            $region39: #{custom-call.12} parent=23 // pred_fallthru
              _
          $region24: #{custom-call.12} parent=19 // pred_fallthru
            _
          // Predicated region
          $region25: #{custom-call.12} parent=19 // pred_check
            _
          $region26: #{custom-call.12} parent=19 // pred_check_branch
            %62 = sbr.rel (0) target = $region28
          $region27: #{custom-call.12} parent=19 // pred_region
            loop: start=0, step=1, limit=1
            $region29: #{custom-call.12} parent=27 // loop_pre_header
              _
            $region30: #{custom-call.12} parent=27 // loop_header
              %s65 = sphi 0, %s69
              %p66 = scmp.ge.s32.totalorder %s65, 1
              %s70 = sphi %s56, %s56
              %s71 = sphi %s51, %s51
            $region31: #{custom-call.12} parent=27 // loop_header_branch
              %68 = sbr.rel (%p66) target = $region35
            $region32: #{custom-call.12} parent=27 // loop_body
              %v72 = vld [vmem:[%s70] sm:$0xf]
              %73 = vst [vmem:[%s71] sm:$0xf] %v72
            $region33: #{custom-call.12} parent=27 // loop_footer
              %s69 = sadd.s32 1, %s65
            $region34: #{custom-call.12} parent=27 // loop_footer_branch
              %64 = sbr.rel target = $region30
            $region35: #{custom-call.12} parent=27 // loop_exit
              _
          $region28: #{custom-call.12} parent=19 // pred_fallthru
            _
        $region20: #{custom-call.12} parent=15 // pred_fallthru
          _
        %87 = vnop
      $region16: #{custom-call.12} parent=5 // pred_fallthru
        _
      %p88 = scmp.le.s32.totalorder 1, %s3
      %p89 = scmp.lt.s32.totalorder %s3, 3
      %p90 = pnand %p88, %p89
      %p91 = pneg %p90
      // Predicated region
      $region47: #{custom-call.12} parent=5 // pred_check
        _
      $region48: #{custom-call.12} parent=5 // pred_check_branch
        %93 = sbr.rel (%p90) target = $region50
      $region49: #{custom-call.12} parent=5 // pred_region
        #allocation4 [shape = 'f32[4,4]{1,0}', space=vmem, size = 0x1000, scoped, tag = 'rescaled input a']
        %s94 = ssub.s32 %s3, 1
        %s95 = sand.u32 %s8, 1
        %s96 = sand.u32 %s8, 1
        %s97 = smul.addr %s96, 4
        %s98 = scalar_lea.vmem [#allocation1], %s97
        %s99 = sand.u32 %s8, 1
        %s100 = sand.u32 %s8, 1
        %s101 = smul.addr %s100, 4
        %s102 = scalar_lea.vmem [#allocation1], %s101
        %s103 = sand.u32 %s8, 1
        %s104 = sand.u32 %s8, 1
        %s105 = smul.addr %s104, 4
        %s106 = scalar_lea.vmem [#allocation3], %s105
        %s108 = sshllo.u32 0, 4
        %v109 = vld [vmem:[%s102] sm:%s108]
        %110 = vst [vmem:[#allocation0] sm:%s108] %v109
        %v111 = vlaneseq
        %v112 = vand.u32 %v111, 127
        %vm113 = vcmp.lt.s32.totalorder %v112, 4
        %v114 = vlaneseq
        %v115 = vshrl.u32 %v114, 7
        %vm117 = vcmp.eq.s32.totalorder %v115, %v112
        %v118 = vld [vmem:[#allocation0] sm:$0xff]
        %v119 = vsel %vm117, %v118, 0.0
        %120 = vadd.xlane.f32.xlu0 %v119
        %v121 = vpop.xlane.xlu0 %120
        %vm122 = vcmp.le.s32.totalorder %v115, %v112
        %vm123 = vmand %vm122, %vm113
        %v124 = vsel %vm123, %v118, 0.0
        %v125 = vrcp.pop %v121
        %v126 = vmul.f32 %v124, %v125
        %127 = vst [vmem:[#allocation4] sm:$0xff] %v126
        %v128 = vlaneseq
        %v129 = vand.u32 %v128, 127
        %v130 = vlaneseq
        %v131 = vshrl.u32 %v130, 7
        %vm133 = vcmp.eq.s32.totalorder %v129, %v131
        %v134 = vlaneseq
        %v135 = vand.u32 %v134, 127
        %vm136 = vcmp.eq.s32.totalorder %v135, 3
        %v137 = vsel %vm136, 1.0, -1.0
        %v138 = vsel %vm133, %v137, 0.0
        %s139 = scalar_lea.vmem [#allocation4], 2
        %v140 = vld [vmem:[%s139] ss:$0 sm:$0xff]
        %v141 = vxor.u32 %v140, 2147483648
        %v142 = vlaneseq
        %v143 = vand.u32 %v142, 127
        %vm144 = vcmp.eq.s32.totalorder %v143, 2
        %v145 = vmul.f32 %v141, %v138
        %146 = vadd.xlane.f32.xlu0 %v145
        %v147 = vpop.xlane.xlu0 %146
        %v148 = vsel %vm144, %v147, %v138
        %s149 = scalar_lea.vmem [#allocation4], 1
        %v150 = vld [vmem:[%s149] ss:$0 sm:$0xff]
        %v151 = vxor.u32 %v150, 2147483648
        %v152 = vlaneseq
        %v153 = vand.u32 %v152, 127
        %vm154 = vcmp.eq.s32.totalorder %v153, 1
        %v155 = vmul.f32 %v151, %v148
        %156 = vadd.xlane.f32.xlu0 %v155
        %v157 = vpop.xlane.xlu0 %156
        %v158 = vsel %vm154, %v157, %v148
        %v159 = vld [vmem:[#allocation4] ss:$0 sm:$0xff]
        %v160 = vxor.u32 %v159, 2147483648
        %v161 = vlaneseq
        %v162 = vand.u32 %v161, 127
        %vm163 = vcmp.eq.s32.totalorder %v162, 0
        %v164 = vmul.f32 %v160, %v158
        %165 = vadd.xlane.f32.xlu0 %v164
        %v166 = vpop.xlane.xlu0 %165
        %v167 = vsel %vm163, %v166, %v158
        %v168 = vrcp.pop %v121
        %v169 = vmul.f32 %v167, %v168
        %vm170 = vweird.f32 %v121
        %v171 = vsel %vm170, %v167, %v169
        %172 = vst [vmem:[#allocation2] sm:$0xff] %v171
        %s174 = sshllo.u32 0, 4
        %v176 = vld [vmem:[#allocation2] sm:%s174]
        %s177 = sshllo.u32 0, 4
        %178 = vst [vmem:[%s106] sm:%s177] %v176
        %s179 = sand.u32 %s8, 1
        %s180 = sand.u32 %s8, 1
        %s181 = smul.addr %s180, 4
        %s182 = scalar_lea.vmem [#allocation3], %s181
        %s183 = sadd.s32 %s17, %s16
        %s184 = sadd.s32 %s183, %s15
        %s185 = sadd.s32 %s184, %s14
        %s186 = smul.addr %s185, 4
        %s187 = scalar_lea.vmem %s1, %s186
        // Predicated region
        $region51: #{custom-call.12} parent=49 // pred_check
          _
        $region52: #{custom-call.12} parent=49 // pred_check_branch
          %189 = sbr.rel (0) target = $region54
        $region53: #{custom-call.12} parent=49 // pred_region
          // Predicated region
          $region55: #{custom-call.12} parent=53 // pred_check
            _
          $region56: #{custom-call.12} parent=53 // pred_check_branch
            %191 = sbr.rel target = $region58
          $region57: #{custom-call.12} parent=53 // pred_region
            // Predicated region
            $region70: #{custom-call.12} parent=57 // pred_check
              _
            $region71: #{custom-call.12} parent=57 // pred_check_branch
              %206 = sbr.rel (0) target = $region73
            $region72: #{custom-call.12} parent=57 // pred_region
              loop: start=0, step=1, limit=1
              $region74: #{custom-call.12} parent=72 // loop_pre_header
                _
              $region75: #{custom-call.12} parent=72 // loop_header
                %s209 = sphi 0, %s213
                %p210 = scmp.ge.s32.totalorder %s209, 1
                %s214 = sphi %s182, %s182
                %s215 = sphi %s187, %s187
              $region76: #{custom-call.12} parent=72 // loop_header_branch
                %212 = sbr.rel (%p210) target = $region80
              $region77: #{custom-call.12} parent=72 // loop_body
                %v216 = vld [vmem:[%s214] sm:$0xf]
                %217 = vst [vmem:[%s215] sm:$0xf] %v216
              $region78: #{custom-call.12} parent=72 // loop_footer
                %s213 = sadd.s32 1, %s209
              $region79: #{custom-call.12} parent=72 // loop_footer_branch
                %208 = sbr.rel target = $region75
              $region80: #{custom-call.12} parent=72 // loop_exit
                _
            $region73: #{custom-call.12} parent=57 // pred_fallthru
              _
          $region58: #{custom-call.12} parent=53 // pred_fallthru
            _
          // Predicated region
          $region59: #{custom-call.12} parent=53 // pred_check
            _
          $region60: #{custom-call.12} parent=53 // pred_check_branch
            %193 = sbr.rel (0) target = $region62
          $region61: #{custom-call.12} parent=53 // pred_region
            loop: start=0, step=1, limit=1
            $region63: #{custom-call.12} parent=61 // loop_pre_header
              _
            $region64: #{custom-call.12} parent=61 // loop_header
              %s196 = sphi 0, %s200
              %p197 = scmp.ge.s32.totalorder %s196, 1
              %s201 = sphi %s182, %s182
              %s202 = sphi %s187, %s187
            $region65: #{custom-call.12} parent=61 // loop_header_branch
              %199 = sbr.rel (%p197) target = $region69
            $region66: #{custom-call.12} parent=61 // loop_body
              %v203 = vld [vmem:[%s201] sm:$0xf]
              %204 = vst [vmem:[%s202] sm:$0xf] %v203
            $region67: #{custom-call.12} parent=61 // loop_footer
              %s200 = sadd.s32 1, %s196
            $region68: #{custom-call.12} parent=61 // loop_footer_branch
              %195 = sbr.rel target = $region64
            $region69: #{custom-call.12} parent=61 // loop_exit
              _
          $region62: #{custom-call.12} parent=53 // pred_fallthru
            _
        $region54: #{custom-call.12} parent=49 // pred_fallthru
          _
        %218 = vnop
      $region50: #{custom-call.12} parent=5 // pred_fallthru
        _
      %p219 = scmp.le.s32.totalorder 2, %s3
      // Predicated region
      $region81: #{custom-call.12} parent=5 // pred_check
        %p220 = pneg %p219
      $region82: #{custom-call.12} parent=5 // pred_check_branch
        %222 = sbr.rel (%p220) target = $region84
      $region83: #{custom-call.12} parent=5 // pred_region
        %s223 = ssub.s32 %s3, 2
        %s224 = sand.u32 %s9, 1
        %s225 = sand.u32 %s9, 1
        %s226 = smul.addr %s225, 4
        %s227 = scalar_lea.vmem [#allocation3], %s226
      $region84: #{custom-call.12} parent=5 // pred_fallthru
        _
    $region6: #{custom-call.12} parent=1 // loop_footer
      %s7 = sadd.s32 1, %s3
    $region7: #{custom-call.12} parent=1 // loop_footer_branch
      %2 = sbr.rel target = $region3
    $region8: #{custom-call.12} parent=1 // loop_exit
      _

// kernel: _lambda_.1
$region0: #{_lambda_.1}
  #allocation0 [shape = 'u32[]', space=smem, size = 0x4, offset = 0x4, fixed_abs, tag = 'smem constant byte address 0x4 - core index']
  #allocation1 [shape = 'u32[144,128]{1,0:T(1,128)}', space=vmem, size = 0x12000, scoped, tag = 'internal scratch']
  %s0 = inlined_call_operand.vmem [shape: f32[2,9], index: 0, kind: input, shape index: {}]
  %s1 = inlined_call_operand.vmem [shape: bf16[2,6,640], index: 1, kind: input, shape index: {}]
  %s2 = inlined_call_operand.vmem [shape: bf16[640,1024], index: 2, kind: input, shape index: {}]
  %s3 = inlined_call_operand.vmem [shape: f32[2,1,1024], index: 3, kind: input, shape index: {}]
  %s4 = inlined_call_operand.vmem [shape: f32[2,6,1024], index: 4, kind: output, shape index: {0}]
  %s5 = inlined_call_operand.vmem [shape: f32[2,3,6,196], index: 5, kind: output, shape index: {1}]
  %6 = xla_tuple %s4, %s5
  %s7 = sld [smem:[#allocation0]]
  $region61: #{_lambda_.1} parent=0
    _
  %s9 = ssub.s32 1, %s7
  %s10 = scalar_select 0, %s9, %s7
  $region1: #{_lambda_.1} parent=0
    #allocation2 [shape = 'u8[1024]{0}', space=smem, size = 0x400, scoped, tag = 'input window, operand 0, single buffered']
    #allocation3 [shape = 's32[2]{0}', space=sflag, size = 0x8, scoped, tag = 'scoped memory for _lambda_.1']
    %11 = vsyncpa [#allocation3], 0
    loop: start=0, step=1, limit=4
    $region2: #{_lambda_.1} parent=1 // loop_pre_header
      _
    $region3: #{_lambda_.1} parent=1 // loop_header
      %s13 = sphi 0, %s17
      %p14 = scmp.ge.s32.totalorder %s13, 4
      %s20 = sphi 0, %s32
      %s21 = sphi 0, %s28
      %s22 = sphi 0, %s20
      %s23 = sphi 0, %s21
      %s24 = sphi 0, %s22
      %s25 = sphi 0, %s23
      %s33 = sphi 0, %s33
      %s35 = sphi 0, %s33
      %s36 = sphi 0, %s35
      %s50 = sphi 0, %s36
      %s58 = sphi 0, %s60
      %s61 = sphi 0, %s58
      %s62 = sphi 0, %s61
      %s78 = sphi 0, %s62
      %s82 = sphi 0, %s82
      %s84 = sphi 0, %s82
      %s85 = sphi 0, %s84
      %s99 = sphi 0, %s85
      %s105 = sphi 0, %s107
      %s108 = sphi 0, %s105
      %s109 = sphi 0, %s108
      %s125 = sphi 0, %s109
      %s133 = sphi 0, %s135
      %s136 = sphi 0, %s133
      %s137 = sphi 0, %s136
      %s153 = sphi 0, %s137
      %s161 = sphi 0, %s163
      %s164 = sphi 0, %s161
      %s165 = sphi 0, %s164
      %s181 = sphi 0, %s165
    $region4: #{_lambda_.1} parent=1 // loop_header_branch
      %16 = sbr.rel (%p14) target = $region8
    $region5: #{_lambda_.1} parent=1 // loop_body
      %s18 = ssub.s32 %s13, 1
      %s19 = ssub.s32 %s13, 2
      %s26 = sadd.s32 1, %s21
      %p27 = scmp.ge.s32.totalorder %s26, 2
      %s28 = scalar_select %p27, 0, %s26
      %s29 = sadd.s32 1, %s20
      %s30 = scalar_select %p27, %s29, %s20
      %p31 = scmp.ge.s32.totalorder %s30, 1
      %s32 = scalar_select %p31, 0, %s30
      %s34 = sadd.s32 %s33, 1
      %p37 = scmp.eq.s32.totalorder %s13, 1
      %p38 = scmp.ne.s32.totalorder %s33, %s35
      %p39 = scmp.eq.s32.totalorder %s13, 0
      %p40 = por %p38, %p39
      %p41 = scmp.ne.s32.totalorder %s33, %s35
      %p42 = scmp.eq.s32.totalorder %s18, 1
      %p43 = por %p41, %p42
      %p44 = scmp.ne.s32.totalorder %s35, %s36
      %p45 = scmp.eq.s32.totalorder %s18, 0
      %p46 = por %p44, %p45
      %p47 = scmp.ne.s32.totalorder %s35, %s36
      %p48 = scmp.eq.s32.totalorder %s19, 1
      %p49 = por %p47, %p48
      %p51 = scmp.ne.s32.totalorder %s36, %s50
      %p52 = scmp.eq.s32.totalorder %s19, 0
      %p53 = por %p51, %p52
      %s54 = ssub.s32 %s21, %s28
      %s55 = ssub.s32 %s20, %s32
      %s56 = sor.u32 %s54, %s55
      %p57 = scmp.eq.s32.totalorder %s56, 0
      %s59 = sadd.s32 %s58, 1
      %s60 = scalar_select %p57, %s58, %s59
      %p63 = pneg %p57
      %p64 = scmp.eq.s32.totalorder %s13, 1
      %p65 = por %p63, %p64
      %p66 = scmp.ne.s32.totalorder %s58, %s61
      %p67 = scmp.eq.s32.totalorder %s13, 0
      %p68 = por %p66, %p67
      %p69 = scmp.ne.s32.totalorder %s58, %s61
      %p70 = scmp.eq.s32.totalorder %s18, 1
      %p71 = por %p69, %p70
      %p72 = scmp.ne.s32.totalorder %s61, %s62
      %p73 = scmp.eq.s32.totalorder %s18, 0
      %p74 = por %p72, %p73
      %p75 = scmp.ne.s32.totalorder %s61, %s62
      %p76 = scmp.eq.s32.totalorder %s19, 1
      %p77 = por %p75, %p76
      %p79 = scmp.ne.s32.totalorder %s62, %s78
      %p80 = scmp.eq.s32.totalorder %s19, 0
      %p81 = por %p79, %p80
      %s83 = sadd.s32 %s82, 1
      %p86 = scmp.eq.s32.totalorder %s13, 1
      %p87 = scmp.ne.s32.totalorder %s82, %s84
      %p88 = scmp.eq.s32.totalorder %s13, 0
      %p89 = por %p87, %p88
      %p90 = scmp.ne.s32.totalorder %s82, %s84
      %p91 = scmp.eq.s32.totalorder %s18, 1
      %p92 = por %p90, %p91
      %p93 = scmp.ne.s32.totalorder %s84, %s85
      %p94 = scmp.eq.s32.totalorder %s18, 0
      %p95 = por %p93, %p94
      %p96 = scmp.ne.s32.totalorder %s84, %s85
      %p97 = scmp.eq.s32.totalorder %s19, 1
      %p98 = por %p96, %p97
      %p100 = scmp.ne.s32.totalorder %s85, %s99
      %p101 = scmp.eq.s32.totalorder %s19, 0
      %p102 = por %p100, %p101
      %s103 = ssub.s32 %s21, %s28
      %p104 = scmp.eq.s32.totalorder %s103, 0
      %s106 = sadd.s32 %s105, 1
      %s107 = scalar_select %p104, %s105, %s106
      %p110 = pneg %p104
      %p111 = scmp.eq.s32.totalorder %s13, 1
      %p112 = por %p110, %p111
      %p113 = scmp.ne.s32.totalorder %s105, %s108
      %p114 = scmp.eq.s32.totalorder %s13, 0
      %p115 = por %p113, %p114
      %p116 = scmp.ne.s32.totalorder %s105, %s108
      %p117 = scmp.eq.s32.totalorder %s18, 1
      %p118 = por %p116, %p117
      %p119 = scmp.ne.s32.totalorder %s108, %s109
      %p120 = scmp.eq.s32.totalorder %s18, 0
      %p121 = por %p119, %p120
      %p122 = scmp.ne.s32.totalorder %s108, %s109
      %p123 = scmp.eq.s32.totalorder %s19, 1
      %p124 = por %p122, %p123
      %p126 = scmp.ne.s32.totalorder %s109, %s125
      %p127 = scmp.eq.s32.totalorder %s19, 0
      %p128 = por %p126, %p127
      %s129 = ssub.s32 %s21, %s28
      %s130 = ssub.s32 %s20, %s32
      %s131 = sor.u32 %s129, %s130
      %p132 = scmp.eq.s32.totalorder %s131, 0
      %s134 = sadd.s32 %s133, 1
      %s135 = scalar_select %p132, %s133, %s134
      %p138 = pneg %p132
      %p139 = scmp.eq.s32.totalorder %s13, 1
      %p140 = por %p138, %p139
      %p141 = scmp.ne.s32.totalorder %s133, %s136
      %p142 = scmp.eq.s32.totalorder %s13, 0
      %p143 = por %p141, %p142
      %p144 = scmp.ne.s32.totalorder %s133, %s136
      %p145 = scmp.eq.s32.totalorder %s18, 1
      %p146 = por %p144, %p145
      %p147 = scmp.ne.s32.totalorder %s136, %s137
      %p148 = scmp.eq.s32.totalorder %s18, 0
      %p149 = por %p147, %p148
      %p150 = scmp.ne.s32.totalorder %s136, %s137
      %p151 = scmp.eq.s32.totalorder %s19, 1
      %p152 = por %p150, %p151
      %p154 = scmp.ne.s32.totalorder %s137, %s153
      %p155 = scmp.eq.s32.totalorder %s19, 0
      %p156 = por %p154, %p155
      %s157 = ssub.s32 %s21, %s28
      %s158 = ssub.s32 %s20, %s32
      %s159 = sor.u32 %s157, %s158
      %p160 = scmp.eq.s32.totalorder %s159, 0
      %s162 = sadd.s32 %s161, 1
      %s163 = scalar_select %p160, %s161, %s162
      %p166 = pneg %p160
      %p167 = scmp.eq.s32.totalorder %s13, 1
      %p168 = por %p166, %p167
      %p169 = scmp.ne.s32.totalorder %s161, %s164
      %p170 = scmp.eq.s32.totalorder %s13, 0
      %p171 = por %p169, %p170
      %p172 = scmp.ne.s32.totalorder %s161, %s164
      %p173 = scmp.eq.s32.totalorder %s18, 1
      %p174 = por %p172, %p173
      %p175 = scmp.ne.s32.totalorder %s164, %s165
      %p176 = scmp.eq.s32.totalorder %s18, 0
      %p177 = por %p175, %p176
      %p178 = scmp.ne.s32.totalorder %s164, %s165
      %p179 = scmp.eq.s32.totalorder %s19, 1
      %p180 = por %p178, %p179
      %p182 = scmp.ne.s32.totalorder %s165, %s181
      %p183 = scmp.eq.s32.totalorder %s19, 0
      %p184 = por %p182, %p183
      %p185 = scmp.le.s32.totalorder 1, %s13
      %p186 = scmp.lt.s32.totalorder %s13, 3
      %p187 = pnand %p185, %p186
      %p188 = pneg %p187
      // Predicated region
      $region9: #{_lambda_.1} parent=5 // pred_check
        _
      $region10: #{_lambda_.1} parent=5 // pred_check_branch
        %190 = sbr.rel (%p187) target = $region12
      $region11: #{_lambda_.1} parent=5 // pred_region
        %s191 = ssub.s32 %s13, 1
        // Predicated region
        $region13: #{_lambda_.1} parent=11 // pred_check
          %p192 = pneg %p46
        $region14: #{_lambda_.1} parent=11 // pred_check_branch
          %194 = sbr.rel (%p192) target = $region16
        $region15: #{_lambda_.1} parent=11 // pred_region
          %s196 = ssub.s32 32, 32
          %197 = vsyncadd [#allocation3], %s196
          %s199 = sshll.u32 %s0, 4
          %s200 = int_to_ptr.vmem [resolvable:$true] %s199
          %202 = dma.vmem_to_smem %s200, 32, [#allocation2], [#allocation3]
        $region16: #{_lambda_.1} parent=11 // pred_fallthru
          _
        // Predicated region
        $region17: #{_lambda_.1} parent=11 // pred_check
          %p203 = pneg %p95
        $region18: #{_lambda_.1} parent=11 // pred_check_branch
          %205 = sbr.rel (%p203) target = $region20
        $region19: #{_lambda_.1} parent=11 // pred_region
          _
        $region20: #{_lambda_.1} parent=11 // pred_fallthru
          _
      $region12: #{_lambda_.1} parent=5 // pred_fallthru
        _
      %p206 = scmp.lt.s32.totalorder %s13, 2
      // Predicated region
      $region21: #{_lambda_.1} parent=5 // pred_check
        %p207 = pneg %p206
      $region22: #{_lambda_.1} parent=5 // pred_check_branch
        %209 = sbr.rel (%p207) target = $region24
      $region23: #{_lambda_.1} parent=5 // pred_region
        // Predicated region
        $region25: #{_lambda_.1} parent=23 // pred_check
          %p210 = pneg %p68
        $region26: #{_lambda_.1} parent=23 // pred_check_branch
          %212 = sbr.rel (%p210) target = $region28
        $region27: #{_lambda_.1} parent=23 // pred_region
          %p213 = scmp.lt.s32.totalorder %s21, 1
          %s214 = scalar_select %p213, %s21, 1
          %p215 = scmp.lt.s32.totalorder %s20, 0
          %s216 = scalar_select %p215, %s20, 0
          %s217 = smul.addr %s216, 5
          %s218 = smul.addr %s214, 5
          %s219 = sadd.s32 %s217, %s218
          %s220 = smul.addr %s219, 4
          %s221 = scalar_lea.vmem %s1, %s220
        $region28: #{_lambda_.1} parent=23 // pred_fallthru
          _
        // Predicated region
        $region29: #{_lambda_.1} parent=23 // pred_check
          %p222 = pneg %p115
        $region30: #{_lambda_.1} parent=23 // pred_check_branch
          %224 = sbr.rel (%p222) target = $region32
        $region31: #{_lambda_.1} parent=23 // pred_region
          %p225 = scmp.lt.s32.totalorder %s21, 1
          %s226 = scalar_select %p225, %s21, 1
          %s227 = smul.addr %s226, 8
          %s228 = scalar_lea.vmem %s3, %s227
        $region32: #{_lambda_.1} parent=23 // pred_fallthru
          _
      $region24: #{_lambda_.1} parent=5 // pred_fallthru
        _
      %p229 = scmp.le.s32.totalorder 1, %s13
      %p230 = scmp.lt.s32.totalorder %s13, 3
      %p231 = pnand %p229, %p230
      %p232 = pneg %p231
      // Predicated region
      $region33: #{_lambda_.1} parent=5 // pred_check
        _
      $region34: #{_lambda_.1} parent=5 // pred_check_branch
        %234 = sbr.rel (%p231) target = $region36
      $region35: #{_lambda_.1} parent=5 // pred_region
        %s235 = ssub.s32 %s13, 1
        // Predicated region
        $region37: #{_lambda_.1} parent=35 // pred_check
          %p236 = pneg %p46
        $region38: #{_lambda_.1} parent=35 // pred_check_branch
          %238 = sbr.rel (%p236) target = $region40
        $region39: #{_lambda_.1} parent=35 // pred_region
          %239 = dma.done [#allocation3], 32
        $region40: #{_lambda_.1} parent=35 // pred_fallthru
          _
        %240 = sfence
        %p241 = pneg %p46
        %p242 = pneg %p43
        %p243 = scmp.lt.s32.totalorder %s23, 1
        %s244 = scalar_select %p243, %s23, 1
        %p245 = scmp.lt.s32.totalorder %s22, 0
        %s246 = scalar_select %p245, %s22, 0
        %s247 = smul.addr %s246, 5
        %s248 = smul.addr %s244, 5
        %s249 = sadd.s32 %s247, %s248
        %s250 = smul.addr %s249, 4
        %s251 = scalar_lea.vmem %s1, %s250
        %p252 = pneg %p74
        %p253 = pneg %p71
        %p254 = pneg %p95
        %p255 = pneg %p92
        %p256 = scmp.lt.s32.totalorder %s23, 1
        %s257 = scalar_select %p256, %s23, 1
        %s258 = smul.addr %s257, 8
        %s259 = scalar_lea.vmem %s3, %s258
        %p260 = pneg %p121
        %p261 = pneg %p118
        %p262 = pneg %p149
        %p263 = pneg %p146
        %p264 = scmp.lt.s32.totalorder %s23, 1
        %s265 = scalar_select %p264, %s23, 1
        %p266 = scmp.lt.s32.totalorder %s22, 0
        %s267 = scalar_select %p266, %s22, 0
        %s268 = smul.addr %s267, 8
        %s269 = smul.addr %s265, 8
        %s270 = sadd.s32 %s268, %s269
        %s271 = smul.addr %s270, 8
        %s272 = scalar_lea.vmem %s4, %s271
        %p273 = pneg %p177
        %p274 = pneg %p174
        %p275 = scmp.lt.s32.totalorder %s23, 1
        %s276 = scalar_select %p275, %s23, 1
        %p277 = scmp.lt.s32.totalorder %s22, 0
        %s278 = scalar_select %p277, %s22, 0
        %s279 = smul.addr %s278, 2
        %s280 = smul.addr %s276, 6
        %s281 = sadd.s32 %s279, %s280
        %s282 = smul.addr %s281, 8
        %s283 = scalar_lea.vmem %s5, %s282
        %p284 = scmp.lt.s32.totalorder %s23, 1
        %s285 = scalar_select %p284, %s23, 1
        %p286 = scmp.lt.s32.totalorder %s22, 0
        %s287 = scalar_select %p286, %s22, 0
        %s288 = smul.addr %s287, 5
        %s289 = smul.addr %s285, 5
        %s290 = sadd.s32 %s288, %s289
        %s291 = smul.addr %s290, 4
        %s292 = scalar_lea.vmem %s1, %s291
        %p293 = scmp.lt.s32.totalorder %s23, 1
        %s294 = scalar_select %p293, %s23, 1
        %s295 = smul.addr %s294, 8
        %s296 = scalar_lea.vmem %s3, %s295
        %p297 = scmp.lt.s32.totalorder %s23, 1
        %s298 = scalar_select %p297, %s23, 1
        %p299 = scmp.lt.s32.totalorder %s22, 0
        %s300 = scalar_select %p299, %s22, 0
        %s301 = smul.addr %s300, 8
        %s302 = smul.addr %s298, 8
        %s303 = sadd.s32 %s301, %s302
        %s304 = smul.addr %s303, 8
        %s305 = scalar_lea.vmem %s4, %s304
        %p306 = scmp.lt.s32.totalorder %s23, 1
        %s307 = scalar_select %p306, %s23, 1
        %p308 = scmp.lt.s32.totalorder %s22, 0
        %s309 = scalar_select %p308, %s22, 0
        %s310 = smul.addr %s309, 2
        %s311 = smul.addr %s307, 6
        %s312 = sadd.s32 %s310, %s311
        %s313 = smul.addr %s312, 8
        %s314 = scalar_lea.vmem %s5, %s313
        %v316 = vld [vmem:[%s292] sm:$0x77]
        %v317 = vld [vmem:[%s292 + $0x8] sm:$0x77]
        %v318 = vld [vmem:[%s292 + $0x10] sm:$0x7]
        %v319 = vld [vmem:[%s2] sm:$0xff]
        %v320 = vld [vmem:[%s2 + $0x8] sm:$0xff]
        %v321 = vld [vmem:[%s2 + $0x10] sm:$0xff]
        %v322 = vld [vmem:[%s2 + $0x18] sm:$0xff]
        %v323 = vld [vmem:[%s2 + $0x20] sm:$0xff]
        %v324 = vld [vmem:[%s2 + $0x28] sm:$0xff]
        %v325 = vld [vmem:[%s2 + $0x30] sm:$0xff]
        %v326 = vld [vmem:[%s2 + $0x38] sm:$0xff]
        %v327 = vld [vmem:[%s2 + $0x40] sm:$0xff]
        %v328 = vld [vmem:[%s2 + $0x48] sm:$0xff]
        %v329 = vld [vmem:[%s2 + $0x50] sm:$0xff]
        %v330 = vld [vmem:[%s2 + $0x58] sm:$0xff]
        %v331 = vld [vmem:[%s2 + $0x60] sm:$0xff]
        %v332 = vld [vmem:[%s2 + $0x68] sm:$0xff]
        %v333 = vld [vmem:[%s2 + $0x70] sm:$0xff]
        %v334 = vld [vmem:[%s2 + $0x78] sm:$0xff]
        %v335 = vld [vmem:[%s2 + $0x80] sm:$0xff]
        %v336 = vld [vmem:[%s2 + $0x88] sm:$0xff]
        %v337 = vld [vmem:[%s2 + $0x90] sm:$0xff]
        %v338 = vld [vmem:[%s2 + $0x98] sm:$0xff]
        %v339 = vld [vmem:[%s2 + $0xa0] sm:$0xff]
        %v340 = vld [vmem:[%s2 + $0xa8] sm:$0xff]
        %v341 = vld [vmem:[%s2 + $0xb0] sm:$0xff]
        %v342 = vld [vmem:[%s2 + $0xb8] sm:$0xff]
        %v343 = vld [vmem:[%s2 + $0xc0] sm:$0xff]
        %v344 = vld [vmem:[%s2 + $0xc8] sm:$0xff]
        %v345 = vld [vmem:[%s2 + $0xd0] sm:$0xff]
        %v346 = vld [vmem:[%s2 + $0xd8] sm:$0xff]
        %v347 = vld [vmem:[%s2 + $0xe0] sm:$0xff]
        %v348 = vld [vmem:[%s2 + $0xe8] sm:$0xff]
        %v349 = vld [vmem:[%s2 + $0xf0] sm:$0xff]
        %v350 = vld [vmem:[%s2 + $0xf8] sm:$0xff]
        %v351 = vld [vmem:[%s2 + $0x100] sm:$0xff]
        %v352 = vld [vmem:[%s2 + $0x108] sm:$0xff]
        %v353 = vld [vmem:[%s2 + $0x110] sm:$0xff]
        %v354 = vld [vmem:[%s2 + $0x118] sm:$0xff]
        %v355 = vld [vmem:[%s2 + $0x120] sm:$0xff]
        %v356 = vld [vmem:[%s2 + $0x128] sm:$0xff]
        %v357 = vld [vmem:[%s2 + $0x130] sm:$0xff]
        %v358 = vld [vmem:[%s2 + $0x138] sm:$0xff]
        %v359 = vld [vmem:[%s2 + $0x140] sm:$0xff]
        %v360 = vld [vmem:[%s2 + $0x148] sm:$0xff]
        %v361 = vld [vmem:[%s2 + $0x150] sm:$0xff]
        %v362 = vld [vmem:[%s2 + $0x158] sm:$0xff]
        %v363 = vld [vmem:[%s2 + $0x160] sm:$0xff]
        %v364 = vld [vmem:[%s2 + $0x168] sm:$0xff]
        %v365 = vld [vmem:[%s2 + $0x170] sm:$0xff]
        %v366 = vld [vmem:[%s2 + $0x178] sm:$0xff]
        %v367 = vld [vmem:[%s2 + $0x180] sm:$0xff]
        %v368 = vld [vmem:[%s2 + $0x188] sm:$0xff]
        %v369 = vld [vmem:[%s2 + $0x190] sm:$0xff]
        %v370 = vld [vmem:[%s2 + $0x198] sm:$0xff]
        %v371 = vld [vmem:[%s2 + $0x1a0] sm:$0xff]
        %v372 = vld [vmem:[%s2 + $0x1a8] sm:$0xff]
        %v373 = vld [vmem:[%s2 + $0x1b0] sm:$0xff]
        %v374 = vld [vmem:[%s2 + $0x1b8] sm:$0xff]
        %v375 = vld [vmem:[%s2 + $0x1c0] sm:$0xff]
        %v376 = vld [vmem:[%s2 + $0x1c8] sm:$0xff]
        %v377 = vld [vmem:[%s2 + $0x1d0] sm:$0xff]
        %v378 = vld [vmem:[%s2 + $0x1d8] sm:$0xff]
        %v379 = vld [vmem:[%s2 + $0x1e0] sm:$0xff]
        %v380 = vld [vmem:[%s2 + $0x1e8] sm:$0xff]
        %v381 = vld [vmem:[%s2 + $0x1f0] sm:$0xff]
        %v382 = vld [vmem:[%s2 + $0x1f8] sm:$0xff]
        %v383 = vld [vmem:[%s2 + $0x200] sm:$0xff]
        %v384 = vld [vmem:[%s2 + $0x208] sm:$0xff]
        %v385 = vld [vmem:[%s2 + $0x210] sm:$0xff]
        %v386 = vld [vmem:[%s2 + $0x218] sm:$0xff]
        %v387 = vld [vmem:[%s2 + $0x220] sm:$0xff]
        %v388 = vld [vmem:[%s2 + $0x228] sm:$0xff]
        %v389 = vld [vmem:[%s2 + $0x230] sm:$0xff]
        %v390 = vld [vmem:[%s2 + $0x238] sm:$0xff]
        %v391 = vld [vmem:[%s2 + $0x240] sm:$0xff]
        %v392 = vld [vmem:[%s2 + $0x248] sm:$0xff]
        %v393 = vld [vmem:[%s2 + $0x250] sm:$0xff]
        %v394 = vld [vmem:[%s2 + $0x258] sm:$0xff]
        %v395 = vld [vmem:[%s2 + $0x260] sm:$0xff]
        %v396 = vld [vmem:[%s2 + $0x268] sm:$0xff]
        %v397 = vld [vmem:[%s2 + $0x270] sm:$0xff]
        %v398 = vld [vmem:[%s2 + $0x278] sm:$0xff]
        %v399 = vld [vmem:[%s2 + $0x280] sm:$0xff]
        %v400 = vld [vmem:[%s2 + $0x288] sm:$0xff]
        %v401 = vld [vmem:[%s2 + $0x290] sm:$0xff]
        %v402 = vld [vmem:[%s2 + $0x298] sm:$0xff]
        %v403 = vld [vmem:[%s2 + $0x2a0] sm:$0xff]
        %v404 = vld [vmem:[%s2 + $0x2a8] sm:$0xff]
        %v405 = vld [vmem:[%s2 + $0x2b0] sm:$0xff]
        %v406 = vld [vmem:[%s2 + $0x2b8] sm:$0xff]
        %v407 = vld [vmem:[%s2 + $0x2c0] sm:$0xff]
        %v408 = vld [vmem:[%s2 + $0x2c8] sm:$0xff]
        %v409 = vld [vmem:[%s2 + $0x2d0] sm:$0xff]
        %v410 = vld [vmem:[%s2 + $0x2d8] sm:$0xff]
        %v411 = vld [vmem:[%s2 + $0x2e0] sm:$0xff]
        %v412 = vld [vmem:[%s2 + $0x2e8] sm:$0xff]
        %v413 = vld [vmem:[%s2 + $0x2f0] sm:$0xff]
        %v414 = vld [vmem:[%s2 + $0x2f8] sm:$0xff]
        %v415 = vld [vmem:[%s2 + $0x300] sm:$0xff]
        %v416 = vld [vmem:[%s2 + $0x308] sm:$0xff]
        %v417 = vld [vmem:[%s2 + $0x310] sm:$0xff]
        %v418 = vld [vmem:[%s2 + $0x318] sm:$0xff]
        %v419 = vld [vmem:[%s2 + $0x320] sm:$0xff]
        %v420 = vld [vmem:[%s2 + $0x328] sm:$0xff]
        %v421 = vld [vmem:[%s2 + $0x330] sm:$0xff]
        %v422 = vld [vmem:[%s2 + $0x338] sm:$0xff]
        %v423 = vld [vmem:[%s2 + $0x340] sm:$0xff]
        %v424 = vld [vmem:[%s2 + $0x348] sm:$0xff]
        %v425 = vld [vmem:[%s2 + $0x350] sm:$0xff]
        %v426 = vld [vmem:[%s2 + $0x358] sm:$0xff]
        %v427 = vld [vmem:[%s2 + $0x360] sm:$0xff]
        %v428 = vld [vmem:[%s2 + $0x368] sm:$0xff]
        %v429 = vld [vmem:[%s2 + $0x370] sm:$0xff]
        %v430 = vld [vmem:[%s2 + $0x378] sm:$0xff]
        %v431 = vld [vmem:[%s2 + $0x380] sm:$0xff]
        %v432 = vld [vmem:[%s2 + $0x388] sm:$0xff]
        %v433 = vld [vmem:[%s2 + $0x390] sm:$0xff]
        %v434 = vld [vmem:[%s2 + $0x398] sm:$0xff]
        %v435 = vld [vmem:[%s2 + $0x3a0] sm:$0xff]
        %v436 = vld [vmem:[%s2 + $0x3a8] sm:$0xff]
        %v437 = vld [vmem:[%s2 + $0x3b0] sm:$0xff]
        %v438 = vld [vmem:[%s2 + $0x3b8] sm:$0xff]
        %v439 = vld [vmem:[%s2 + $0x3c0] sm:$0xff]
        %v440 = vld [vmem:[%s2 + $0x3c8] sm:$0xff]
        %v441 = vld [vmem:[%s2 + $0x3d0] sm:$0xff]
        %v442 = vld [vmem:[%s2 + $0x3d8] sm:$0xff]
        %v443 = vld [vmem:[%s2 + $0x3e0] sm:$0xff]
        %v444 = vld [vmem:[%s2 + $0x3e8] sm:$0xff]
        %v445 = vld [vmem:[%s2 + $0x3f0] sm:$0xff]
        %v446 = vld [vmem:[%s2 + $0x3f8] sm:$0xff]
        %v447 = vld [vmem:[%s2 + $0x400] sm:$0xff]
        %v448 = vld [vmem:[%s2 + $0x408] sm:$0xff]
        %v449 = vld [vmem:[%s2 + $0x410] sm:$0xff]
        %v450 = vld [vmem:[%s2 + $0x418] sm:$0xff]
        %v451 = vld [vmem:[%s2 + $0x420] sm:$0xff]
        %v452 = vld [vmem:[%s2 + $0x428] sm:$0xff]
        %v453 = vld [vmem:[%s2 + $0x430] sm:$0xff]
        %v454 = vld [vmem:[%s2 + $0x438] sm:$0xff]
        %v455 = vld [vmem:[%s2 + $0x440] sm:$0xff]
        %v456 = vld [vmem:[%s2 + $0x448] sm:$0xff]
        %v457 = vld [vmem:[%s2 + $0x450] sm:$0xff]
        %v458 = vld [vmem:[%s2 + $0x458] sm:$0xff]
        %v459 = vld [vmem:[%s2 + $0x460] sm:$0xff]
        %v460 = vld [vmem:[%s2 + $0x468] sm:$0xff]
        %v461 = vld [vmem:[%s2 + $0x470] sm:$0xff]
        %v462 = vld [vmem:[%s2 + $0x478] sm:$0xff]
        %v463 = vld [vmem:[%s2 + $0x480] sm:$0xff]
        %v464 = vld [vmem:[%s2 + $0x488] sm:$0xff]
        %v465 = vld [vmem:[%s2 + $0x490] sm:$0xff]
        %v466 = vld [vmem:[%s2 + $0x498] sm:$0xff]
        %v467 = vld [vmem:[%s2 + $0x4a0] sm:$0xff]
        %v468 = vld [vmem:[%s2 + $0x4a8] sm:$0xff]
        %v469 = vld [vmem:[%s2 + $0x4b0] sm:$0xff]
        %v470 = vld [vmem:[%s2 + $0x4b8] sm:$0xff]
        %v471 = vld [vmem:[%s2 + $0x4c0] sm:$0xff]
        %v472 = vld [vmem:[%s2 + $0x4c8] sm:$0xff]
        %v473 = vld [vmem:[%s2 + $0x4d0] sm:$0xff]
        %v474 = vld [vmem:[%s2 + $0x4d8] sm:$0xff]
        %v475 = vld [vmem:[%s2 + $0x4e0] sm:$0xff]
        %v476 = vld [vmem:[%s2 + $0x4e8] sm:$0xff]
        %v477 = vld [vmem:[%s2 + $0x4f0] sm:$0xff]
        %v478 = vld [vmem:[%s2 + $0x4f8] sm:$0xff]
        %v479 = vld [vmem:[%s2 + $0x500] sm:$0xff]
        %v480 = vld [vmem:[%s2 + $0x508] sm:$0xff]
        %v481 = vld [vmem:[%s2 + $0x510] sm:$0xff]
        %v482 = vld [vmem:[%s2 + $0x518] sm:$0xff]
        %v483 = vld [vmem:[%s2 + $0x520] sm:$0xff]
        %v484 = vld [vmem:[%s2 + $0x528] sm:$0xff]
        %v485 = vld [vmem:[%s2 + $0x530] sm:$0xff]
        %v486 = vld [vmem:[%s2 + $0x538] sm:$0xff]
        %v487 = vld [vmem:[%s2 + $0x540] sm:$0xff]
        %v488 = vld [vmem:[%s2 + $0x548] sm:$0xff]
        %v489 = vld [vmem:[%s2 + $0x550] sm:$0xff]
        %v490 = vld [vmem:[%s2 + $0x558] sm:$0xff]
        %v491 = vld [vmem:[%s2 + $0x560] sm:$0xff]
        %v492 = vld [vmem:[%s2 + $0x568] sm:$0xff]
        %v493 = vld [vmem:[%s2 + $0x570] sm:$0xff]
        %v494 = vld [vmem:[%s2 + $0x578] sm:$0xff]
        %v495 = vld [vmem:[%s2 + $0x580] sm:$0xff]
        %v496 = vld [vmem:[%s2 + $0x588] sm:$0xff]
        %v497 = vld [vmem:[%s2 + $0x590] sm:$0xff]
        %v498 = vld [vmem:[%s2 + $0x598] sm:$0xff]
        %v499 = vld [vmem:[%s2 + $0x5a0] sm:$0xff]
        %v500 = vld [vmem:[%s2 + $0x5a8] sm:$0xff]
        %v501 = vld [vmem:[%s2 + $0x5b0] sm:$0xff]
        %v502 = vld [vmem:[%s2 + $0x5b8] sm:$0xff]
        %v503 = vld [vmem:[%s2 + $0x5c0] sm:$0xff]
        %v504 = vld [vmem:[%s2 + $0x5c8] sm:$0xff]
        %v505 = vld [vmem:[%s2 + $0x5d0] sm:$0xff]
        %v506 = vld [vmem:[%s2 + $0x5d8] sm:$0xff]
        %v507 = vld [vmem:[%s2 + $0x5e0] sm:$0xff]
        %v508 = vld [vmem:[%s2 + $0x5e8] sm:$0xff]
        %v509 = vld [vmem:[%s2 + $0x5f0] sm:$0xff]
        %v510 = vld [vmem:[%s2 + $0x5f8] sm:$0xff]
        %v511 = vld [vmem:[%s2 + $0x600] sm:$0xff]
        %v512 = vld [vmem:[%s2 + $0x608] sm:$0xff]
        %v513 = vld [vmem:[%s2 + $0x610] sm:$0xff]
        %v514 = vld [vmem:[%s2 + $0x618] sm:$0xff]
        %v515 = vld [vmem:[%s2 + $0x620] sm:$0xff]
        %v516 = vld [vmem:[%s2 + $0x628] sm:$0xff]
        %v517 = vld [vmem:[%s2 + $0x630] sm:$0xff]
        %v518 = vld [vmem:[%s2 + $0x638] sm:$0xff]
        %v519 = vld [vmem:[%s2 + $0x640] sm:$0xff]
        %v520 = vld [vmem:[%s2 + $0x648] sm:$0xff]
        %v521 = vld [vmem:[%s2 + $0x650] sm:$0xff]
        %v522 = vld [vmem:[%s2 + $0x658] sm:$0xff]
        %v523 = vld [vmem:[%s2 + $0x660] sm:$0xff]
        %v524 = vld [vmem:[%s2 + $0x668] sm:$0xff]
        %v525 = vld [vmem:[%s2 + $0x670] sm:$0xff]
        %v526 = vld [vmem:[%s2 + $0x678] sm:$0xff]
        %v527 = vld [vmem:[%s2 + $0x680] sm:$0xff]
        %v528 = vld [vmem:[%s2 + $0x688] sm:$0xff]
        %v529 = vld [vmem:[%s2 + $0x690] sm:$0xff]
        %v530 = vld [vmem:[%s2 + $0x698] sm:$0xff]
        %v531 = vld [vmem:[%s2 + $0x6a0] sm:$0xff]
        %v532 = vld [vmem:[%s2 + $0x6a8] sm:$0xff]
        %v533 = vld [vmem:[%s2 + $0x6b0] sm:$0xff]
        %v534 = vld [vmem:[%s2 + $0x6b8] sm:$0xff]
        %v535 = vld [vmem:[%s2 + $0x6c0] sm:$0xff]
        %v536 = vld [vmem:[%s2 + $0x6c8] sm:$0xff]
        %v537 = vld [vmem:[%s2 + $0x6d0] sm:$0xff]
        %v538 = vld [vmem:[%s2 + $0x6d8] sm:$0xff]
        %v539 = vld [vmem:[%s2 + $0x6e0] sm:$0xff]
        %v540 = vld [vmem:[%s2 + $0x6e8] sm:$0xff]
        %v541 = vld [vmem:[%s2 + $0x6f0] sm:$0xff]
        %v542 = vld [vmem:[%s2 + $0x6f8] sm:$0xff]
        %v543 = vld [vmem:[%s2 + $0x700] sm:$0xff]
        %v544 = vld [vmem:[%s2 + $0x708] sm:$0xff]
        %v545 = vld [vmem:[%s2 + $0x710] sm:$0xff]
        %v546 = vld [vmem:[%s2 + $0x718] sm:$0xff]
        %v547 = vld [vmem:[%s2 + $0x720] sm:$0xff]
        %v548 = vld [vmem:[%s2 + $0x728] sm:$0xff]
        %v549 = vld [vmem:[%s2 + $0x730] sm:$0xff]
        %v550 = vld [vmem:[%s2 + $0x738] sm:$0xff]
        %v551 = vld [vmem:[%s2 + $0x740] sm:$0xff]
        %v552 = vld [vmem:[%s2 + $0x748] sm:$0xff]
        %v553 = vld [vmem:[%s2 + $0x750] sm:$0xff]
        %v554 = vld [vmem:[%s2 + $0x758] sm:$0xff]
        %v555 = vld [vmem:[%s2 + $0x760] sm:$0xff]
        %v556 = vld [vmem:[%s2 + $0x768] sm:$0xff]
        %v557 = vld [vmem:[%s2 + $0x770] sm:$0xff]
        %v558 = vld [vmem:[%s2 + $0x778] sm:$0xff]
        %v559 = vld [vmem:[%s2 + $0x780] sm:$0xff]
        %v560 = vld [vmem:[%s2 + $0x788] sm:$0xff]
        %v561 = vld [vmem:[%s2 + $0x790] sm:$0xff]
        %v562 = vld [vmem:[%s2 + $0x798] sm:$0xff]
        %v563 = vld [vmem:[%s2 + $0x7a0] sm:$0xff]
        %v564 = vld [vmem:[%s2 + $0x7a8] sm:$0xff]
        %v565 = vld [vmem:[%s2 + $0x7b0] sm:$0xff]
        %v566 = vld [vmem:[%s2 + $0x7b8] sm:$0xff]
        %v567 = vld [vmem:[%s2 + $0x7c0] sm:$0xff]
        %v568 = vld [vmem:[%s2 + $0x7c8] sm:$0xff]
        %v569 = vld [vmem:[%s2 + $0x7d0] sm:$0xff]
        %v570 = vld [vmem:[%s2 + $0x7d8] sm:$0xff]
        %v571 = vld [vmem:[%s2 + $0x7e0] sm:$0xff]
        %v572 = vld [vmem:[%s2 + $0x7e8] sm:$0xff]
        %v573 = vld [vmem:[%s2 + $0x7f0] sm:$0xff]
        %v574 = vld [vmem:[%s2 + $0x7f8] sm:$0xff]
        %v575 = vld [vmem:[%s2 + $0x800] sm:$0xff]
        %v576 = vld [vmem:[%s2 + $0x808] sm:$0xff]
        %v577 = vld [vmem:[%s2 + $0x810] sm:$0xff]
        %v578 = vld [vmem:[%s2 + $0x818] sm:$0xff]
        %v579 = vld [vmem:[%s2 + $0x820] sm:$0xff]
        %v580 = vld [vmem:[%s2 + $0x828] sm:$0xff]
        %v581 = vld [vmem:[%s2 + $0x830] sm:$0xff]
        %v582 = vld [vmem:[%s2 + $0x838] sm:$0xff]
        %v583 = vld [vmem:[%s2 + $0x840] sm:$0xff]
        %v584 = vld [vmem:[%s2 + $0x848] sm:$0xff]
        %v585 = vld [vmem:[%s2 + $0x850] sm:$0xff]
        %v586 = vld [vmem:[%s2 + $0x858] sm:$0xff]
        %v587 = vld [vmem:[%s2 + $0x860] sm:$0xff]
        %v588 = vld [vmem:[%s2 + $0x868] sm:$0xff]
        %v589 = vld [vmem:[%s2 + $0x870] sm:$0xff]
        %v590 = vld [vmem:[%s2 + $0x878] sm:$0xff]
        %v591 = vld [vmem:[%s2 + $0x880] sm:$0xff]
        %v592 = vld [vmem:[%s2 + $0x888] sm:$0xff]
        %v593 = vld [vmem:[%s2 + $0x890] sm:$0xff]
        %v594 = vld [vmem:[%s2 + $0x898] sm:$0xff]
        %v595 = vld [vmem:[%s2 + $0x8a0] sm:$0xff]
        %v596 = vld [vmem:[%s2 + $0x8a8] sm:$0xff]
        %v597 = vld [vmem:[%s2 + $0x8b0] sm:$0xff]
        %v598 = vld [vmem:[%s2 + $0x8b8] sm:$0xff]
        %v599 = vld [vmem:[%s2 + $0x8c0] sm:$0xff]
        %v600 = vld [vmem:[%s2 + $0x8c8] sm:$0xff]
        %v601 = vld [vmem:[%s2 + $0x8d0] sm:$0xff]
        %v602 = vld [vmem:[%s2 + $0x8d8] sm:$0xff]
        %v603 = vld [vmem:[%s2 + $0x8e0] sm:$0xff]
        %v604 = vld [vmem:[%s2 + $0x8e8] sm:$0xff]
        %v605 = vld [vmem:[%s2 + $0x8f0] sm:$0xff]
        %v606 = vld [vmem:[%s2 + $0x8f8] sm:$0xff]
        %v607 = vld [vmem:[%s2 + $0x900] sm:$0xff]
        %v608 = vld [vmem:[%s2 + $0x908] sm:$0xff]
        %v609 = vld [vmem:[%s2 + $0x910] sm:$0xff]
        %v610 = vld [vmem:[%s2 + $0x918] sm:$0xff]
        %v611 = vld [vmem:[%s2 + $0x920] sm:$0xff]
        %v612 = vld [vmem:[%s2 + $0x928] sm:$0xff]
        %v613 = vld [vmem:[%s2 + $0x930] sm:$0xff]
        %v614 = vld [vmem:[%s2 + $0x938] sm:$0xff]
        %v615 = vld [vmem:[%s2 + $0x940] sm:$0xff]
        %v616 = vld [vmem:[%s2 + $0x948] sm:$0xff]
        %v617 = vld [vmem:[%s2 + $0x950] sm:$0xff]
        %v618 = vld [vmem:[%s2 + $0x958] sm:$0xff]
        %v619 = vld [vmem:[%s2 + $0x960] sm:$0xff]
        %v620 = vld [vmem:[%s2 + $0x968] sm:$0xff]
        %v621 = vld [vmem:[%s2 + $0x970] sm:$0xff]
        %v622 = vld [vmem:[%s2 + $0x978] sm:$0xff]
        %v623 = vld [vmem:[%s2 + $0x980] sm:$0xff]
        %v624 = vld [vmem:[%s2 + $0x988] sm:$0xff]
        %v625 = vld [vmem:[%s2 + $0x990] sm:$0xff]
        %v626 = vld [vmem:[%s2 + $0x998] sm:$0xff]
        %v627 = vld [vmem:[%s2 + $0x9a0] sm:$0xff]
        %v628 = vld [vmem:[%s2 + $0x9a8] sm:$0xff]
        %v629 = vld [vmem:[%s2 + $0x9b0] sm:$0xff]
        %v630 = vld [vmem:[%s2 + $0x9b8] sm:$0xff]
        %v631 = vld [vmem:[%s2 + $0x9c0] sm:$0xff]
        %v632 = vld [vmem:[%s2 + $0x9c8] sm:$0xff]
        %v633 = vld [vmem:[%s2 + $0x9d0] sm:$0xff]
        %v634 = vld [vmem:[%s2 + $0x9d8] sm:$0xff]
        %v635 = vld [vmem:[%s2 + $0x9e0] sm:$0xff]
        %v636 = vld [vmem:[%s2 + $0x9e8] sm:$0xff]
        %v637 = vld [vmem:[%s2 + $0x9f0] sm:$0xff]
        %v638 = vld [vmem:[%s2 + $0x9f8] sm:$0xff]
        %v639 = vld [vmem:[%s296] sm:$0xff]
        %v641 = vlaneseq
        %v642 = vshrl.u32 %v641, 7
        %v643 = vsub.s32 0, %v642
        %v644 = vrot.slane %v639, %v643
        %v645 = vlaneseq
        %v646 = vshrl.u32 %v645, 7
        %v647 = vsub.s32 1, %v646
        %v648 = vrot.slane %v639, %v647
        %v649 = vlaneseq
        %v650 = vshrl.u32 %v649, 7
        %v651 = vsub.s32 2, %v650
        %v652 = vrot.slane %v639, %v651
        %v653 = vlaneseq
        %v654 = vshrl.u32 %v653, 7
        %v655 = vsub.s32 3, %v654
        %v656 = vrot.slane %v639, %v655
        %v657 = vlaneseq
        %v658 = vshrl.u32 %v657, 7
        %v659 = vsub.s32 4, %v658
        %v660 = vrot.slane %v639, %v659
        %v661 = vlaneseq
        %v662 = vshrl.u32 %v661, 7
        %v663 = vsub.s32 5, %v662
        %v664 = vrot.slane %v639, %v663
        %v665 = vlaneseq
        %v666 = vshrl.u32 %v665, 7
        %v667 = vsub.s32 6, %v666
        %v668 = vrot.slane %v639, %v667
        %v669 = vlaneseq
        %v670 = vshrl.u32 %v669, 7
        %v671 = vsub.s32 7, %v670
        %v672 = vrot.slane %v639, %v671
        %v684 = vunpack.c.l.b16 %v316
        %v685 = vunpack.c.h.b16 %v316
        %v686 = vunpack.c.l.b16 %v317
        %v687 = vunpack.c.h.b16 %v317
        %v688 = vunpack.c.l.b16 %v318
        %v689 = vpack.c.b16 %v684, %v684
        %v690 = vpack.c.b16 %v685, %v685
        %v691 = vpack.c.b16 %v686, %v686
        %v692 = vpack.c.b16 %v687, %v687
        %v693 = vpack.c.b16 %v688, %v688
        %v1019 = vunpack.c.l.b16 %v319
        %v1020 = vunpack.c.h.b16 %v319
        %v1021 = vunpack.c.l.b16 %v320
        %v1022 = vunpack.c.h.b16 %v320
        %v1023 = vunpack.c.l.b16 %v321
        %v1024 = vunpack.c.h.b16 %v321
        %v1025 = vunpack.c.l.b16 %v322
        %v1026 = vunpack.c.h.b16 %v322
        %v1027 = vunpack.c.l.b16 %v323
        %v1028 = vunpack.c.h.b16 %v323
        %v1029 = vunpack.c.l.b16 %v324
        %v1030 = vunpack.c.h.b16 %v324
        %v1031 = vunpack.c.l.b16 %v325
        %v1032 = vunpack.c.h.b16 %v325
        %v1033 = vunpack.c.l.b16 %v326
        %v1034 = vunpack.c.h.b16 %v326
        %v1035 = vunpack.c.l.b16 %v327
        %v1036 = vunpack.c.h.b16 %v327
        %v1037 = vunpack.c.l.b16 %v328
        %v1038 = vunpack.c.h.b16 %v328
        %v1039 = vunpack.c.l.b16 %v329
        %v1040 = vunpack.c.h.b16 %v329
        %v1041 = vunpack.c.l.b16 %v330
        %v1042 = vunpack.c.h.b16 %v330
        %v1043 = vunpack.c.l.b16 %v331
        %v1044 = vunpack.c.h.b16 %v331
        %v1045 = vunpack.c.l.b16 %v332
        %v1046 = vunpack.c.h.b16 %v332
        %v1047 = vunpack.c.l.b16 %v333
        %v1048 = vunpack.c.h.b16 %v333
        %v1049 = vunpack.c.l.b16 %v334
        %v1050 = vunpack.c.h.b16 %v334
        %v1051 = vunpack.c.l.b16 %v335
        %v1052 = vunpack.c.h.b16 %v335
        %v1053 = vunpack.c.l.b16 %v336
        %v1054 = vunpack.c.h.b16 %v336
        %v1055 = vunpack.c.l.b16 %v337
        %v1056 = vunpack.c.h.b16 %v337
        %v1057 = vunpack.c.l.b16 %v338
        %v1058 = vunpack.c.h.b16 %v338
        %v1059 = vunpack.c.l.b16 %v339
        %v1060 = vunpack.c.h.b16 %v339
        %v1061 = vunpack.c.l.b16 %v340
        %v1062 = vunpack.c.h.b16 %v340
        %v1063 = vunpack.c.l.b16 %v341
        %v1064 = vunpack.c.h.b16 %v341
        %v1065 = vunpack.c.l.b16 %v342
        %v1066 = vunpack.c.h.b16 %v342
        %v1067 = vunpack.c.l.b16 %v343
        %v1068 = vunpack.c.h.b16 %v343
        %v1069 = vunpack.c.l.b16 %v344
        %v1070 = vunpack.c.h.b16 %v344
        %v1071 = vunpack.c.l.b16 %v345
        %v1072 = vunpack.c.h.b16 %v345
        %v1073 = vunpack.c.l.b16 %v346
        %v1074 = vunpack.c.h.b16 %v346
        %v1075 = vunpack.c.l.b16 %v347
        %v1076 = vunpack.c.h.b16 %v347
        %v1077 = vunpack.c.l.b16 %v348
        %v1078 = vunpack.c.h.b16 %v348
        %v1079 = vunpack.c.l.b16 %v349
        %v1080 = vunpack.c.h.b16 %v349
        %v1081 = vunpack.c.l.b16 %v350
        %v1082 = vunpack.c.h.b16 %v350
        %v1083 = vunpack.c.l.b16 %v351
        %v1084 = vunpack.c.h.b16 %v351
        %v1085 = vunpack.c.l.b16 %v352
        %v1086 = vunpack.c.h.b16 %v352
        %v1087 = vunpack.c.l.b16 %v353
        %v1088 = vunpack.c.h.b16 %v353
        %v1089 = vunpack.c.l.b16 %v354
        %v1090 = vunpack.c.h.b16 %v354
        %v1091 = vunpack.c.l.b16 %v355
        %v1092 = vunpack.c.h.b16 %v355
        %v1093 = vunpack.c.l.b16 %v356
        %v1094 = vunpack.c.h.b16 %v356
        %v1095 = vunpack.c.l.b16 %v357
        %v1096 = vunpack.c.h.b16 %v357
        %v1097 = vunpack.c.l.b16 %v358
        %v1098 = vunpack.c.h.b16 %v358
        %v1099 = vunpack.c.l.b16 %v359
        %v1100 = vunpack.c.h.b16 %v359
        %v1101 = vunpack.c.l.b16 %v360
        %v1102 = vunpack.c.h.b16 %v360
        %v1103 = vunpack.c.l.b16 %v361
        %v1104 = vunpack.c.h.b16 %v361
        %v1105 = vunpack.c.l.b16 %v362
        %v1106 = vunpack.c.h.b16 %v362
        %v1107 = vunpack.c.l.b16 %v363
        %v1108 = vunpack.c.h.b16 %v363
        %v1109 = vunpack.c.l.b16 %v364
        %v1110 = vunpack.c.h.b16 %v364
        %v1111 = vunpack.c.l.b16 %v365
        %v1112 = vunpack.c.h.b16 %v365
        %v1113 = vunpack.c.l.b16 %v366
        %v1114 = vunpack.c.h.b16 %v366
        %v1115 = vunpack.c.l.b16 %v367
        %v1116 = vunpack.c.h.b16 %v367
        %v1117 = vunpack.c.l.b16 %v368
        %v1118 = vunpack.c.h.b16 %v368
        %v1119 = vunpack.c.l.b16 %v369
        %v1120 = vunpack.c.h.b16 %v369
        %v1121 = vunpack.c.l.b16 %v370
        %v1122 = vunpack.c.h.b16 %v370
        %v1123 = vunpack.c.l.b16 %v371
        %v1124 = vunpack.c.h.b16 %v371
        %v1125 = vunpack.c.l.b16 %v372
        %v1126 = vunpack.c.h.b16 %v372
        %v1127 = vunpack.c.l.b16 %v373
        %v1128 = vunpack.c.h.b16 %v373
        %v1129 = vunpack.c.l.b16 %v374
        %v1130 = vunpack.c.h.b16 %v374
        %v1131 = vunpack.c.l.b16 %v375
        %v1132 = vunpack.c.h.b16 %v375
        %v1133 = vunpack.c.l.b16 %v376
        %v1134 = vunpack.c.h.b16 %v376
        %v1135 = vunpack.c.l.b16 %v377
        %v1136 = vunpack.c.h.b16 %v377
        %v1137 = vunpack.c.l.b16 %v378
        %v1138 = vunpack.c.h.b16 %v378
        %v1139 = vunpack.c.l.b16 %v379
        %v1140 = vunpack.c.h.b16 %v379
        %v1141 = vunpack.c.l.b16 %v380
        %v1142 = vunpack.c.h.b16 %v380
        %v1143 = vunpack.c.l.b16 %v381
        %v1144 = vunpack.c.h.b16 %v381
        %v1145 = vunpack.c.l.b16 %v382
        %v1146 = vunpack.c.h.b16 %v382
        %v1147 = vunpack.c.l.b16 %v383
        %v1148 = vunpack.c.h.b16 %v383
        %v1149 = vunpack.c.l.b16 %v384
        %v1150 = vunpack.c.h.b16 %v384
        %v1151 = vunpack.c.l.b16 %v385
        %v1152 = vunpack.c.h.b16 %v385
        %v1153 = vunpack.c.l.b16 %v386
        %v1154 = vunpack.c.h.b16 %v386
        %v1155 = vunpack.c.l.b16 %v387
        %v1156 = vunpack.c.h.b16 %v387
        %v1157 = vunpack.c.l.b16 %v388
        %v1158 = vunpack.c.h.b16 %v388
        %v1159 = vunpack.c.l.b16 %v389
        %v1160 = vunpack.c.h.b16 %v389
        %v1161 = vunpack.c.l.b16 %v390
        %v1162 = vunpack.c.h.b16 %v390
        %v1163 = vunpack.c.l.b16 %v391
        %v1164 = vunpack.c.h.b16 %v391
        %v1165 = vunpack.c.l.b16 %v392
        %v1166 = vunpack.c.h.b16 %v392
        %v1167 = vunpack.c.l.b16 %v393
        %v1168 = vunpack.c.h.b16 %v393
        %v1169 = vunpack.c.l.b16 %v394
        %v1170 = vunpack.c.h.b16 %v394
        %v1171 = vunpack.c.l.b16 %v395
        %v1172 = vunpack.c.h.b16 %v395
        %v1173 = vunpack.c.l.b16 %v396
        %v1174 = vunpack.c.h.b16 %v396
        %v1175 = vunpack.c.l.b16 %v397
        %v1176 = vunpack.c.h.b16 %v397
        %v1177 = vunpack.c.l.b16 %v398
        %v1178 = vunpack.c.h.b16 %v398
        %v1179 = vunpack.c.l.b16 %v399
        %v1180 = vunpack.c.h.b16 %v399
        %v1181 = vunpack.c.l.b16 %v400
        %v1182 = vunpack.c.h.b16 %v400
        %v1183 = vunpack.c.l.b16 %v401
        %v1184 = vunpack.c.h.b16 %v401
        %v1185 = vunpack.c.l.b16 %v402
        %v1186 = vunpack.c.h.b16 %v402
        %v1187 = vunpack.c.l.b16 %v403
        %v1188 = vunpack.c.h.b16 %v403
        %v1189 = vunpack.c.l.b16 %v404
        %v1190 = vunpack.c.h.b16 %v404
        %v1191 = vunpack.c.l.b16 %v405
        %v1192 = vunpack.c.h.b16 %v405
        %v1193 = vunpack.c.l.b16 %v406
        %v1194 = vunpack.c.h.b16 %v406
        %v1195 = vunpack.c.l.b16 %v407
        %v1196 = vunpack.c.h.b16 %v407
        %v1197 = vunpack.c.l.b16 %v408
        %v1198 = vunpack.c.h.b16 %v408
        %v1199 = vunpack.c.l.b16 %v409
        %v1200 = vunpack.c.h.b16 %v409
        %v1201 = vunpack.c.l.b16 %v410
        %v1202 = vunpack.c.h.b16 %v410
        %v1203 = vunpack.c.l.b16 %v411
        %v1204 = vunpack.c.h.b16 %v411
        %v1205 = vunpack.c.l.b16 %v412
        %v1206 = vunpack.c.h.b16 %v412
        %v1207 = vunpack.c.l.b16 %v413
        %v1208 = vunpack.c.h.b16 %v413
        %v1209 = vunpack.c.l.b16 %v414
        %v1210 = vunpack.c.h.b16 %v414
        %v1211 = vunpack.c.l.b16 %v415
        %v1212 = vunpack.c.h.b16 %v415
        %v1213 = vunpack.c.l.b16 %v416
        %v1214 = vunpack.c.h.b16 %v416
        %v1215 = vunpack.c.l.b16 %v417
        %v1216 = vunpack.c.h.b16 %v417
        %v1217 = vunpack.c.l.b16 %v418
        %v1218 = vunpack.c.h.b16 %v418
        %v1219 = vunpack.c.l.b16 %v419
        %v1220 = vunpack.c.h.b16 %v419
        %v1221 = vunpack.c.l.b16 %v420
        %v1222 = vunpack.c.h.b16 %v420
        %v1223 = vunpack.c.l.b16 %v421
        %v1224 = vunpack.c.h.b16 %v421
        %v1225 = vunpack.c.l.b16 %v422
        %v1226 = vunpack.c.h.b16 %v422
        %v1227 = vunpack.c.l.b16 %v423
        %v1228 = vunpack.c.h.b16 %v423
        %v1229 = vunpack.c.l.b16 %v424
        %v1230 = vunpack.c.h.b16 %v424
        %v1231 = vunpack.c.l.b16 %v425
        %v1232 = vunpack.c.h.b16 %v425
        %v1233 = vunpack.c.l.b16 %v426
        %v1234 = vunpack.c.h.b16 %v426
        %v1235 = vunpack.c.l.b16 %v427
        %v1236 = vunpack.c.h.b16 %v427
        %v1237 = vunpack.c.l.b16 %v428
        %v1238 = vunpack.c.h.b16 %v428
        %v1239 = vunpack.c.l.b16 %v429
        %v1240 = vunpack.c.h.b16 %v429
        %v1241 = vunpack.c.l.b16 %v430
        %v1242 = vunpack.c.h.b16 %v430
        %v1243 = vunpack.c.l.b16 %v431
        %v1244 = vunpack.c.h.b16 %v431
        %v1245 = vunpack.c.l.b16 %v432
        %v1246 = vunpack.c.h.b16 %v432
        %v1247 = vunpack.c.l.b16 %v433
        %v1248 = vunpack.c.h.b16 %v433
        %v1249 = vunpack.c.l.b16 %v434
        %v1250 = vunpack.c.h.b16 %v434
        %v1251 = vunpack.c.l.b16 %v435
        %v1252 = vunpack.c.h.b16 %v435
        %v1253 = vunpack.c.l.b16 %v436
        %v1254 = vunpack.c.h.b16 %v436
        %v1255 = vunpack.c.l.b16 %v437
        %v1256 = vunpack.c.h.b16 %v437
        %v1257 = vunpack.c.l.b16 %v438
        %v1258 = vunpack.c.h.b16 %v438
        %v1259 = vunpack.c.l.b16 %v439
        %v1260 = vunpack.c.h.b16 %v439
        %v1261 = vunpack.c.l.b16 %v440
        %v1262 = vunpack.c.h.b16 %v440
        %v1263 = vunpack.c.l.b16 %v441
        %v1264 = vunpack.c.h.b16 %v441
        %v1265 = vunpack.c.l.b16 %v442
        %v1266 = vunpack.c.h.b16 %v442
        %v1267 = vunpack.c.l.b16 %v443
        %v1268 = vunpack.c.h.b16 %v443
        %v1269 = vunpack.c.l.b16 %v444
        %v1270 = vunpack.c.h.b16 %v444
        %v1271 = vunpack.c.l.b16 %v445
        %v1272 = vunpack.c.h.b16 %v445
        %v1273 = vunpack.c.l.b16 %v446
        %v1274 = vunpack.c.h.b16 %v446
        %v1275 = vunpack.c.l.b16 %v447
        %v1276 = vunpack.c.h.b16 %v447
        %v1277 = vunpack.c.l.b16 %v448
        %v1278 = vunpack.c.h.b16 %v448
        %v1279 = vunpack.c.l.b16 %v449
        %v1280 = vunpack.c.h.b16 %v449
        %v1281 = vunpack.c.l.b16 %v450
        %v1282 = vunpack.c.h.b16 %v450
        %v1283 = vunpack.c.l.b16 %v451
        %v1284 = vunpack.c.h.b16 %v451
        %v1285 = vunpack.c.l.b16 %v452
        %v1286 = vunpack.c.h.b16 %v452
        %v1287 = vunpack.c.l.b16 %v453
        %v1288 = vunpack.c.h.b16 %v453
        %v1289 = vunpack.c.l.b16 %v454
        %v1290 = vunpack.c.h.b16 %v454
        %v1291 = vunpack.c.l.b16 %v455
        %v1292 = vunpack.c.h.b16 %v455
        %v1293 = vunpack.c.l.b16 %v456
        %v1294 = vunpack.c.h.b16 %v456
        %v1295 = vunpack.c.l.b16 %v457
        %v1296 = vunpack.c.h.b16 %v457
        %v1297 = vunpack.c.l.b16 %v458
        %v1298 = vunpack.c.h.b16 %v458
        %v1299 = vunpack.c.l.b16 %v459
        %v1300 = vunpack.c.h.b16 %v459
        %v1301 = vunpack.c.l.b16 %v460
        %v1302 = vunpack.c.h.b16 %v460
        %v1303 = vunpack.c.l.b16 %v461
        %v1304 = vunpack.c.h.b16 %v461
        %v1305 = vunpack.c.l.b16 %v462
        %v1306 = vunpack.c.h.b16 %v462
        %v1307 = vunpack.c.l.b16 %v463
        %v1308 = vunpack.c.h.b16 %v463
        %v1309 = vunpack.c.l.b16 %v464
        %v1310 = vunpack.c.h.b16 %v464
        %v1311 = vunpack.c.l.b16 %v465
        %v1312 = vunpack.c.h.b16 %v465
        %v1313 = vunpack.c.l.b16 %v466
        %v1314 = vunpack.c.h.b16 %v466
        %v1315 = vunpack.c.l.b16 %v467
        %v1316 = vunpack.c.h.b16 %v467
        %v1317 = vunpack.c.l.b16 %v468
        %v1318 = vunpack.c.h.b16 %v468
        %v1319 = vunpack.c.l.b16 %v469
        %v1320 = vunpack.c.h.b16 %v469
        %v1321 = vunpack.c.l.b16 %v470
        %v1322 = vunpack.c.h.b16 %v470
        %v1323 = vunpack.c.l.b16 %v471
        %v1324 = vunpack.c.h.b16 %v471
        %v1325 = vunpack.c.l.b16 %v472
        %v1326 = vunpack.c.h.b16 %v472
        %v1327 = vunpack.c.l.b16 %v473
        %v1328 = vunpack.c.h.b16 %v473
        %v1329 = vunpack.c.l.b16 %v474
        %v1330 = vunpack.c.h.b16 %v474
        %v1331 = vunpack.c.l.b16 %v475
        %v1332 = vunpack.c.h.b16 %v475
        %v1333 = vunpack.c.l.b16 %v476
        %v1334 = vunpack.c.h.b16 %v476
        %v1335 = vunpack.c.l.b16 %v477
        %v1336 = vunpack.c.h.b16 %v477
        %v1337 = vunpack.c.l.b16 %v478
        %v1338 = vunpack.c.h.b16 %v478
        %v1339 = vunpack.c.l.b16 %v479
        %v1340 = vunpack.c.h.b16 %v479
        %v1341 = vunpack.c.l.b16 %v480
        %v1342 = vunpack.c.h.b16 %v480
        %v1343 = vunpack.c.l.b16 %v481
        %v1344 = vunpack.c.h.b16 %v481
        %v1345 = vunpack.c.l.b16 %v482
        %v1346 = vunpack.c.h.b16 %v482
        %v1347 = vunpack.c.l.b16 %v483
        %v1348 = vunpack.c.h.b16 %v483
        %v1349 = vunpack.c.l.b16 %v484
        %v1350 = vunpack.c.h.b16 %v484
        %v1351 = vunpack.c.l.b16 %v485
        %v1352 = vunpack.c.h.b16 %v485
        %v1353 = vunpack.c.l.b16 %v486
        %v1354 = vunpack.c.h.b16 %v486
        %v1355 = vunpack.c.l.b16 %v487
        %v1356 = vunpack.c.h.b16 %v487
        %v1357 = vunpack.c.l.b16 %v488
        %v1358 = vunpack.c.h.b16 %v488
        %v1359 = vunpack.c.l.b16 %v489
        %v1360 = vunpack.c.h.b16 %v489
        %v1361 = vunpack.c.l.b16 %v490
        %v1362 = vunpack.c.h.b16 %v490
        %v1363 = vunpack.c.l.b16 %v491
        %v1364 = vunpack.c.h.b16 %v491
        %v1365 = vunpack.c.l.b16 %v492
        %v1366 = vunpack.c.h.b16 %v492
        %v1367 = vunpack.c.l.b16 %v493
        %v1368 = vunpack.c.h.b16 %v493
        %v1369 = vunpack.c.l.b16 %v494
        %v1370 = vunpack.c.h.b16 %v494
        %v1371 = vunpack.c.l.b16 %v495
        %v1372 = vunpack.c.h.b16 %v495
        %v1373 = vunpack.c.l.b16 %v496
        %v1374 = vunpack.c.h.b16 %v496
        %v1375 = vunpack.c.l.b16 %v497
        %v1376 = vunpack.c.h.b16 %v497
        %v1377 = vunpack.c.l.b16 %v498
        %v1378 = vunpack.c.h.b16 %v498
        %v1379 = vunpack.c.l.b16 %v499
        %v1380 = vunpack.c.h.b16 %v499
        %v1381 = vunpack.c.l.b16 %v500
        %v1382 = vunpack.c.h.b16 %v500
        %v1383 = vunpack.c.l.b16 %v501
        %v1384 = vunpack.c.h.b16 %v501
        %v1385 = vunpack.c.l.b16 %v502
        %v1386 = vunpack.c.h.b16 %v502
        %v1387 = vunpack.c.l.b16 %v503
        %v1388 = vunpack.c.h.b16 %v503
        %v1389 = vunpack.c.l.b16 %v504
        %v1390 = vunpack.c.h.b16 %v504
        %v1391 = vunpack.c.l.b16 %v505
        %v1392 = vunpack.c.h.b16 %v505
        %v1393 = vunpack.c.l.b16 %v506
        %v1394 = vunpack.c.h.b16 %v506
        %v1395 = vunpack.c.l.b16 %v507
        %v1396 = vunpack.c.h.b16 %v507
        %v1397 = vunpack.c.l.b16 %v508
        %v1398 = vunpack.c.h.b16 %v508
        %v1399 = vunpack.c.l.b16 %v509
        %v1400 = vunpack.c.h.b16 %v509
        %v1401 = vunpack.c.l.b16 %v510
        %v1402 = vunpack.c.h.b16 %v510
        %v1403 = vunpack.c.l.b16 %v511
        %v1404 = vunpack.c.h.b16 %v511
        %v1405 = vunpack.c.l.b16 %v512
        %v1406 = vunpack.c.h.b16 %v512
        %v1407 = vunpack.c.l.b16 %v513
        %v1408 = vunpack.c.h.b16 %v513
        %v1409 = vunpack.c.l.b16 %v514
        %v1410 = vunpack.c.h.b16 %v514
        %v1411 = vunpack.c.l.b16 %v515
        %v1412 = vunpack.c.h.b16 %v515
        %v1413 = vunpack.c.l.b16 %v516
        %v1414 = vunpack.c.h.b16 %v516
        %v1415 = vunpack.c.l.b16 %v517
        %v1416 = vunpack.c.h.b16 %v517
        %v1417 = vunpack.c.l.b16 %v518
        %v1418 = vunpack.c.h.b16 %v518
        %v1419 = vunpack.c.l.b16 %v519
        %v1420 = vunpack.c.h.b16 %v519
        %v1421 = vunpack.c.l.b16 %v520
        %v1422 = vunpack.c.h.b16 %v520
        %v1423 = vunpack.c.l.b16 %v521
        %v1424 = vunpack.c.h.b16 %v521
        %v1425 = vunpack.c.l.b16 %v522
        %v1426 = vunpack.c.h.b16 %v522
        %v1427 = vunpack.c.l.b16 %v523
        %v1428 = vunpack.c.h.b16 %v523
        %v1429 = vunpack.c.l.b16 %v524
        %v1430 = vunpack.c.h.b16 %v524
        %v1431 = vunpack.c.l.b16 %v525
        %v1432 = vunpack.c.h.b16 %v525
        %v1433 = vunpack.c.l.b16 %v526
        %v1434 = vunpack.c.h.b16 %v526
        %v1435 = vunpack.c.l.b16 %v527
        %v1436 = vunpack.c.h.b16 %v527
        %v1437 = vunpack.c.l.b16 %v528
        %v1438 = vunpack.c.h.b16 %v528
        %v1439 = vunpack.c.l.b16 %v529
        %v1440 = vunpack.c.h.b16 %v529
        %v1441 = vunpack.c.l.b16 %v530
        %v1442 = vunpack.c.h.b16 %v530
        %v1443 = vunpack.c.l.b16 %v531
        %v1444 = vunpack.c.h.b16 %v531
        %v1445 = vunpack.c.l.b16 %v532
        %v1446 = vunpack.c.h.b16 %v532
        %v1447 = vunpack.c.l.b16 %v533
        %v1448 = vunpack.c.h.b16 %v533
        %v1449 = vunpack.c.l.b16 %v534
        %v1450 = vunpack.c.h.b16 %v534
        %v1451 = vunpack.c.l.b16 %v535
        %v1452 = vunpack.c.h.b16 %v535
        %v1453 = vunpack.c.l.b16 %v536
        %v1454 = vunpack.c.h.b16 %v536
        %v1455 = vunpack.c.l.b16 %v537
        %v1456 = vunpack.c.h.b16 %v537
        %v1457 = vunpack.c.l.b16 %v538
        %v1458 = vunpack.c.h.b16 %v538
        %v1459 = vunpack.c.l.b16 %v539
        %v1460 = vunpack.c.h.b16 %v539
        %v1461 = vunpack.c.l.b16 %v540
        %v1462 = vunpack.c.h.b16 %v540
        %v1463 = vunpack.c.l.b16 %v541
        %v1464 = vunpack.c.h.b16 %v541
        %v1465 = vunpack.c.l.b16 %v542
        %v1466 = vunpack.c.h.b16 %v542
        %v1467 = vunpack.c.l.b16 %v543
        %v1468 = vunpack.c.h.b16 %v543
        %v1469 = vunpack.c.l.b16 %v544
        %v1470 = vunpack.c.h.b16 %v544
        %v1471 = vunpack.c.l.b16 %v545
        %v1472 = vunpack.c.h.b16 %v545
        %v1473 = vunpack.c.l.b16 %v546
        %v1474 = vunpack.c.h.b16 %v546
        %v1475 = vunpack.c.l.b16 %v547
        %v1476 = vunpack.c.h.b16 %v547
        %v1477 = vunpack.c.l.b16 %v548
        %v1478 = vunpack.c.h.b16 %v548
        %v1479 = vunpack.c.l.b16 %v549
        %v1480 = vunpack.c.h.b16 %v549
        %v1481 = vunpack.c.l.b16 %v550
        %v1482 = vunpack.c.h.b16 %v550
        %v1483 = vunpack.c.l.b16 %v551
        %v1484 = vunpack.c.h.b16 %v551
        %v1485 = vunpack.c.l.b16 %v552
        %v1486 = vunpack.c.h.b16 %v552
        %v1487 = vunpack.c.l.b16 %v553
        %v1488 = vunpack.c.h.b16 %v553
        %v1489 = vunpack.c.l.b16 %v554
        %v1490 = vunpack.c.h.b16 %v554
        %v1491 = vunpack.c.l.b16 %v555
        %v1492 = vunpack.c.h.b16 %v555
        %v1493 = vunpack.c.l.b16 %v556
        %v1494 = vunpack.c.h.b16 %v556
        %v1495 = vunpack.c.l.b16 %v557
        %v1496 = vunpack.c.h.b16 %v557
        %v1497 = vunpack.c.l.b16 %v558
        %v1498 = vunpack.c.h.b16 %v558
        %v1499 = vunpack.c.l.b16 %v559
        %v1500 = vunpack.c.h.b16 %v559
        %v1501 = vunpack.c.l.b16 %v560
        %v1502 = vunpack.c.h.b16 %v560
        %v1503 = vunpack.c.l.b16 %v561
        %v1504 = vunpack.c.h.b16 %v561
        %v1505 = vunpack.c.l.b16 %v562
        %v1506 = vunpack.c.h.b16 %v562
        %v1507 = vunpack.c.l.b16 %v563
        %v1508 = vunpack.c.h.b16 %v563
        %v1509 = vunpack.c.l.b16 %v564
        %v1510 = vunpack.c.h.b16 %v564
        %v1511 = vunpack.c.l.b16 %v565
        %v1512 = vunpack.c.h.b16 %v565
        %v1513 = vunpack.c.l.b16 %v566
        %v1514 = vunpack.c.h.b16 %v566
        %v1515 = vunpack.c.l.b16 %v567
        %v1516 = vunpack.c.h.b16 %v567
        %v1517 = vunpack.c.l.b16 %v568
        %v1518 = vunpack.c.h.b16 %v568
        %v1519 = vunpack.c.l.b16 %v569
        %v1520 = vunpack.c.h.b16 %v569
        %v1521 = vunpack.c.l.b16 %v570
        %v1522 = vunpack.c.h.b16 %v570
        %v1523 = vunpack.c.l.b16 %v571
        %v1524 = vunpack.c.h.b16 %v571
        %v1525 = vunpack.c.l.b16 %v572
        %v1526 = vunpack.c.h.b16 %v572
        %v1527 = vunpack.c.l.b16 %v573
        %v1528 = vunpack.c.h.b16 %v573
        %v1529 = vunpack.c.l.b16 %v574
        %v1530 = vunpack.c.h.b16 %v574
        %v1531 = vunpack.c.l.b16 %v575
        %v1532 = vunpack.c.h.b16 %v575
        %v1533 = vunpack.c.l.b16 %v576
        %v1534 = vunpack.c.h.b16 %v576
        %v1535 = vunpack.c.l.b16 %v577
        %v1536 = vunpack.c.h.b16 %v577
        %v1537 = vunpack.c.l.b16 %v578
        %v1538 = vunpack.c.h.b16 %v578
        %v1539 = vunpack.c.l.b16 %v579
        %v1540 = vunpack.c.h.b16 %v579
        %v1541 = vunpack.c.l.b16 %v580
        %v1542 = vunpack.c.h.b16 %v580
        %v1543 = vunpack.c.l.b16 %v581
        %v1544 = vunpack.c.h.b16 %v581
        %v1545 = vunpack.c.l.b16 %v582
        %v1546 = vunpack.c.h.b16 %v582
        %v1547 = vunpack.c.l.b16 %v583
        %v1548 = vunpack.c.h.b16 %v583
        %v1549 = vunpack.c.l.b16 %v584
        %v1550 = vunpack.c.h.b16 %v584
        %v1551 = vunpack.c.l.b16 %v585
        %v1552 = vunpack.c.h.b16 %v585
        %v1553 = vunpack.c.l.b16 %v586
        %v1554 = vunpack.c.h.b16 %v586
        %v1555 = vunpack.c.l.b16 %v587
        %v1556 = vunpack.c.h.b16 %v587
        %v1557 = vunpack.c.l.b16 %v588
        %v1558 = vunpack.c.h.b16 %v588
        %v1559 = vunpack.c.l.b16 %v589
        %v1560 = vunpack.c.h.b16 %v589
        %v1561 = vunpack.c.l.b16 %v590
        %v1562 = vunpack.c.h.b16 %v590
        %v1563 = vunpack.c.l.b16 %v591
        %v1564 = vunpack.c.h.b16 %v591
        %v1565 = vunpack.c.l.b16 %v592
        %v1566 = vunpack.c.h.b16 %v592
        %v1567 = vunpack.c.l.b16 %v593
        %v1568 = vunpack.c.h.b16 %v593
        %v1569 = vunpack.c.l.b16 %v594
        %v1570 = vunpack.c.h.b16 %v594
        %v1571 = vunpack.c.l.b16 %v595
        %v1572 = vunpack.c.h.b16 %v595
        %v1573 = vunpack.c.l.b16 %v596
        %v1574 = vunpack.c.h.b16 %v596
        %v1575 = vunpack.c.l.b16 %v597
        %v1576 = vunpack.c.h.b16 %v597
        %v1577 = vunpack.c.l.b16 %v598
        %v1578 = vunpack.c.h.b16 %v598
        %v1579 = vunpack.c.l.b16 %v599
        %v1580 = vunpack.c.h.b16 %v599
        %v1581 = vunpack.c.l.b16 %v600
        %v1582 = vunpack.c.h.b16 %v600
        %v1583 = vunpack.c.l.b16 %v601
        %v1584 = vunpack.c.h.b16 %v601
        %v1585 = vunpack.c.l.b16 %v602
        %v1586 = vunpack.c.h.b16 %v602
        %v1587 = vunpack.c.l.b16 %v603
        %v1588 = vunpack.c.h.b16 %v603
        %v1589 = vunpack.c.l.b16 %v604
        %v1590 = vunpack.c.h.b16 %v604
        %v1591 = vunpack.c.l.b16 %v605
        %v1592 = vunpack.c.h.b16 %v605
        %v1593 = vunpack.c.l.b16 %v606
        %v1594 = vunpack.c.h.b16 %v606
        %v1595 = vunpack.c.l.b16 %v607
        %v1596 = vunpack.c.h.b16 %v607
        %v1597 = vunpack.c.l.b16 %v608
        %v1598 = vunpack.c.h.b16 %v608
        %v1599 = vunpack.c.l.b16 %v609
        %v1600 = vunpack.c.h.b16 %v609
        %v1601 = vunpack.c.l.b16 %v610
        %v1602 = vunpack.c.h.b16 %v610
        %v1603 = vunpack.c.l.b16 %v611
        %v1604 = vunpack.c.h.b16 %v611
        %v1605 = vunpack.c.l.b16 %v612
        %v1606 = vunpack.c.h.b16 %v612
        %v1607 = vunpack.c.l.b16 %v613
        %v1608 = vunpack.c.h.b16 %v613
        %v1609 = vunpack.c.l.b16 %v614
        %v1610 = vunpack.c.h.b16 %v614
        %v1611 = vunpack.c.l.b16 %v615
        %v1612 = vunpack.c.h.b16 %v615
        %v1613 = vunpack.c.l.b16 %v616
        %v1614 = vunpack.c.h.b16 %v616
        %v1615 = vunpack.c.l.b16 %v617
        %v1616 = vunpack.c.h.b16 %v617
        %v1617 = vunpack.c.l.b16 %v618
        %v1618 = vunpack.c.h.b16 %v618
        %v1619 = vunpack.c.l.b16 %v619
        %v1620 = vunpack.c.h.b16 %v619
        %v1621 = vunpack.c.l.b16 %v620
        %v1622 = vunpack.c.h.b16 %v620
        %v1623 = vunpack.c.l.b16 %v621
        %v1624 = vunpack.c.h.b16 %v621
        %v1625 = vunpack.c.l.b16 %v622
        %v1626 = vunpack.c.h.b16 %v622
        %v1627 = vunpack.c.l.b16 %v623
        %v1628 = vunpack.c.h.b16 %v623
        %v1629 = vunpack.c.l.b16 %v624
        %v1630 = vunpack.c.h.b16 %v624
        %v1631 = vunpack.c.l.b16 %v625
        %v1632 = vunpack.c.h.b16 %v625
        %v1633 = vunpack.c.l.b16 %v626
        %v1634 = vunpack.c.h.b16 %v626
        %v1635 = vunpack.c.l.b16 %v627
        %v1636 = vunpack.c.h.b16 %v627
        %v1637 = vunpack.c.l.b16 %v628
        %v1638 = vunpack.c.h.b16 %v628
        %v1639 = vunpack.c.l.b16 %v629
        %v1640 = vunpack.c.h.b16 %v629
        %v1641 = vunpack.c.l.b16 %v630
        %v1642 = vunpack.c.h.b16 %v630
        %v1643 = vunpack.c.l.b16 %v631
        %v1644 = vunpack.c.h.b16 %v631
        %v1645 = vunpack.c.l.b16 %v632
        %v1646 = vunpack.c.h.b16 %v632
        %v1647 = vunpack.c.l.b16 %v633
        %v1648 = vunpack.c.h.b16 %v633
        %v1649 = vunpack.c.l.b16 %v634
        %v1650 = vunpack.c.h.b16 %v634
        %v1651 = vunpack.c.l.b16 %v635
        %v1652 = vunpack.c.h.b16 %v635
        %v1653 = vunpack.c.l.b16 %v636
        %v1654 = vunpack.c.h.b16 %v636
        %v1655 = vunpack.c.l.b16 %v637
        %v1656 = vunpack.c.h.b16 %v637
        %v1657 = vunpack.c.l.b16 %v638
        %v1658 = vunpack.c.h.b16 %v638
        %v1659 = vpack.c.b16 %v1027, %v1019
        %v1660 = vpack.c.b16 %v1028, %v1020
        %v1661 = vpack.c.b16 %v1029, %v1021
        %v1662 = vpack.c.b16 %v1030, %v1022
        %v1663 = vpack.c.b16 %v1031, %v1023
        %v1664 = vpack.c.b16 %v1032, %v1024
        %v1665 = vpack.c.b16 %v1033, %v1025
        %v1666 = vpack.c.b16 %v1034, %v1026
        %v1667 = vpack.c.b16 %v1043, %v1035
        %v1668 = vpack.c.b16 %v1044, %v1036
        %v1669 = vpack.c.b16 %v1045, %v1037
        %v1670 = vpack.c.b16 %v1046, %v1038
        %v1671 = vpack.c.b16 %v1047, %v1039
        %v1672 = vpack.c.b16 %v1048, %v1040
        %v1673 = vpack.c.b16 %v1049, %v1041
        %v1674 = vpack.c.b16 %v1050, %v1042
        %v1675 = vpack.c.b16 %v1059, %v1051
        %v1676 = vpack.c.b16 %v1060, %v1052
        %v1677 = vpack.c.b16 %v1061, %v1053
        %v1678 = vpack.c.b16 %v1062, %v1054
        %v1679 = vpack.c.b16 %v1063, %v1055
        %v1680 = vpack.c.b16 %v1064, %v1056
        %v1681 = vpack.c.b16 %v1065, %v1057
        %v1682 = vpack.c.b16 %v1066, %v1058
        %v1683 = vpack.c.b16 %v1075, %v1067
        %v1684 = vpack.c.b16 %v1076, %v1068
        %v1685 = vpack.c.b16 %v1077, %v1069
        %v1686 = vpack.c.b16 %v1078, %v1070
        %v1687 = vpack.c.b16 %v1079, %v1071
        %v1688 = vpack.c.b16 %v1080, %v1072
        %v1689 = vpack.c.b16 %v1081, %v1073
        %v1690 = vpack.c.b16 %v1082, %v1074
        %v1691 = vpack.c.b16 %v1091, %v1083
        %v1692 = vpack.c.b16 %v1092, %v1084
        %v1693 = vpack.c.b16 %v1093, %v1085
        %v1694 = vpack.c.b16 %v1094, %v1086
        %v1695 = vpack.c.b16 %v1095, %v1087
        %v1696 = vpack.c.b16 %v1096, %v1088
        %v1697 = vpack.c.b16 %v1097, %v1089
        %v1698 = vpack.c.b16 %v1098, %v1090
        %v1699 = vpack.c.b16 %v1107, %v1099
        %v1700 = vpack.c.b16 %v1108, %v1100
        %v1701 = vpack.c.b16 %v1109, %v1101
        %v1702 = vpack.c.b16 %v1110, %v1102
        %v1703 = vpack.c.b16 %v1111, %v1103
        %v1704 = vpack.c.b16 %v1112, %v1104
        %v1705 = vpack.c.b16 %v1113, %v1105
        %v1706 = vpack.c.b16 %v1114, %v1106
        %v1707 = vpack.c.b16 %v1123, %v1115
        %v1708 = vpack.c.b16 %v1124, %v1116
        %v1709 = vpack.c.b16 %v1125, %v1117
        %v1710 = vpack.c.b16 %v1126, %v1118
        %v1711 = vpack.c.b16 %v1127, %v1119
        %v1712 = vpack.c.b16 %v1128, %v1120
        %v1713 = vpack.c.b16 %v1129, %v1121
        %v1714 = vpack.c.b16 %v1130, %v1122
        %v1715 = vpack.c.b16 %v1139, %v1131
        %v1716 = vpack.c.b16 %v1140, %v1132
        %v1717 = vpack.c.b16 %v1141, %v1133
        %v1718 = vpack.c.b16 %v1142, %v1134
        %v1719 = vpack.c.b16 %v1143, %v1135
        %v1720 = vpack.c.b16 %v1144, %v1136
        %v1721 = vpack.c.b16 %v1145, %v1137
        %v1722 = vpack.c.b16 %v1146, %v1138
        %v1723 = vpack.c.b16 %v1155, %v1147
        %v1724 = vpack.c.b16 %v1156, %v1148
        %v1725 = vpack.c.b16 %v1157, %v1149
        %v1726 = vpack.c.b16 %v1158, %v1150
        %v1727 = vpack.c.b16 %v1159, %v1151
        %v1728 = vpack.c.b16 %v1160, %v1152
        %v1729 = vpack.c.b16 %v1161, %v1153
        %v1730 = vpack.c.b16 %v1162, %v1154
        %v1731 = vpack.c.b16 %v1171, %v1163
        %v1732 = vpack.c.b16 %v1172, %v1164
        %v1733 = vpack.c.b16 %v1173, %v1165
        %v1734 = vpack.c.b16 %v1174, %v1166
        %v1735 = vpack.c.b16 %v1175, %v1167
        %v1736 = vpack.c.b16 %v1176, %v1168
        %v1737 = vpack.c.b16 %v1177, %v1169
        %v1738 = vpack.c.b16 %v1178, %v1170
        %v1739 = vpack.c.b16 %v1187, %v1179
        %v1740 = vpack.c.b16 %v1188, %v1180
        %v1741 = vpack.c.b16 %v1189, %v1181
        %v1742 = vpack.c.b16 %v1190, %v1182
        %v1743 = vpack.c.b16 %v1191, %v1183
        %v1744 = vpack.c.b16 %v1192, %v1184
        %v1745 = vpack.c.b16 %v1193, %v1185
        %v1746 = vpack.c.b16 %v1194, %v1186
        %v1747 = vpack.c.b16 %v1203, %v1195
        %v1748 = vpack.c.b16 %v1204, %v1196
        %v1749 = vpack.c.b16 %v1205, %v1197
        %v1750 = vpack.c.b16 %v1206, %v1198
        %v1751 = vpack.c.b16 %v1207, %v1199
        %v1752 = vpack.c.b16 %v1208, %v1200
        %v1753 = vpack.c.b16 %v1209, %v1201
        %v1754 = vpack.c.b16 %v1210, %v1202
        %v1755 = vpack.c.b16 %v1219, %v1211
        %v1756 = vpack.c.b16 %v1220, %v1212
        %v1757 = vpack.c.b16 %v1221, %v1213
        %v1758 = vpack.c.b16 %v1222, %v1214
        %v1759 = vpack.c.b16 %v1223, %v1215
        %v1760 = vpack.c.b16 %v1224, %v1216
        %v1761 = vpack.c.b16 %v1225, %v1217
        %v1762 = vpack.c.b16 %v1226, %v1218
        %v1763 = vpack.c.b16 %v1235, %v1227
        %v1764 = vpack.c.b16 %v1236, %v1228
        %v1765 = vpack.c.b16 %v1237, %v1229
        %v1766 = vpack.c.b16 %v1238, %v1230
        %v1767 = vpack.c.b16 %v1239, %v1231
        %v1768 = vpack.c.b16 %v1240, %v1232
        %v1769 = vpack.c.b16 %v1241, %v1233
        %v1770 = vpack.c.b16 %v1242, %v1234
        %v1771 = vpack.c.b16 %v1251, %v1243
        %v1772 = vpack.c.b16 %v1252, %v1244
        %v1773 = vpack.c.b16 %v1253, %v1245
        %v1774 = vpack.c.b16 %v1254, %v1246
        %v1775 = vpack.c.b16 %v1255, %v1247
        %v1776 = vpack.c.b16 %v1256, %v1248
        %v1777 = vpack.c.b16 %v1257, %v1249
        %v1778 = vpack.c.b16 %v1258, %v1250
        %v1779 = vpack.c.b16 %v1267, %v1259
        %v1780 = vpack.c.b16 %v1268, %v1260
        %v1781 = vpack.c.b16 %v1269, %v1261
        %v1782 = vpack.c.b16 %v1270, %v1262
        %v1783 = vpack.c.b16 %v1271, %v1263
        %v1784 = vpack.c.b16 %v1272, %v1264
        %v1785 = vpack.c.b16 %v1273, %v1265
        %v1786 = vpack.c.b16 %v1274, %v1266
        %v1787 = vpack.c.b16 %v1283, %v1275
        %v1788 = vpack.c.b16 %v1284, %v1276
        %v1789 = vpack.c.b16 %v1285, %v1277
        %v1790 = vpack.c.b16 %v1286, %v1278
        %v1791 = vpack.c.b16 %v1287, %v1279
        %v1792 = vpack.c.b16 %v1288, %v1280
        %v1793 = vpack.c.b16 %v1289, %v1281
        %v1794 = vpack.c.b16 %v1290, %v1282
        %v1795 = vpack.c.b16 %v1299, %v1291
        %v1796 = vpack.c.b16 %v1300, %v1292
        %v1797 = vpack.c.b16 %v1301, %v1293
        %v1798 = vpack.c.b16 %v1302, %v1294
        %v1799 = vpack.c.b16 %v1303, %v1295
        %v1800 = vpack.c.b16 %v1304, %v1296
        %v1801 = vpack.c.b16 %v1305, %v1297
        %v1802 = vpack.c.b16 %v1306, %v1298
        %v1803 = vpack.c.b16 %v1315, %v1307
        %v1804 = vpack.c.b16 %v1316, %v1308
        %v1805 = vpack.c.b16 %v1317, %v1309
        %v1806 = vpack.c.b16 %v1318, %v1310
        %v1807 = vpack.c.b16 %v1319, %v1311
        %v1808 = vpack.c.b16 %v1320, %v1312
        %v1809 = vpack.c.b16 %v1321, %v1313
        %v1810 = vpack.c.b16 %v1322, %v1314
        %v1811 = vpack.c.b16 %v1331, %v1323
        %v1812 = vpack.c.b16 %v1332, %v1324
        %v1813 = vpack.c.b16 %v1333, %v1325
        %v1814 = vpack.c.b16 %v1334, %v1326
        %v1815 = vpack.c.b16 %v1335, %v1327
        %v1816 = vpack.c.b16 %v1336, %v1328
        %v1817 = vpack.c.b16 %v1337, %v1329
        %v1818 = vpack.c.b16 %v1338, %v1330
        %v1819 = vpack.c.b16 %v1347, %v1339
        %v1820 = vpack.c.b16 %v1348, %v1340
        %v1821 = vpack.c.b16 %v1349, %v1341
        %v1822 = vpack.c.b16 %v1350, %v1342
        %v1823 = vpack.c.b16 %v1351, %v1343
        %v1824 = vpack.c.b16 %v1352, %v1344
        %v1825 = vpack.c.b16 %v1353, %v1345
        %v1826 = vpack.c.b16 %v1354, %v1346
        %v1827 = vpack.c.b16 %v1363, %v1355
        %v1828 = vpack.c.b16 %v1364, %v1356
        %v1829 = vpack.c.b16 %v1365, %v1357
        %v1830 = vpack.c.b16 %v1366, %v1358
        %v1831 = vpack.c.b16 %v1367, %v1359
        %v1832 = vpack.c.b16 %v1368, %v1360
        %v1833 = vpack.c.b16 %v1369, %v1361
        %v1834 = vpack.c.b16 %v1370, %v1362
        %v1835 = vpack.c.b16 %v1379, %v1371
        %v1836 = vpack.c.b16 %v1380, %v1372
        %v1837 = vpack.c.b16 %v1381, %v1373
        %v1838 = vpack.c.b16 %v1382, %v1374
        %v1839 = vpack.c.b16 %v1383, %v1375
        %v1840 = vpack.c.b16 %v1384, %v1376
        %v1841 = vpack.c.b16 %v1385, %v1377
        %v1842 = vpack.c.b16 %v1386, %v1378
        %v1843 = vpack.c.b16 %v1395, %v1387
        %v1844 = vpack.c.b16 %v1396, %v1388
        %v1845 = vpack.c.b16 %v1397, %v1389
        %v1846 = vpack.c.b16 %v1398, %v1390
        %v1847 = vpack.c.b16 %v1399, %v1391
        %v1848 = vpack.c.b16 %v1400, %v1392
        %v1849 = vpack.c.b16 %v1401, %v1393
        %v1850 = vpack.c.b16 %v1402, %v1394
        %v1851 = vpack.c.b16 %v1411, %v1403
        %v1852 = vpack.c.b16 %v1412, %v1404
        %v1853 = vpack.c.b16 %v1413, %v1405
        %v1854 = vpack.c.b16 %v1414, %v1406
        %v1855 = vpack.c.b16 %v1415, %v1407
        %v1856 = vpack.c.b16 %v1416, %v1408
        %v1857 = vpack.c.b16 %v1417, %v1409
        %v1858 = vpack.c.b16 %v1418, %v1410
        %v1859 = vpack.c.b16 %v1427, %v1419
        %v1860 = vpack.c.b16 %v1428, %v1420
        %v1861 = vpack.c.b16 %v1429, %v1421
        %v1862 = vpack.c.b16 %v1430, %v1422
        %v1863 = vpack.c.b16 %v1431, %v1423
        %v1864 = vpack.c.b16 %v1432, %v1424
        %v1865 = vpack.c.b16 %v1433, %v1425
        %v1866 = vpack.c.b16 %v1434, %v1426
        %v1867 = vpack.c.b16 %v1443, %v1435
        %v1868 = vpack.c.b16 %v1444, %v1436
        %v1869 = vpack.c.b16 %v1445, %v1437
        %v1870 = vpack.c.b16 %v1446, %v1438
        %v1871 = vpack.c.b16 %v1447, %v1439
        %v1872 = vpack.c.b16 %v1448, %v1440
        %v1873 = vpack.c.b16 %v1449, %v1441
        %v1874 = vpack.c.b16 %v1450, %v1442
        %v1875 = vpack.c.b16 %v1459, %v1451
        %v1876 = vpack.c.b16 %v1460, %v1452
        %v1877 = vpack.c.b16 %v1461, %v1453
        %v1878 = vpack.c.b16 %v1462, %v1454
        %v1879 = vpack.c.b16 %v1463, %v1455
        %v1880 = vpack.c.b16 %v1464, %v1456
        %v1881 = vpack.c.b16 %v1465, %v1457
        %v1882 = vpack.c.b16 %v1466, %v1458
        %v1883 = vpack.c.b16 %v1475, %v1467
        %v1884 = vpack.c.b16 %v1476, %v1468
        %v1885 = vpack.c.b16 %v1477, %v1469
        %v1886 = vpack.c.b16 %v1478, %v1470
        %v1887 = vpack.c.b16 %v1479, %v1471
        %v1888 = vpack.c.b16 %v1480, %v1472
        %v1889 = vpack.c.b16 %v1481, %v1473
        %v1890 = vpack.c.b16 %v1482, %v1474
        %v1891 = vpack.c.b16 %v1491, %v1483
        %v1892 = vpack.c.b16 %v1492, %v1484
        %v1893 = vpack.c.b16 %v1493, %v1485
        %v1894 = vpack.c.b16 %v1494, %v1486
        %v1895 = vpack.c.b16 %v1495, %v1487
        %v1896 = vpack.c.b16 %v1496, %v1488
        %v1897 = vpack.c.b16 %v1497, %v1489
        %v1898 = vpack.c.b16 %v1498, %v1490
        %v1899 = vpack.c.b16 %v1507, %v1499
        %v1900 = vpack.c.b16 %v1508, %v1500
        %v1901 = vpack.c.b16 %v1509, %v1501
        %v1902 = vpack.c.b16 %v1510, %v1502
        %v1903 = vpack.c.b16 %v1511, %v1503
        %v1904 = vpack.c.b16 %v1512, %v1504
        %v1905 = vpack.c.b16 %v1513, %v1505
        %v1906 = vpack.c.b16 %v1514, %v1506
        %v1907 = vpack.c.b16 %v1523, %v1515
        %v1908 = vpack.c.b16 %v1524, %v1516
        %v1909 = vpack.c.b16 %v1525, %v1517
        %v1910 = vpack.c.b16 %v1526, %v1518
        %v1911 = vpack.c.b16 %v1527, %v1519
        %v1912 = vpack.c.b16 %v1528, %v1520
        %v1913 = vpack.c.b16 %v1529, %v1521
        %v1914 = vpack.c.b16 %v1530, %v1522
        %v1915 = vpack.c.b16 %v1539, %v1531
        %v1916 = vpack.c.b16 %v1540, %v1532
        %v1917 = vpack.c.b16 %v1541, %v1533
        %v1918 = vpack.c.b16 %v1542, %v1534
        %v1919 = vpack.c.b16 %v1543, %v1535
        %v1920 = vpack.c.b16 %v1544, %v1536
        %v1921 = vpack.c.b16 %v1545, %v1537
        %v1922 = vpack.c.b16 %v1546, %v1538
        %v1923 = vpack.c.b16 %v1555, %v1547
        %v1924 = vpack.c.b16 %v1556, %v1548
        %v1925 = vpack.c.b16 %v1557, %v1549
        %v1926 = vpack.c.b16 %v1558, %v1550
        %v1927 = vpack.c.b16 %v1559, %v1551
        %v1928 = vpack.c.b16 %v1560, %v1552
        %v1929 = vpack.c.b16 %v1561, %v1553
        %v1930 = vpack.c.b16 %v1562, %v1554
        %v1931 = vpack.c.b16 %v1571, %v1563
        %v1932 = vpack.c.b16 %v1572, %v1564
        %v1933 = vpack.c.b16 %v1573, %v1565
        %v1934 = vpack.c.b16 %v1574, %v1566
        %v1935 = vpack.c.b16 %v1575, %v1567
        %v1936 = vpack.c.b16 %v1576, %v1568
        %v1937 = vpack.c.b16 %v1577, %v1569
        %v1938 = vpack.c.b16 %v1578, %v1570
        %v1939 = vpack.c.b16 %v1587, %v1579
        %v1940 = vpack.c.b16 %v1588, %v1580
        %v1941 = vpack.c.b16 %v1589, %v1581
        %v1942 = vpack.c.b16 %v1590, %v1582
        %v1943 = vpack.c.b16 %v1591, %v1583
        %v1944 = vpack.c.b16 %v1592, %v1584
        %v1945 = vpack.c.b16 %v1593, %v1585
        %v1946 = vpack.c.b16 %v1594, %v1586
        %v1947 = vpack.c.b16 %v1603, %v1595
        %v1948 = vpack.c.b16 %v1604, %v1596
        %v1949 = vpack.c.b16 %v1605, %v1597
        %v1950 = vpack.c.b16 %v1606, %v1598
        %v1951 = vpack.c.b16 %v1607, %v1599
        %v1952 = vpack.c.b16 %v1608, %v1600
        %v1953 = vpack.c.b16 %v1609, %v1601
        %v1954 = vpack.c.b16 %v1610, %v1602
        %v1955 = vpack.c.b16 %v1619, %v1611
        %v1956 = vpack.c.b16 %v1620, %v1612
        %v1957 = vpack.c.b16 %v1621, %v1613
        %v1958 = vpack.c.b16 %v1622, %v1614
        %v1959 = vpack.c.b16 %v1623, %v1615
        %v1960 = vpack.c.b16 %v1624, %v1616
        %v1961 = vpack.c.b16 %v1625, %v1617
        %v1962 = vpack.c.b16 %v1626, %v1618
        %v1963 = vpack.c.b16 %v1635, %v1627
        %v1964 = vpack.c.b16 %v1636, %v1628
        %v1965 = vpack.c.b16 %v1637, %v1629
        %v1966 = vpack.c.b16 %v1638, %v1630
        %v1967 = vpack.c.b16 %v1639, %v1631
        %v1968 = vpack.c.b16 %v1640, %v1632
        %v1969 = vpack.c.b16 %v1641, %v1633
        %v1970 = vpack.c.b16 %v1642, %v1634
        %v1971 = vpack.c.b16 %v1651, %v1643
        %v1972 = vpack.c.b16 %v1652, %v1644
        %v1973 = vpack.c.b16 %v1653, %v1645
        %v1974 = vpack.c.b16 %v1654, %v1646
        %v1975 = vpack.c.b16 %v1655, %v1647
        %v1976 = vpack.c.b16 %v1656, %v1648
        %v1977 = vpack.c.b16 %v1657, %v1649
        %v1978 = vpack.c.b16 %v1658, %v1650
        %2299 = vmatprep.subr.bf16.mxu0 %v1660
        %2300 = vmatpush1.bf16.msra.mxu0 %v1659
        %2301 = vmatprep.subr.bf16.mxu0 %v1668
        %2302 = vmatpush1.bf16.msra.mxu0 %v1667
        %2303 = vmatprep.subr.bf16.mxu0 %v1676
        %2304 = vmatpush1.bf16.msra.mxu0 %v1675
        %2305 = vmatprep.subr.bf16.mxu0 %v1684
        %2306 = vmatpush1.bf16.msra.mxu0 %v1683
        %2307 = vmatprep.subr.bf16.mxu0 %v1692
        %2308 = vmatpush1.bf16.msra.mxu0 %v1691
        %2309 = vmatprep.subr.bf16.mxu0 %v1700
        %2310 = vmatpush1.bf16.msra.mxu0 %v1699
        %2311 = vmatprep.subr.bf16.mxu0 %v1708
        %2312 = vmatpush1.bf16.msra.mxu0 %v1707
        %2313 = vmatprep.subr.bf16.mxu0 %v1716
        %2314 = vmatpush1.bf16.msra.mxu0 %v1715
        %2315 = vmatprep.subr.bf16.mxu0 %v1724
        %2316 = vmatpush1.bf16.msra.mxu0 %v1723
        %2317 = vmatprep.subr.bf16.mxu0 %v1732
        %2318 = vmatpush1.bf16.msra.mxu0 %v1731
        %2319 = vmatprep.subr.bf16.mxu0 %v1740
        %2320 = vmatpush1.bf16.msra.mxu0 %v1739
        %2321 = vmatprep.subr.bf16.mxu0 %v1748
        %2322 = vmatpush1.bf16.msra.mxu0 %v1747
        %2323 = vmatprep.subr.bf16.mxu0 %v1756
        %2324 = vmatpush1.bf16.msra.mxu0 %v1755
        %2325 = vmatprep.subr.bf16.mxu0 %v1764
        %2326 = vmatpush1.bf16.msra.mxu0 %v1763
        %2327 = vmatprep.subr.bf16.mxu0 %v1772
        %2328 = vmatpush1.bf16.msra.mxu0 %v1771
        %2329 = vmatprep.subr.bf16.mxu0 %v1780
        %2330 = vmatpush1.bf16.msra.mxu0 %v1779
        %2331 = vmatprep.mubr.bf16.mxu0 %v690
        %2332 = vmatmul.mubr.bf16.gmra.mrb[0].mxu0 %v689
        %v2333 = vpop.f32.mrb[0].mxu0
        %v2334 = vadd.f32 %v644, %v2333
        %v2335 = vpop.f32.mrb[0].mxu0
        %v2336 = vadd.f32 %v648, %v2335
        %v2337 = vpop.f32.mrb[0].mxu0
        %v2338 = vpop.f32.mrb[0].mxu0
        %2339 = vdwg.mxu0
        %2340 = vmatprep.subr.bf16.mxu0 %v1788
        %2341 = vmatpush1.bf16.msra.mxu0 %v1787
        %2342 = vmatprep.subr.bf16.mxu0 %v1796
        %2343 = vmatpush1.bf16.msra.mxu0 %v1795
        %2344 = vmatprep.subr.bf16.mxu0 %v1804
        %2345 = vmatpush1.bf16.msra.mxu0 %v1803
        %2346 = vmatprep.subr.bf16.mxu0 %v1812
        %2347 = vmatpush1.bf16.msra.mxu0 %v1811
        %2348 = vmatprep.subr.bf16.mxu0 %v1820
        %2349 = vmatpush1.bf16.msra.mxu0 %v1819
        %2350 = vmatprep.subr.bf16.mxu0 %v1828
        %2351 = vmatpush1.bf16.msra.mxu0 %v1827
        %2352 = vmatprep.subr.bf16.mxu0 %v1836
        %2353 = vmatpush1.bf16.msra.mxu0 %v1835
        %2354 = vmatprep.subr.bf16.mxu0 %v1844
        %2355 = vmatpush1.bf16.msra.mxu0 %v1843
        %2356 = vmatprep.subr.bf16.mxu0 %v1852
        %2357 = vmatpush1.bf16.msra.mxu0 %v1851
        %2358 = vmatprep.subr.bf16.mxu0 %v1860
        %2359 = vmatpush1.bf16.msra.mxu0 %v1859
        %2360 = vmatprep.subr.bf16.mxu0 %v1868
        %2361 = vmatpush1.bf16.msra.mxu0 %v1867
        %2362 = vmatprep.subr.bf16.mxu0 %v1876
        %2363 = vmatpush1.bf16.msra.mxu0 %v1875
        %2364 = vmatprep.subr.bf16.mxu0 %v1884
        %2365 = vmatpush1.bf16.msra.mxu0 %v1883
        %2366 = vmatprep.subr.bf16.mxu0 %v1892
        %2367 = vmatpush1.bf16.msra.mxu0 %v1891
        %2368 = vmatprep.subr.bf16.mxu0 %v1900
        %2369 = vmatpush1.bf16.msra.mxu0 %v1899
        %2370 = vmatprep.subr.bf16.mxu0 %v1908
        %2371 = vmatpush1.bf16.msra.mxu0 %v1907
        %2372 = vmatprep.mubr.bf16.mxu0 %v692
        %2373 = vmatmul.mubr.bf16.gmra.mrb[0].mxu0 %v691
        %v2374 = vpop.f32.mrb[0].mxu0
        %v2375 = vadd.f32 %v2334, %v2374
        %v2376 = vpop.f32.mrb[0].mxu0
        %v2377 = vadd.f32 %v2336, %v2376
        %v2378 = vpop.f32.mrb[0].mxu0
        %v2379 = vpop.f32.mrb[0].mxu0
        %2380 = vdwg.mxu0
        %2381 = vmatprep.subr.bf16.mxu0 %v1916
        %2382 = vmatpush1.bf16.msra.mxu0 %v1915
        %2383 = vmatprep.subr.bf16.mxu0 %v1924
        %2384 = vmatpush1.bf16.msra.mxu0 %v1923
        %2385 = vmatprep.subr.bf16.mxu0 %v1932
        %2386 = vmatpush1.bf16.msra.mxu0 %v1931
        %2387 = vmatprep.subr.bf16.mxu0 %v1940
        %2388 = vmatpush1.bf16.msra.mxu0 %v1939
        %2389 = vmatprep.subr.bf16.mxu0 %v1948
        %2390 = vmatpush1.bf16.msra.mxu0 %v1947
        %2391 = vmatprep.subr.bf16.mxu0 %v1956
        %2392 = vmatpush1.bf16.msra.mxu0 %v1955
        %2393 = vmatprep.subr.bf16.mxu0 %v1964
        %2394 = vmatpush1.bf16.msra.mxu0 %v1963
        %2395 = vmatprep.subr.bf16.mxu0 %v1972
        %2396 = vmatpush1.bf16.msra.mxu0 %v1971
        %2397 = vmatprep.subr.bf16.mxu0 0
        %2398 = vmatpush1.bf16.msra.mxu0 0
        %2399 = vmatprep.subr.bf16.mxu0 0
        %2400 = vmatpush1.bf16.msra.mxu0 0
        %2401 = vmatprep.subr.bf16.mxu0 0
        %2402 = vmatpush1.bf16.msra.mxu0 0
        %2403 = vmatprep.subr.bf16.mxu0 0
        %2404 = vmatpush1.bf16.msra.mxu0 0
        %2405 = vmatprep.subr.bf16.mxu0 0
        %2406 = vmatpush1.bf16.msra.mxu0 0
        %2407 = vmatprep.subr.bf16.mxu0 0
        %2408 = vmatpush1.bf16.msra.mxu0 0
        %2409 = vmatprep.subr.bf16.mxu0 0
        %2410 = vmatpush1.bf16.msra.mxu0 0
        %2411 = vmatprep.subr.bf16.mxu0 0
        %2412 = vmatpush1.bf16.msra.mxu0 0
        %2413 = vmatprep.mubr.bf16.mxu0 0
        %2414 = vmatmul.mubr.bf16.gmra.mrb[0].mxu0 %v693
        %v2415 = vpop.f32.mrb[0].mxu0
        %v2416 = vadd.f32 %v2375, %v2415
        %v2417 = vpop.f32.mrb[0].mxu0
        %v2418 = vadd.f32 %v2377, %v2417
        %v2419 = vpop.f32.mrb[0].mxu0
        %v2420 = vpop.f32.mrb[0].mxu0
        %2421 = vdwg.mxu0
        %2422 = vmatprep.subr.bf16.mxu0 %v1662
        %2423 = vmatpush1.bf16.msra.mxu0 %v1661
        %2424 = vmatprep.subr.bf16.mxu0 %v1670
        %2425 = vmatpush1.bf16.msra.mxu0 %v1669
        %2426 = vmatprep.subr.bf16.mxu0 %v1678
        %2427 = vmatpush1.bf16.msra.mxu0 %v1677
        %2428 = vmatprep.subr.bf16.mxu0 %v1686
        %2429 = vmatpush1.bf16.msra.mxu0 %v1685
        %2430 = vmatprep.subr.bf16.mxu0 %v1694
        %2431 = vmatpush1.bf16.msra.mxu0 %v1693
        %2432 = vmatprep.subr.bf16.mxu0 %v1702
        %2433 = vmatpush1.bf16.msra.mxu0 %v1701
        %2434 = vmatprep.subr.bf16.mxu0 %v1710
        %2435 = vmatpush1.bf16.msra.mxu0 %v1709
        %2436 = vmatprep.subr.bf16.mxu0 %v1718
        %2437 = vmatpush1.bf16.msra.mxu0 %v1717
        %2438 = vmatprep.subr.bf16.mxu0 %v1726
        %2439 = vmatpush1.bf16.msra.mxu0 %v1725
        %2440 = vmatprep.subr.bf16.mxu0 %v1734
        %2441 = vmatpush1.bf16.msra.mxu0 %v1733
        %2442 = vmatprep.subr.bf16.mxu0 %v1742
        %2443 = vmatpush1.bf16.msra.mxu0 %v1741
        %2444 = vmatprep.subr.bf16.mxu0 %v1750
        %2445 = vmatpush1.bf16.msra.mxu0 %v1749
        %2446 = vmatprep.subr.bf16.mxu0 %v1758
        %2447 = vmatpush1.bf16.msra.mxu0 %v1757
        %2448 = vmatprep.subr.bf16.mxu0 %v1766
        %2449 = vmatpush1.bf16.msra.mxu0 %v1765
        %2450 = vmatprep.subr.bf16.mxu0 %v1774
        %2451 = vmatpush1.bf16.msra.mxu0 %v1773
        %2452 = vmatprep.subr.bf16.mxu0 %v1782
        %2453 = vmatpush1.bf16.msra.mxu0 %v1781
        %2454 = vmatprep.mubr.bf16.mxu0 %v690
        %2455 = vmatmul.mubr.bf16.gmra.mrb[0].mxu0 %v689
        %v2456 = vpop.f32.mrb[0].mxu0
        %v2457 = vadd.f32 %v652, %v2456
        %v2458 = vpop.f32.mrb[0].mxu0
        %v2459 = vadd.f32 %v656, %v2458
        %v2460 = vpop.f32.mrb[0].mxu0
        %v2461 = vpop.f32.mrb[0].mxu0
        %2462 = vdwg.mxu0
        %2463 = vmatprep.subr.bf16.mxu0 %v1790
        %2464 = vmatpush1.bf16.msra.mxu0 %v1789
        %2465 = vmatprep.subr.bf16.mxu0 %v1798
        %2466 = vmatpush1.bf16.msra.mxu0 %v1797
        %2467 = vmatprep.subr.bf16.mxu0 %v1806
        %2468 = vmatpush1.bf16.msra.mxu0 %v1805
        %2469 = vmatprep.subr.bf16.mxu0 %v1814
        %2470 = vmatpush1.bf16.msra.mxu0 %v1813
        %2471 = vmatprep.subr.bf16.mxu0 %v1822
        %2472 = vmatpush1.bf16.msra.mxu0 %v1821
        %2473 = vmatprep.subr.bf16.mxu0 %v1830
        %2474 = vmatpush1.bf16.msra.mxu0 %v1829
        %2475 = vmatprep.subr.bf16.mxu0 %v1838
        %2476 = vmatpush1.bf16.msra.mxu0 %v1837
        %2477 = vmatprep.subr.bf16.mxu0 %v1846
        %2478 = vmatpush1.bf16.msra.mxu0 %v1845
        %2479 = vmatprep.subr.bf16.mxu0 %v1854
        %2480 = vmatpush1.bf16.msra.mxu0 %v1853
        %2481 = vmatprep.subr.bf16.mxu0 %v1862
        %2482 = vmatpush1.bf16.msra.mxu0 %v1861
        %2483 = vmatprep.subr.bf16.mxu0 %v1870
        %2484 = vmatpush1.bf16.msra.mxu0 %v1869
        %2485 = vmatprep.subr.bf16.mxu0 %v1878
        %2486 = vmatpush1.bf16.msra.mxu0 %v1877
        %2487 = vmatprep.subr.bf16.mxu0 %v1886
        %2488 = vmatpush1.bf16.msra.mxu0 %v1885
        %2489 = vmatprep.subr.bf16.mxu0 %v1894
        %2490 = vmatpush1.bf16.msra.mxu0 %v1893
        %2491 = vmatprep.subr.bf16.mxu0 %v1902
        %2492 = vmatpush1.bf16.msra.mxu0 %v1901
        %2493 = vmatprep.subr.bf16.mxu0 %v1910
        %2494 = vmatpush1.bf16.msra.mxu0 %v1909
        %2495 = vmatprep.mubr.bf16.mxu0 %v692
        %2496 = vmatmul.mubr.bf16.gmra.mrb[0].mxu0 %v691
        %v2497 = vpop.f32.mrb[0].mxu0
        %v2498 = vadd.f32 %v2457, %v2497
        %v2499 = vpop.f32.mrb[0].mxu0
        %v2500 = vadd.f32 %v2459, %v2499
        %v2501 = vpop.f32.mrb[0].mxu0
        %v2502 = vpop.f32.mrb[0].mxu0
        %2503 = vdwg.mxu0
        %2504 = vmatprep.subr.bf16.mxu0 %v1918
        %2505 = vmatpush1.bf16.msra.mxu0 %v1917
        %2506 = vmatprep.subr.bf16.mxu0 %v1926
        %2507 = vmatpush1.bf16.msra.mxu0 %v1925
        %2508 = vmatprep.subr.bf16.mxu0 %v1934
        %2509 = vmatpush1.bf16.msra.mxu0 %v1933
        %2510 = vmatprep.subr.bf16.mxu0 %v1942
        %2511 = vmatpush1.bf16.msra.mxu0 %v1941
        %2512 = vmatprep.subr.bf16.mxu0 %v1950
        %2513 = vmatpush1.bf16.msra.mxu0 %v1949
        %2514 = vmatprep.subr.bf16.mxu0 %v1958
        %2515 = vmatpush1.bf16.msra.mxu0 %v1957
        %2516 = vmatprep.subr.bf16.mxu0 %v1966
        %2517 = vmatpush1.bf16.msra.mxu0 %v1965
        %2518 = vmatprep.subr.bf16.mxu0 %v1974
        %2519 = vmatpush1.bf16.msra.mxu0 %v1973
        %2520 = vmatprep.subr.bf16.mxu0 0
        %2521 = vmatpush1.bf16.msra.mxu0 0
        %2522 = vmatprep.subr.bf16.mxu0 0
        %2523 = vmatpush1.bf16.msra.mxu0 0
        %2524 = vmatprep.subr.bf16.mxu0 0
        %2525 = vmatpush1.bf16.msra.mxu0 0
        %2526 = vmatprep.subr.bf16.mxu0 0
        %2527 = vmatpush1.bf16.msra.mxu0 0
        %2528 = vmatprep.subr.bf16.mxu0 0
        %2529 = vmatpush1.bf16.msra.mxu0 0
        %2530 = vmatprep.subr.bf16.mxu0 0
        %2531 = vmatpush1.bf16.msra.mxu0 0
        %2532 = vmatprep.subr.bf16.mxu0 0
        %2533 = vmatpush1.bf16.msra.mxu0 0
        %2534 = vmatprep.subr.bf16.mxu0 0
        %2535 = vmatpush1.bf16.msra.mxu0 0
        %2536 = vmatprep.mubr.bf16.mxu0 0
        %2537 = vmatmul.mubr.bf16.gmra.mrb[0].mxu0 %v693
        %v2538 = vpop.f32.mrb[0].mxu0
        %v2539 = vadd.f32 %v2498, %v2538
        %v2540 = vpop.f32.mrb[0].mxu0
        %v2541 = vadd.f32 %v2500, %v2540
        %v2542 = vpop.f32.mrb[0].mxu0
        %v2543 = vpop.f32.mrb[0].mxu0
        %2544 = vdwg.mxu0
        %2545 = vmatprep.subr.bf16.mxu0 %v1664
        %2546 = vmatpush1.bf16.msra.mxu0 %v1663
        %2547 = vmatprep.subr.bf16.mxu0 %v1672
        %2548 = vmatpush1.bf16.msra.mxu0 %v1671
        %2549 = vmatprep.subr.bf16.mxu0 %v1680
        %2550 = vmatpush1.bf16.msra.mxu0 %v1679
        %2551 = vmatprep.subr.bf16.mxu0 %v1688
        %2552 = vmatpush1.bf16.msra.mxu0 %v1687
        %2553 = vmatprep.subr.bf16.mxu0 %v1696
        %2554 = vmatpush1.bf16.msra.mxu0 %v1695
        %2555 = vmatprep.subr.bf16.mxu0 %v1704
        %2556 = vmatpush1.bf16.msra.mxu0 %v1703
        %2557 = vmatprep.subr.bf16.mxu0 %v1712
        %2558 = vmatpush1.bf16.msra.mxu0 %v1711
        %2559 = vmatprep.subr.bf16.mxu0 %v1720
        %2560 = vmatpush1.bf16.msra.mxu0 %v1719
        %2561 = vmatprep.subr.bf16.mxu0 %v1728
        %2562 = vmatpush1.bf16.msra.mxu0 %v1727
        %2563 = vmatprep.subr.bf16.mxu0 %v1736
        %2564 = vmatpush1.bf16.msra.mxu0 %v1735
        %2565 = vmatprep.subr.bf16.mxu0 %v1744
        %2566 = vmatpush1.bf16.msra.mxu0 %v1743
        %2567 = vmatprep.subr.bf16.mxu0 %v1752
        %2568 = vmatpush1.bf16.msra.mxu0 %v1751
        %2569 = vmatprep.subr.bf16.mxu0 %v1760
        %2570 = vmatpush1.bf16.msra.mxu0 %v1759
        %2571 = vmatprep.subr.bf16.mxu0 %v1768
        %2572 = vmatpush1.bf16.msra.mxu0 %v1767
        %2573 = vmatprep.subr.bf16.mxu0 %v1776
        %2574 = vmatpush1.bf16.msra.mxu0 %v1775
        %2575 = vmatprep.subr.bf16.mxu0 %v1784
        %2576 = vmatpush1.bf16.msra.mxu0 %v1783
        %2577 = vmatprep.mubr.bf16.mxu0 %v690
        %2578 = vmatmul.mubr.bf16.gmra.mrb[0].mxu0 %v689
        %v2579 = vpop.f32.mrb[0].mxu0
        %v2580 = vadd.f32 %v660, %v2579
        %v2581 = vpop.f32.mrb[0].mxu0
        %v2582 = vadd.f32 %v664, %v2581
        %v2583 = vpop.f32.mrb[0].mxu0
        %v2584 = vpop.f32.mrb[0].mxu0
        %2585 = vdwg.mxu0
        %2586 = vmatprep.subr.bf16.mxu0 %v1792
        %2587 = vmatpush1.bf16.msra.mxu0 %v1791
        %2588 = vmatprep.subr.bf16.mxu0 %v1800
        %2589 = vmatpush1.bf16.msra.mxu0 %v1799
        %2590 = vmatprep.subr.bf16.mxu0 %v1808
        %2591 = vmatpush1.bf16.msra.mxu0 %v1807
        %2592 = vmatprep.subr.bf16.mxu0 %v1816
        %2593 = vmatpush1.bf16.msra.mxu0 %v1815
        %2594 = vmatprep.subr.bf16.mxu0 %v1824
        %2595 = vmatpush1.bf16.msra.mxu0 %v1823
        %2596 = vmatprep.subr.bf16.mxu0 %v1832
        %2597 = vmatpush1.bf16.msra.mxu0 %v1831
        %2598 = vmatprep.subr.bf16.mxu0 %v1840
        %2599 = vmatpush1.bf16.msra.mxu0 %v1839
        %2600 = vmatprep.subr.bf16.mxu0 %v1848
        %2601 = vmatpush1.bf16.msra.mxu0 %v1847
        %2602 = vmatprep.subr.bf16.mxu0 %v1856
        %2603 = vmatpush1.bf16.msra.mxu0 %v1855
        %2604 = vmatprep.subr.bf16.mxu0 %v1864
        %2605 = vmatpush1.bf16.msra.mxu0 %v1863
        %2606 = vmatprep.subr.bf16.mxu0 %v1872
        %2607 = vmatpush1.bf16.msra.mxu0 %v1871
        %2608 = vmatprep.subr.bf16.mxu0 %v1880
        %2609 = vmatpush1.bf16.msra.mxu0 %v1879
        %2610 = vmatprep.subr.bf16.mxu0 %v1888
        %2611 = vmatpush1.bf16.msra.mxu0 %v1887
        %2612 = vmatprep.subr.bf16.mxu0 %v1896
        %2613 = vmatpush1.bf16.msra.mxu0 %v1895
        %2614 = vmatprep.subr.bf16.mxu0 %v1904
        %2615 = vmatpush1.bf16.msra.mxu0 %v1903
        %2616 = vmatprep.subr.bf16.mxu0 %v1912
        %2617 = vmatpush1.bf16.msra.mxu0 %v1911
        %2618 = vmatprep.mubr.bf16.mxu0 %v692
        %2619 = vmatmul.mubr.bf16.gmra.mrb[0].mxu0 %v691
        %v2620 = vpop.f32.mrb[0].mxu0
        %v2621 = vadd.f32 %v2580, %v2620
        %v2622 = vpop.f32.mrb[0].mxu0
        %v2623 = vadd.f32 %v2582, %v2622
        %v2624 = vpop.f32.mrb[0].mxu0
        %v2625 = vpop.f32.mrb[0].mxu0
        %2626 = vdwg.mxu0
        %2627 = vmatprep.subr.bf16.mxu0 %v1920
        %2628 = vmatpush1.bf16.msra.mxu0 %v1919
        %2629 = vmatprep.subr.bf16.mxu0 %v1928
        %2630 = vmatpush1.bf16.msra.mxu0 %v1927
        %2631 = vmatprep.subr.bf16.mxu0 %v1936
        %2632 = vmatpush1.bf16.msra.mxu0 %v1935
        %2633 = vmatprep.subr.bf16.mxu0 %v1944
        %2634 = vmatpush1.bf16.msra.mxu0 %v1943
        %2635 = vmatprep.subr.bf16.mxu0 %v1952
        %2636 = vmatpush1.bf16.msra.mxu0 %v1951
        %2637 = vmatprep.subr.bf16.mxu0 %v1960
        %2638 = vmatpush1.bf16.msra.mxu0 %v1959
        %2639 = vmatprep.subr.bf16.mxu0 %v1968
        %2640 = vmatpush1.bf16.msra.mxu0 %v1967
        %2641 = vmatprep.subr.bf16.mxu0 %v1976
        %2642 = vmatpush1.bf16.msra.mxu0 %v1975
        %2643 = vmatprep.subr.bf16.mxu0 0
        %2644 = vmatpush1.bf16.msra.mxu0 0
        %2645 = vmatprep.subr.bf16.mxu0 0
        %2646 = vmatpush1.bf16.msra.mxu0 0
        %2647 = vmatprep.subr.bf16.mxu0 0
        %2648 = vmatpush1.bf16.msra.mxu0 0
        %2649 = vmatprep.subr.bf16.mxu0 0
        %2650 = vmatpush1.bf16.msra.mxu0 0
        %2651 = vmatprep.subr.bf16.mxu0 0
        %2652 = vmatpush1.bf16.msra.mxu0 0
        %2653 = vmatprep.subr.bf16.mxu0 0
        %2654 = vmatpush1.bf16.msra.mxu0 0
        %2655 = vmatprep.subr.bf16.mxu0 0
        %2656 = vmatpush1.bf16.msra.mxu0 0
        %2657 = vmatprep.subr.bf16.mxu0 0
        %2658 = vmatpush1.bf16.msra.mxu0 0
        %2659 = vmatprep.mubr.bf16.mxu0 0
        %2660 = vmatmul.mubr.bf16.gmra.mrb[0].mxu0 %v693
        %v2661 = vpop.f32.mrb[0].mxu0
        %v2662 = vadd.f32 %v2621, %v2661
        %v2663 = vpop.f32.mrb[0].mxu0
        %v2664 = vadd.f32 %v2623, %v2663
        %v2665 = vpop.f32.mrb[0].mxu0
        %v2666 = vpop.f32.mrb[0].mxu0
        %2667 = vdwg.mxu0
        %2668 = vmatprep.subr.bf16.mxu0 %v1666
        %2669 = vmatpush1.bf16.msra.mxu0 %v1665
        %2670 = vmatprep.subr.bf16.mxu0 %v1674
        %2671 = vmatpush1.bf16.msra.mxu0 %v1673
        %2672 = vmatprep.subr.bf16.mxu0 %v1682
        %2673 = vmatpush1.bf16.msra.mxu0 %v1681
        %2674 = vmatprep.subr.bf16.mxu0 %v1690
        %2675 = vmatpush1.bf16.msra.mxu0 %v1689
        %2676 = vmatprep.subr.bf16.mxu0 %v1698
        %2677 = vmatpush1.bf16.msra.mxu0 %v1697
        %2678 = vmatprep.subr.bf16.mxu0 %v1706
        %2679 = vmatpush1.bf16.msra.mxu0 %v1705
        %2680 = vmatprep.subr.bf16.mxu0 %v1714
        %2681 = vmatpush1.bf16.msra.mxu0 %v1713
        %2682 = vmatprep.subr.bf16.mxu0 %v1722
        %2683 = vmatpush1.bf16.msra.mxu0 %v1721
        %2684 = vmatprep.subr.bf16.mxu0 %v1730
        %2685 = vmatpush1.bf16.msra.mxu0 %v1729
        %2686 = vmatprep.subr.bf16.mxu0 %v1738
        %2687 = vmatpush1.bf16.msra.mxu0 %v1737
        %2688 = vmatprep.subr.bf16.mxu0 %v1746
        %2689 = vmatpush1.bf16.msra.mxu0 %v1745
        %2690 = vmatprep.subr.bf16.mxu0 %v1754
        %2691 = vmatpush1.bf16.msra.mxu0 %v1753
        %2692 = vmatprep.subr.bf16.mxu0 %v1762
        %2693 = vmatpush1.bf16.msra.mxu0 %v1761
        %2694 = vmatprep.subr.bf16.mxu0 %v1770
        %2695 = vmatpush1.bf16.msra.mxu0 %v1769
        %2696 = vmatprep.subr.bf16.mxu0 %v1778
        %2697 = vmatpush1.bf16.msra.mxu0 %v1777
        %2698 = vmatprep.subr.bf16.mxu0 %v1786
        %2699 = vmatpush1.bf16.msra.mxu0 %v1785
        %2700 = vmatprep.mubr.bf16.mxu0 %v690
        %2701 = vmatmul.mubr.bf16.gmra.mrb[0].mxu0 %v689
        %v2702 = vpop.f32.mrb[0].mxu0
        %v2703 = vadd.f32 %v668, %v2702
        %v2704 = vpop.f32.mrb[0].mxu0
        %v2705 = vadd.f32 %v672, %v2704
        %v2706 = vpop.f32.mrb[0].mxu0
        %v2707 = vpop.f32.mrb[0].mxu0
        %2708 = vdwg.mxu0
        %2709 = vmatprep.subr.bf16.mxu0 %v1794
        %2710 = vmatpush1.bf16.msra.mxu0 %v1793
        %2711 = vmatprep.subr.bf16.mxu0 %v1802
        %2712 = vmatpush1.bf16.msra.mxu0 %v1801
        %2713 = vmatprep.subr.bf16.mxu0 %v1810
        %2714 = vmatpush1.bf16.msra.mxu0 %v1809
        %2715 = vmatprep.subr.bf16.mxu0 %v1818
        %2716 = vmatpush1.bf16.msra.mxu0 %v1817
        %2717 = vmatprep.subr.bf16.mxu0 %v1826
        %2718 = vmatpush1.bf16.msra.mxu0 %v1825
        %2719 = vmatprep.subr.bf16.mxu0 %v1834
        %2720 = vmatpush1.bf16.msra.mxu0 %v1833
        %2721 = vmatprep.subr.bf16.mxu0 %v1842
        %2722 = vmatpush1.bf16.msra.mxu0 %v1841
        %2723 = vmatprep.subr.bf16.mxu0 %v1850
        %2724 = vmatpush1.bf16.msra.mxu0 %v1849
        %2725 = vmatprep.subr.bf16.mxu0 %v1858
        %2726 = vmatpush1.bf16.msra.mxu0 %v1857
        %2727 = vmatprep.subr.bf16.mxu0 %v1866
        %2728 = vmatpush1.bf16.msra.mxu0 %v1865
        %2729 = vmatprep.subr.bf16.mxu0 %v1874
        %2730 = vmatpush1.bf16.msra.mxu0 %v1873
        %2731 = vmatprep.subr.bf16.mxu0 %v1882
        %2732 = vmatpush1.bf16.msra.mxu0 %v1881
        %2733 = vmatprep.subr.bf16.mxu0 %v1890
        %2734 = vmatpush1.bf16.msra.mxu0 %v1889
        %2735 = vmatprep.subr.bf16.mxu0 %v1898
        %2736 = vmatpush1.bf16.msra.mxu0 %v1897
        %2737 = vmatprep.subr.bf16.mxu0 %v1906
        %2738 = vmatpush1.bf16.msra.mxu0 %v1905
        %2739 = vmatprep.subr.bf16.mxu0 %v1914
        %2740 = vmatpush1.bf16.msra.mxu0 %v1913
        %2741 = vmatprep.mubr.bf16.mxu0 %v692
        %2742 = vmatmul.mubr.bf16.gmra.mrb[0].mxu0 %v691
        %v2743 = vpop.f32.mrb[0].mxu0
        %v2744 = vadd.f32 %v2703, %v2743
        %v2745 = vpop.f32.mrb[0].mxu0
        %v2746 = vadd.f32 %v2705, %v2745
        %v2747 = vpop.f32.mrb[0].mxu0
        %v2748 = vpop.f32.mrb[0].mxu0
        %2749 = vdwg.mxu0
        %2750 = vmatprep.subr.bf16.mxu0 %v1922
        %2751 = vmatpush1.bf16.msra.mxu0 %v1921
        %2752 = vmatprep.subr.bf16.mxu0 %v1930
        %2753 = vmatpush1.bf16.msra.mxu0 %v1929
        %2754 = vmatprep.subr.bf16.mxu0 %v1938
        %2755 = vmatpush1.bf16.msra.mxu0 %v1937
        %2756 = vmatprep.subr.bf16.mxu0 %v1946
        %2757 = vmatpush1.bf16.msra.mxu0 %v1945
        %2758 = vmatprep.subr.bf16.mxu0 %v1954
        %2759 = vmatpush1.bf16.msra.mxu0 %v1953
        %2760 = vmatprep.subr.bf16.mxu0 %v1962
        %2761 = vmatpush1.bf16.msra.mxu0 %v1961
        %2762 = vmatprep.subr.bf16.mxu0 %v1970
        %2763 = vmatpush1.bf16.msra.mxu0 %v1969
        %2764 = vmatprep.subr.bf16.mxu0 %v1978
        %2765 = vmatpush1.bf16.msra.mxu0 %v1977
        %2766 = vmatprep.subr.bf16.mxu0 0
        %2767 = vmatpush1.bf16.msra.mxu0 0
        %2768 = vmatprep.subr.bf16.mxu0 0
        %2769 = vmatpush1.bf16.msra.mxu0 0
        %2770 = vmatprep.subr.bf16.mxu0 0
        %2771 = vmatpush1.bf16.msra.mxu0 0
        %2772 = vmatprep.subr.bf16.mxu0 0
        %2773 = vmatpush1.bf16.msra.mxu0 0
        %2774 = vmatprep.subr.bf16.mxu0 0
        %2775 = vmatpush1.bf16.msra.mxu0 0
        %2776 = vmatprep.subr.bf16.mxu0 0
        %2777 = vmatpush1.bf16.msra.mxu0 0
        %2778 = vmatprep.subr.bf16.mxu0 0
        %2779 = vmatpush1.bf16.msra.mxu0 0
        %2780 = vmatprep.subr.bf16.mxu0 0
        %2781 = vmatpush1.bf16.msra.mxu0 0
        %2782 = vmatprep.mubr.bf16.mxu0 0
        %2783 = vmatmul.mubr.bf16.gmra.mrb[0].mxu0 %v693
        %v2784 = vpop.f32.mrb[0].mxu0
        %v2785 = vadd.f32 %v2744, %v2784
        %v2786 = vpop.f32.mrb[0].mxu0
        %v2787 = vadd.f32 %v2746, %v2786
        %v2788 = vpop.f32.mrb[0].mxu0
        %v2789 = vpop.f32.mrb[0].mxu0
        %2790 = vdwg.mxu0
        %2791 = vst [vmem:[%s305] sm:$0x3f] %v2416
        %2792 = vst [vmem:[%s305 + $0x8] sm:$0x3f] %v2418
        %2793 = vst [vmem:[%s305 + $0x10] sm:$0x3f] %v2539
        %2794 = vst [vmem:[%s305 + $0x18] sm:$0x3f] %v2541
        %2795 = vst [vmem:[%s305 + $0x20] sm:$0x3f] %v2662
        %2796 = vst [vmem:[%s305 + $0x28] sm:$0x3f] %v2664
        %2797 = vst [vmem:[%s305 + $0x30] sm:$0x3f] %v2785
        %2798 = vst [vmem:[%s305 + $0x38] sm:$0x3f] %v2787
        %v2799 = vlaneseq
        %v2800 = vshrl.u32 %v2799, 7
        %v2801 = vlaneseq
        %v2802 = vand.u32 %v2801, 127
        %v2803 = vadd.s32 %v2802, 128
        %s2804 = smul.u32 %s22, 6
        %v2805 = vstv %s2804
        %v2806 = vadd.s32 %v2805, %v2800
        %v2807 = vmul.u32 %v2806, 196
        %v2808 = vadd.s32 %v2807, %v2802
        %v2809 = vadd.s32 %v2807, %v2803
        %v2810 = vcvt.s32.f32 %v2808
        %v2811 = vcvt.s32.f32 %v2809
        %v2812 = vadd.f32 %v2810, 0.5
        %v2813 = vadd.f32 %v2811, 0.5
        %v2814 = vmul.f32 %v2812, 0.023809524
        %v2815 = vmul.f32 %v2813, 0.023809524
        %v2816 = vfloor.f32 %v2814
        %v2817 = vfloor.f32 %v2815
        %v2818 = vmul.f32 %v2816, 42.0
        %v2819 = vmul.f32 %v2817, 42.0
        %v2820 = vsub.f32 %v2810, %v2818
        %v2821 = vsub.f32 %v2811, %v2819
        %v2822 = vadd.f32 %v2820, 0.5
        %v2823 = vadd.f32 %v2821, 0.5
        %v2824 = vadd.f32 %v2816, 0.5
        %v2825 = vadd.f32 %v2817, 0.5
        %s2826 = smul.u32 %s23, 128
        %s2827 = sld [smem:[#allocation2 + %s2826]]
        %v2828 = vstv %s2827
        %v2829 = vmul.f32 %v2828, %v2822
        %v2830 = vmul.f32 %v2828, %v2823
        %s2831 = sadd.s32 %s2826, 1
        %s2832 = sld [smem:[#allocation2 + %s2831]]
        %v2833 = vstv %s2832
        %v2834 = vmul.f32 %v2833, %v2824
        %v2835 = vmul.f32 %v2833, %v2825
        %v2836 = vadd.f32 %v2829, %v2834
        %v2837 = vadd.f32 %v2830, %v2835
        %s2838 = sadd.s32 %s2826, 2
        %s2839 = sld [smem:[#allocation2 + %s2838]]
        %v2840 = vstv %s2839
        %v2841 = vadd.f32 %v2836, %v2840
        %v2842 = vadd.f32 %v2837, %v2840
        %v2843 = vmul.f32 %v2416, %v2841
        %v2844 = vmul.f32 %v2418, %v2842
        %2845 = vst [vmem:[%s314] sm:$0x3f] %v2843
        %vm2846 = vcmask 553984
        %2847 = vst.msk [vmem:[%s314 + $0x8] sm:$0x3f] %vm2846, %v2844
        %s2848 = sadd.s32 %s2826, 3
        %s2849 = sld [smem:[#allocation2 + %s2848]]
        %v2850 = vstv %s2849
        %v2851 = vmul.f32 %v2850, %v2822
        %v2852 = vmul.f32 %v2850, %v2823
        %s2853 = sadd.s32 %s2826, 4
        %s2854 = sld [smem:[#allocation2 + %s2853]]
        %v2855 = vstv %s2854
        %v2856 = vmul.f32 %v2855, %v2824
        %v2857 = vmul.f32 %v2855, %v2825
        %v2858 = vadd.f32 %v2851, %v2856
        %v2859 = vadd.f32 %v2852, %v2857
        %s2860 = sadd.s32 %s2826, 5
        %s2861 = sld [smem:[#allocation2 + %s2860]]
        %v2862 = vstv %s2861
        %v2863 = vadd.f32 %v2858, %v2862
        %v2864 = vadd.f32 %v2859, %v2862
        %v2865 = vmul.f32 %v2416, %v2863
        %v2866 = vmul.f32 %v2418, %v2864
        %s2867 = scalar_lea.vmem %s314, 16
        %2868 = vst [vmem:[%s2867] sm:$0x3f] %v2865
        %2869 = vst.msk [vmem:[%s2867 + $0x8] sm:$0x3f] %vm2846, %v2866
        %s2870 = sadd.s32 %s2826, 6
        %s2871 = sld [smem:[#allocation2 + %s2870]]
        %v2872 = vstv %s2871
        %v2873 = vmul.f32 %v2872, %v2822
        %v2874 = vmul.f32 %v2872, %v2823
        %s2875 = sadd.s32 %s2826, 7
        %s2876 = sld [smem:[#allocation2 + %s2875]]
        %v2877 = vstv %s2876
        %v2878 = vmul.f32 %v2877, %v2824
        %v2879 = vmul.f32 %v2877, %v2825
        %v2880 = vadd.f32 %v2873, %v2878
        %v2881 = vadd.f32 %v2874, %v2879
        %s2882 = sadd.s32 %s2826, 8
        %s2883 = sld [smem:[#allocation2 + %s2882]]
        %v2884 = vstv %s2883
        %v2885 = vadd.f32 %v2880, %v2884
        %v2886 = vadd.f32 %v2881, %v2884
        %v2887 = vmul.f32 %v2416, %v2885
        %v2888 = vmul.f32 %v2418, %v2886
        %s2889 = scalar_lea.vmem %s314, 32
        %2890 = vst [vmem:[%s2889] sm:$0x3f] %v2887
        %2891 = vst.msk [vmem:[%s2889 + $0x8] sm:$0x3f] %vm2846, %v2888
        %p2892 = scmp.lt.s32.totalorder %s23, 1
        %s2893 = scalar_select %p2892, %s23, 1
        %p2894 = scmp.lt.s32.totalorder %s22, 0
        %s2895 = scalar_select %p2894, %s22, 0
        %s2896 = smul.addr %s2895, 8
        %s2897 = smul.addr %s2893, 8
        %s2898 = sadd.s32 %s2896, %s2897
        %s2899 = smul.addr %s2898, 8
        %s2900 = scalar_lea.vmem %s4, %s2899
        %p2901 = scmp.lt.s32.totalorder %s23, 1
        %s2902 = scalar_select %p2901, %s23, 1
        %p2903 = scmp.lt.s32.totalorder %s22, 0
        %s2904 = scalar_select %p2903, %s22, 0
        %s2905 = smul.addr %s2904, 2
        %s2906 = smul.addr %s2902, 6
        %s2907 = sadd.s32 %s2905, %s2906
        %s2908 = smul.addr %s2907, 8
        %s2909 = scalar_lea.vmem %s5, %s2908
        // Predicated region
        $region41: #{_lambda_.1} parent=35 // pred_check
          %p2910 = pneg %p146
        $region42: #{_lambda_.1} parent=35 // pred_check_branch
          %2912 = sbr.rel (%p2910) target = $region44
        $region43: #{_lambda_.1} parent=35 // pred_region
          _
        $region44: #{_lambda_.1} parent=35 // pred_fallthru
          _
        // Predicated region
        $region45: #{_lambda_.1} parent=35 // pred_check
          %p2913 = pneg %p174
        $region46: #{_lambda_.1} parent=35 // pred_check_branch
          %2915 = sbr.rel (%p2913) target = $region48
        $region47: #{_lambda_.1} parent=35 // pred_region
          _
        $region48: #{_lambda_.1} parent=35 // pred_fallthru
          _
      $region36: #{_lambda_.1} parent=5 // pred_fallthru
        _
      %p2916 = scmp.le.s32.totalorder 2, %s13
      // Predicated region
      $region49: #{_lambda_.1} parent=5 // pred_check
        %p2917 = pneg %p2916
      $region50: #{_lambda_.1} parent=5 // pred_check_branch
        %2919 = sbr.rel (%p2917) target = $region52
      $region51: #{_lambda_.1} parent=5 // pred_region
        %s2920 = ssub.s32 %s13, 2
        // Predicated region
        $region53: #{_lambda_.1} parent=51 // pred_check
          %p2921 = pneg %p152
        $region54: #{_lambda_.1} parent=51 // pred_check_branch
          %2923 = sbr.rel (%p2921) target = $region56
        $region55: #{_lambda_.1} parent=51 // pred_region
          %p2924 = scmp.lt.s32.totalorder %s25, 1
          %s2925 = scalar_select %p2924, %s25, 1
          %p2926 = scmp.lt.s32.totalorder %s24, 0
          %s2927 = scalar_select %p2926, %s24, 0
          %s2928 = smul.addr %s2927, 8
          %s2929 = smul.addr %s2925, 8
          %s2930 = sadd.s32 %s2928, %s2929
          %s2931 = smul.addr %s2930, 8
          %s2932 = scalar_lea.vmem %s4, %s2931
        $region56: #{_lambda_.1} parent=51 // pred_fallthru
          _
        // Predicated region
        $region57: #{_lambda_.1} parent=51 // pred_check
          %p2933 = pneg %p180
        $region58: #{_lambda_.1} parent=51 // pred_check_branch
          %2935 = sbr.rel (%p2933) target = $region60
        $region59: #{_lambda_.1} parent=51 // pred_region
          %p2936 = scmp.lt.s32.totalorder %s25, 1
          %s2937 = scalar_select %p2936, %s25, 1
          %p2938 = scmp.lt.s32.totalorder %s24, 0
          %s2939 = scalar_select %p2938, %s24, 0
          %s2940 = smul.addr %s2939, 2
          %s2941 = smul.addr %s2937, 6
          %s2942 = sadd.s32 %s2940, %s2941
          %s2943 = smul.addr %s2942, 8
          %s2944 = scalar_lea.vmem %s5, %s2943
        $region60: #{_lambda_.1} parent=51 // pred_fallthru
          _
      $region52: #{_lambda_.1} parent=5 // pred_fallthru
        _
    $region6: #{_lambda_.1} parent=1 // loop_footer
      %s17 = sadd.s32 1, %s13
    $region7: #{_lambda_.1} parent=1 // loop_footer_branch
      %12 = sbr.rel target = $region3
    $region8: #{_lambda_.1} parent=1 // loop_exit
      _
    %2945 = vsyncpa [#allocation3], 1
    %s2946 = scalar_lea.sflag [#allocation3], 1
    %2947 = vsyncpa %s2946, 1

</llo_original>
